<compile_context>
chip_gen: v7x
topology: tpu7x:2x2x1
jax: 0.10.0
libtpu: 0.0.40
codegen_flags: <defaults>
</compile_context>

<pallas_src>
import functools

import jax
import jax.numpy as jnp
from jax.experimental import pallas as pl
from jax.experimental.pallas import tpu as pltpu


# ----------------------------- in-kernel helpers -----------------------------

def _layer_norm(x, gamma, beta, eps=1e-6):
    mu = jnp.mean(x, axis=-1, keepdims=True)
    var = jnp.mean((x - mu) ** 2, axis=-1, keepdims=True)
    return (x - mu) * jax.lax.rsqrt(var + eps) * gamma + beta


def _mha(q, k, v, w_o, bias, *, n_head, d_k, d_v, kc):
    """Head-batched multi-head attention for ONE batch element.

    q: (Lq, H*dk) bf16   k: (Lk, H*dk) bf16   v: (Lk, H*dv) bf16
       (1/sqrt(d_k) already folded into the Q projection weights)
    w_o: (H*dv, D) bf16  bias: f32 additive mask broadcastable to (Lq, Lk)
    kc: static key-chunk size for the online softmax.
    Returns (Lq, D) f32.
    """
    H, dk, dv = n_head, d_k, d_v
    Lq, Lk = q.shape[0], k.shape[0]

    # head-major stacking -> single H-batched MXU matmuls instead of H tiny ones
    q3 = jnp.stack([q[:, h * dk:(h + 1) * dk] for h in range(H)], axis=0)  # (H,Lq,dk)
    k3 = jnp.stack([k[:, h * dk:(h + 1) * dk] for h in range(H)], axis=0)  # (H,Lk,dk)
    v3 = jnp.stack([v[:, h * dv:(h + 1) * dv] for h in range(H)], axis=0)  # (H,Lk,dv)

    m = jnp.full((H, Lq, 1), -jnp.inf, dtype=jnp.float32)
    l = jnp.zeros((H, Lq, 1), dtype=jnp.float32)
    acc = jnp.zeros((H, Lq, dv), dtype=jnp.float32)

    # online softmax over key chunks (static unroll): the full (Lq, Lk) f32
    # score matrix never materializes at production Lk.
    for c0 in range(0, Lk, kc):
        c1 = min(c0 + kc, Lk)
        s = jnp.einsum('hqd,hkd->hqk', q3, k3[:, c0:c1, :],
                       preferred_element_type=jnp.float32)          # (H,Lq,ck)
        s = s + bias[:, c0:c1]                                      # additive mask
        m_new = jnp.maximum(m, jnp.max(s, axis=-1, keepdims=True))
        alpha = jnp.exp(m - m_new)
        p = jnp.exp(s - m_new)
        l = alpha * l + jnp.sum(p, axis=-1, keepdims=True)
        acc = alpha * acc + jnp.einsum('hqk,hkd->hqd',
                                       p.astype(jnp.bfloat16), v3[:, c0:c1, :],
                                       preferred_element_type=jnp.float32)
        m = m_new

    ctx = acc * pl.reciprocal(l, approx=True)                       # (H, Lq, dv)
    cat = jnp.concatenate([ctx[h] for h in range(H)], axis=-1)      # (Lq, H*dv)
    return jnp.dot(cat.astype(jnp.bfloat16), w_o,
                   preferred_element_type=jnp.float32)              # (Lq, D)


# -------------- fused decoder LAYER STACK (grid = batch_blocks x layers) ------

def _decoder_stack_kernel(x_ref, enc_ref, spad_ref, ebias_ref, pos_ref, g0_ref, b0_ref,
                          wqkv_s_ref, wo_s_ref, g1_ref, bt1_ref,
                          wq_c_ref, wkv_c_ref, wo_c_ref, g2_ref, bt2_ref,
                          w1_ref, fb1_ref, w2_ref, fb2_ref, g3_ref, bt3_ref,
                          o_ref, *, n_head, d_k, d_v, emb_scale, kc, fc):
    l_idx = pl.program_id(1)
    H, dk, dv = n_head, d_k, d_v
    TB, L, D = o_ref.shape
    Lk = enc_ref.shape[1]

    # ---- layer 0: fused emb-scale + positional add + pre-stack LayerNorm ----
    @pl.when(l_idx == 0)
    def _():
        xe = x_ref[...] * emb_scale + pos_ref[...]           # (TB, L, D) f32
        o_ref[...] = _layer_norm(xe, g0_ref[...], b0_ref[...])

    x2 = o_ref[...].reshape(TB * L, D)                       # resident activation
    x_bf = x2.astype(jnp.bfloat16)

    # causal bias generated in-kernel (no (B, L, L) HBM traffic / VMEM block)
    row = jax.lax.broadcasted_iota(jnp.int32, (L, L), 0)
    col = jax.lax.broadcasted_iota(jnp.int32, (L, L), 1)
    causal = jnp.where(col <= row, 0.0, -1e9).astype(jnp.float32)

    # ---------------- self-attention (fused, pre-scaled QKV matmul) ----------
    qkv = jnp.dot(x_bf, wqkv_s_ref[...],
                  preferred_element_type=jnp.float32).astype(jnp.bfloat16)
    qkv3 = qkv.reshape(TB, L, H * (2 * dk + dv))
    outs = []
    for b in range(TB):                                      # static unroll over batch block
        bias_b = causal + spad_ref[b]                        # (L, L) + (1, L) key-pad
        outs.append(_mha(qkv3[b, :, :H * dk],
                         qkv3[b, :, H * dk:2 * H * dk],
                         qkv3[b, :, 2 * H * dk:],
                         wo_s_ref[...], bias_b,
                         n_head=H, d_k=dk, d_v=dv, kc=kc))
    a_out = jnp.concatenate(outs, axis=0)                    # (TB*L, D)
    x2 = _layer_norm(a_out + x2, g1_ref[...], bt1_ref[...])
    x_bf = x2.astype(jnp.bfloat16)

    # ---------------- encoder-decoder cross-attention -----------------------
    q_c = jnp.dot(x_bf, wq_c_ref[...],
                  preferred_element_type=jnp.float32).astype(jnp.bfloat16)
    q_c3 = q_c.reshape(TB, L, H * dk)
    enc2 = enc_ref[...].reshape(TB * Lk, D)                  # already bf16 (wrapper cast)
    kv = jnp.dot(enc2, wkv_c_ref[...],
                 preferred_element_type=jnp.float32).astype(jnp.bfloat16)
    kv3 = kv.reshape(TB, Lk, H * (dk + dv))
    outs = []
    for b in range(TB):
        outs.append(_mha(q_c3[b],
                         kv3[b, :, :H * dk],
                         kv3[b, :, H * dk:],
                         wo_c_ref[...], ebias_ref[b],
                         n_head=H, d_k=dk, d_v=dv, kc=kc))
    a_out = jnp.concatenate(outs, axis=0)
    x2 = _layer_norm(a_out + x2, g2_ref[...], bt2_ref[...])
    x_bf = x2.astype(jnp.bfloat16)

    # -------- position-wise feed-forward (d_inner reduction chunked) --------
    d_inner = w1_ref.shape[1]
    y = jnp.zeros((TB * L, D), jnp.float32)
    for c0 in range(0, d_inner, fc):
        c1 = min(c0 + fc, d_inner)
        h = jnp.dot(x_bf, w1_ref[:, c0:c1],
                    preferred_element_type=jnp.float32) + fb1_ref[:, c0:c1]
        h = jnp.maximum(h, 0.0)
        y = y + jnp.dot(h.astype(jnp.bfloat16), w2_ref[c0:c1, :],
                        preferred_element_type=jnp.float32)
    y = y + fb2_ref[...]
    x2 = _layer_norm(y + x2, g3_ref[...], bt3_ref[...])

    o_ref[...] = x2.reshape(TB, L, D)                        # stays resident until b changes


def _pick_tb(batch, cap=8):
    tb = 1
    for t in range(1, min(batch, cap) + 1):
        if batch % t == 0:
            tb = t
    return tb


def _vmem_limit_bytes():
    cap = 128 * 1024 * 1024
    try:
        cap = int(pltpu.get_tpu_info().vmem_capacity_bytes)
    except Exception:
        pass
    # ~75% of physical VMEM, capped at 100 MiB: ~48 MiB on v7x, 96 MiB on v5e/v6e.
    return min(cap * 3 // 4, 100 * 1024 * 1024)


def decoder_stack(x_emb, enc_bf, slf_pad_bias, enc_bias, pos, p, *,
                  n_head, d_k, d_v, emb_scale, tb=None):
    B, L, D = x_emb.shape
    Lk = enc_bf.shape[1]
    n_layers = p["wqkv_s"].shape[0]
    d_inner = p["w1"].shape[2]
    H, dk, dv = n_head, d_k, d_v

    TB = tb if tb is not None else _pick_tb(B)
    kc = min(Lk, 512)            # key chunk (online softmax)
    fc = min(d_inner, 1024)      # FFN d_inner chunk

    kern = functools.partial(_decoder_stack_kernel, n_head=H, d_k=dk, d_v=dv,
                             emb_scale=emb_scale, kc=kc, fc=fc)

    def bspec(shape):   # batch-blocked input, constant across the layer axis
        return pl.BlockSpec((TB,) + shape, lambda b, l: (b, 0, 0))

    def cspec(shape):   # shared (constant) block
        return pl.BlockSpec(shape, lambda b, l: (0, 0))

    def wspec(shape):   # per-layer weight block, streamed along the layer axis
        return pl.BlockSpec((pl.Squeezed(),) + shape, lambda b, l: (l, 0, 0))

    return pl.pallas_call(
        kern,
        out_shape=jax.ShapeDtypeStruct((B, L, D), jnp.float32),
        grid=(B // TB, n_layers),
        in_specs=[
            bspec((L, D)),                      # raw embedding (f32)
            bspec((Lk, D)),                     # enc_output (bf16)
            bspec((1, L)),                      # self key-padding bias
            bspec((1, Lk)),                     # cross key-padding bias
            cspec((L, D)),                      # positional table slice
            cspec((1, D)), cspec((1, D)),       # pre-stack LN gamma/beta
            wspec((D, H * (2 * dk + dv))),      # wqkv_s (Q pre-scaled by 1/sqrt(dk))
            wspec((H * dv, D)),                 # wo_s
            wspec((1, D)), wspec((1, D)),       # ln1 gamma/beta
            wspec((D, H * dk)),                 # wq_c (pre-scaled)
            wspec((D, H * (dk + dv))),          # wkv_c
            wspec((H * dv, D)),                 # wo_c
            wspec((1, D)), wspec((1, D)),       # ln2 gamma/beta
            wspec((D, d_inner)),                # w1
            wspec((1, d_inner)),                # b1
            wspec((d_inner, D)),                # w2
            wspec((1, D)),                      # b2
            wspec((1, D)), wspec((1, D)),       # ln3 gamma/beta
        ],
        out_specs=pl.BlockSpec((TB, L, D), lambda b, l: (b, 0, 0)),
        compiler_params=pltpu.CompilerParams(
            # TODO(synk): use pltpu.CORE_PARALLEL on the batch axis for v7x's 2 TensorCores.
            dimension_semantics=("parallel", "arbitrary"),
            vmem_limit_bytes=_vmem_limit_bytes()),
    )(x_emb, enc_bf, slf_pad_bias, enc_bias,
      pos, p["ln_g"], p["ln_b"],
      p["wqkv_s"], p["wo_s"], p["ln1_g"], p["ln1_b"],
      p["wq_c"], p["wkv_c"], p["wo_c"], p["ln2_g"], p["ln2_b"],
      p["w1"], p["b1"], p["w2"], p["b2"], p["ln3_g"], p["ln3_b"])


# ----------------------------- parameter setup --------------------------------

def sinusoid_table(n_position, d_hid):
    position = jnp.arange(n_position, dtype=jnp.float32)[:, None]
    div_term = jnp.power(10000.0, jnp.arange(0, d_hid, 2, dtype=jnp.float32) / d_hid)
    angle = position / div_term
    table = jnp.zeros((n_position, d_hid), dtype=jnp.float32)
    table = table.at[:, 0::2].set(jnp.sin(angle))
    table = table.at[:, 1::2].set(jnp.cos(angle))
    return table


def init_params(key, *, n_tgt_vocab, d_word_vec, n_layers, n_head, d_k, d_v,
                d_model, d_inner, pad_idx, n_position=200):
    H, dk, dv, D = n_head, d_k, d_v, d_model
    q_scale = 1.0 / (dk ** 0.5)          # folded into Wq columns (no per-head VPU scale)

    def nrm(k, shape, scale=0.05):
        return scale * jax.random.normal(k, shape, dtype=jnp.float32)

    keys = iter(jax.random.split(key, 1 + n_layers * 9))
    emb = 0.1 * jax.random.normal(next(keys), (n_tgt_vocab, d_word_vec), dtype=jnp.float32)
    emb = emb.at[pad_idx].set(0.0)       # nn.Embedding padding_idx behavior

    wqkv_s, wo_s, wq_c, wkv_c, wo_c = [], [], [], [], []
    w1, b1, w2, b2 = [], [], [], []
    for _ in range(n_layers):
        wqkv = nrm(next(keys), (D, H * (2 * dk + dv)))
        wqkv = wqkv.at[:, :H * dk].multiply(q_scale)            # pre-scale Q block
        wqkv_s.append(wqkv.astype(jnp.bfloat16))
        wo_s.append(nrm(next(keys), (H * dv, D)).astype(jnp.bfloat16))
        wq_c.append((nrm(next(keys), (D, H * dk)) * q_scale).astype(jnp.bfloat16))
        wkv_c.append(nrm(next(keys), (D, H * (dk + dv))).astype(jnp.bfloat16))
        wo_c.append(nrm(next(keys), (H * dv, D)).astype(jnp.bfloat16))
        w1.append(nrm(next(keys), (D, d_inner)).astype(jnp.bfloat16))
        b1.append(nrm(next(keys), (1, d_inner)))
        w2.append(nrm(next(keys), (d_inner, D)).astype(jnp.bfloat16))
        b2.append(nrm(next(keys), (1, D)))

    ones = jnp.ones((n_layers, 1, D), jnp.float32)
    zeros = jnp.zeros((n_layers, 1, D), jnp.float32)
    return {
        "emb": emb,
        "pos_table": sinusoid_table(n_position, d_word_vec),
        "ln_g": jnp.ones((1, D), jnp.float32),
        "ln_b": jnp.zeros((1, D), jnp.float32),
        "wqkv_s": jnp.stack(wqkv_s), "wo_s": jnp.stack(wo_s),
        "ln1_g": ones, "ln1_b": zeros,
        "wq_c": jnp.stack(wq_c), "wkv_c": jnp.stack(wkv_c), "wo_c": jnp.stack(wo_c),
        "ln2_g": ones, "ln2_b": zeros,
        "w1": jnp.stack(w1), "b1": jnp.stack(b1),
        "w2": jnp.stack(w2), "b2": jnp.stack(b2),
        "ln3_g": ones, "ln3_b": zeros,
    }


# ------------------------------ Decoder forward --------------------------------

def decoder_forward(params, tgt_seq, tgt_pad_mask, enc_output, src_mask, *,
                    n_head, d_k, d_v, scale_emb=False, tb=None):
    """Decoder.forward (eval mode: dropout = identity).

    tgt_pad_mask: (B, 1, L) key-padding component of the PyTorch tgt_mask (1 keep,
    0 masked). The causal (subsequent-position) component is generated inside the
    kernel, so the combined bias reproduces tgt_mask = pad_mask & subsequent_mask.
    """
    B, L = tgt_seq.shape
    D = params["emb"].shape[1]

    # embedding lookup stays in plain JAX (no tiled hot path for a gather here)
    x = jnp.take(params["emb"], tgt_seq, axis=0).astype(jnp.float32)     # (B, L, D)
    emb_scale = float(D) ** 0.5 if scale_emb else 1.0

    # key-padding masks -> additive biases computed ONCE (0 keep, -1e9 masked)
    slf_pad_bias = (tgt_pad_mask.astype(jnp.float32) - 1.0) * 1e9        # (B, 1, L)
    enc_bias = (src_mask.astype(jnp.float32) - 1.0) * 1e9                # (B, 1, Lk)

    return decoder_stack(x, enc_output.astype(jnp.bfloat16),
                         slf_pad_bias, enc_bias, params["pos_table"][:L], params,
                         n_head=n_head, d_k=d_k, d_v=d_v,
                         emb_scale=emb_scale, tb=tb)
    # TODO(synk): return_attn=True path (per-layer attention maps) is not returned.


# ------------------------------------ main -------------------------------------

if __name__ == "__main__":
    # small, forward-consistent shapes
    B, L_dec, L_enc = 2, 8, 8
    n_tgt_vocab, d_word_vec, d_model, d_inner = 50, 32, 32, 64
    n_layers, n_head, d_k, d_v, pad_idx = 2, 4, 8, 8, 0

    key = jax.random.PRNGKey(0)
    k_par, k_seq, k_enc = jax.random.split(key, 3)

    params = init_params(
        k_par, n_tgt_vocab=n_tgt_vocab, d_word_vec=d_word_vec, n_layers=n_layers,
        n_head=n_head, d_k=d_k, d_v=d_v, d_model=d_model, d_inner=d_inner,
        pad_idx=pad_idx, n_position=200)

    tgt_seq = jax.random.randint(k_seq, (B, L_dec), 1, n_tgt_vocab, dtype=jnp.int32)
    enc_output = 0.1 * jax.random.normal(k_enc, (B, L_enc, d_model), dtype=jnp.float32)

    # key-padding masks (all visible); the causal mask is generated in-kernel,
    # so this reproduces the original causal tgt_mask for a no-padding batch.
    tgt_pad_mask = jnp.ones((B, 1, L_dec), jnp.float32)
    src_mask = jnp.ones((B, 1, L_enc), jnp.float32)

    out = decoder_forward(params, tgt_seq, tgt_pad_mask, enc_output, src_mask,
                          n_head=n_head, d_k=d_k, d_v=d_v, scale_emb=False)
    out = jax.block_until_ready(out)
    assert out.shape == (B, L_dec, d_model) and out.dtype == jnp.float32
    assert bool(jnp.all(jnp.isfinite(out)))
    print("KERNEL_OK")
</pallas_src>

<mosaic_0001>
module attributes {stable_mosaic.version = 11 : i64} {
  func.func @_decoder_stack_kernel(%arg0: i32, %arg1: i32, %arg2: memref<2x8x32xf32, #tpu.memory_space<vmem>>, %arg3: memref<2x8x32xbf16, #tpu.memory_space<vmem>>, %arg4: memref<2x1x8xf32, #tpu.memory_space<vmem>>, %arg5: memref<2x1x8xf32, #tpu.memory_space<vmem>>, %arg6: memref<8x32xf32, #tpu.memory_space<vmem>>, %arg7: memref<1x32xf32, #tpu.memory_space<vmem>>, %arg8: memref<1x32xf32, #tpu.memory_space<vmem>>, %arg9: memref<1x32x96xbf16, #tpu.memory_space<vmem>>, %arg10: memref<1x32x32xbf16, #tpu.memory_space<vmem>>, %arg11: memref<1x1x32xf32, #tpu.memory_space<vmem>>, %arg12: memref<1x1x32xf32, #tpu.memory_space<vmem>>, %arg13: memref<1x32x32xbf16, #tpu.memory_space<vmem>>, %arg14: memref<1x32x64xbf16, #tpu.memory_space<vmem>>, %arg15: memref<1x32x32xbf16, #tpu.memory_space<vmem>>, %arg16: memref<1x1x32xf32, #tpu.memory_space<vmem>>, %arg17: memref<1x1x32xf32, #tpu.memory_space<vmem>>, %arg18: memref<1x32x64xbf16, #tpu.memory_space<vmem>>, %arg19: memref<1x1x64xf32, #tpu.memory_space<vmem>>, %arg20: memref<1x64x32xbf16, #tpu.memory_space<vmem>>, %arg21: memref<1x1x32xf32, #tpu.memory_space<vmem>>, %arg22: memref<1x1x32xf32, #tpu.memory_space<vmem>>, %arg23: memref<1x1x32xf32, #tpu.memory_space<vmem>>, %arg24: memref<2x8x32xf32, #tpu.memory_space<vmem>>) attributes {dimension_semantics = [#tpu.dimension_semantics<parallel>, #tpu.dimension_semantics<arbitrary>], iteration_bounds = array<i64: 1, 2>, scalar_prefetch = 0 : i64, scratch_operands = 0 : i64, tpu.core_type = #tpu.core_type<tc>, window_params = [{transform_indices = @transform_0, window_bounds = array<i64: 2, 8, 32>}, {transform_indices = @transform_1, window_bounds = array<i64: 2, 8, 32>}, {transform_indices = @transform_2, window_bounds = array<i64: 2, 1, 8>}, {transform_indices = @transform_3, window_bounds = array<i64: 2, 1, 8>}, {pipeline_mode = #tpu.pipeline_mode<synchronous>, transform_indices = @transform_4, window_bounds = array<i64: 8, 32>}, {pipeline_mode = #tpu.pipeline_mode<synchronous>, transform_indices = @transform_5, window_bounds = array<i64: 1, 32>}, {pipeline_mode = #tpu.pipeline_mode<synchronous>, transform_indices = @transform_6, window_bounds = array<i64: 1, 32>}, {transform_indices = @transform_7, window_bounds = array<i64: 1, 32, 96>}, {transform_indices = @transform_8, window_bounds = array<i64: 1, 32, 32>}, {transform_indices = @transform_9, window_bounds = array<i64: 1, 1, 32>}, {transform_indices = @transform_10, window_bounds = array<i64: 1, 1, 32>}, {transform_indices = @transform_11, window_bounds = array<i64: 1, 32, 32>}, {transform_indices = @transform_12, window_bounds = array<i64: 1, 32, 64>}, {transform_indices = @transform_13, window_bounds = array<i64: 1, 32, 32>}, {transform_indices = @transform_14, window_bounds = array<i64: 1, 1, 32>}, {transform_indices = @transform_15, window_bounds = array<i64: 1, 1, 32>}, {transform_indices = @transform_16, window_bounds = array<i64: 1, 32, 64>}, {transform_indices = @transform_17, window_bounds = array<i64: 1, 1, 64>}, {transform_indices = @transform_18, window_bounds = array<i64: 1, 64, 32>}, {transform_indices = @transform_19, window_bounds = array<i64: 1, 1, 32>}, {transform_indices = @transform_20, window_bounds = array<i64: 1, 1, 32>}, {transform_indices = @transform_21, window_bounds = array<i64: 1, 1, 32>}, {transform_indices = @transform_22, window_bounds = array<i64: 2, 8, 32>}]} {
    %c0_i32 = arith.constant 0 : i32
    %0 = arith.cmpi eq, %arg1, %c0_i32 : i32
    %1 = arith.extui %0 : i1 to i32
    %c0_i32_0 = arith.constant 0 : i32
    %2 = arith.cmpi ne, %1, %c0_i32_0 : i32
    scf.if %2 {
      %c0_126 = arith.constant 0 : index
      %c0_127 = arith.constant 0 : index
      %c0_128 = arith.constant 0 : index
      %439 = vector.load %arg2[%c0_126, %c0_127, %c0_128] : memref<2x8x32xf32, #tpu.memory_space<vmem>>, vector<2x8x32xf32>
      %cst_129 = arith.constant 1.000000e+00 : f32
      %440 = vector.broadcast %cst_129 : f32 to vector<2x8x32xf32>
      %441 = arith.mulf %439, %440 : vector<2x8x32xf32>
      %c0_130 = arith.constant 0 : index
      %c0_131 = arith.constant 0 : index
      %442 = vector.load %arg6[%c0_130, %c0_131] : memref<8x32xf32, #tpu.memory_space<vmem>>, vector<8x32xf32>
      %443 = vector.shape_cast %442 : vector<8x32xf32> to vector<1x8x32xf32>
      %444 = vector.broadcast %443 : vector<1x8x32xf32> to vector<2x8x32xf32>
      %445 = arith.addf %441, %444 : vector<2x8x32xf32>
      %c0_132 = arith.constant 0 : index
      %c0_133 = arith.constant 0 : index
      %446 = vector.load %arg7[%c0_132, %c0_133] : memref<1x32xf32, #tpu.memory_space<vmem>>, vector<1x32xf32>
      %c0_134 = arith.constant 0 : index
      %c0_135 = arith.constant 0 : index
      %447 = vector.load %arg8[%c0_134, %c0_135] : memref<1x32xf32, #tpu.memory_space<vmem>>, vector<1x32xf32>
      %cst_136 = arith.constant dense<0.000000e+00> : vector<2x8xf32>
      %448 = vector.multi_reduction <add>, %445, %cst_136 [2] : vector<2x8x32xf32> to vector<2x8xf32>
      %449 = vector.shape_cast %448 : vector<2x8xf32> to vector<2x8x1xf32>
      %cst_137 = arith.constant 3.200000e+01 : f32
      %450 = vector.broadcast %cst_137 : f32 to vector<2x8x1xf32>
      %451 = arith.divf %449, %450 : vector<2x8x1xf32>
      %452 = vector.broadcast %451 : vector<2x8x1xf32> to vector<2x8x32xf32>
      %453 = arith.subf %445, %452 : vector<2x8x32xf32>
      %454 = arith.mulf %453, %453 : vector<2x8x32xf32>
      %cst_138 = arith.constant dense<0.000000e+00> : vector<2x8xf32>
      %455 = vector.multi_reduction <add>, %454, %cst_138 [2] : vector<2x8x32xf32> to vector<2x8xf32>
      %456 = vector.shape_cast %455 : vector<2x8xf32> to vector<2x8x1xf32>
      %cst_139 = arith.constant 3.200000e+01 : f32
      %457 = vector.broadcast %cst_139 : f32 to vector<2x8x1xf32>
      %458 = arith.divf %456, %457 : vector<2x8x1xf32>
      %459 = vector.broadcast %451 : vector<2x8x1xf32> to vector<2x8x32xf32>
      %460 = arith.subf %445, %459 : vector<2x8x32xf32>
      %cst_140 = arith.constant 9.99999997E-7 : f32
      %461 = vector.broadcast %cst_140 : f32 to vector<2x8x1xf32>
      %462 = arith.addf %458, %461 : vector<2x8x1xf32>
      %463 = math.rsqrt %462 : vector<2x8x1xf32>
      %464 = vector.broadcast %463 : vector<2x8x1xf32> to vector<2x8x32xf32>
      %465 = arith.mulf %460, %464 : vector<2x8x32xf32>
      %466 = vector.shape_cast %446 : vector<1x32xf32> to vector<1x1x32xf32>
      %467 = vector.broadcast %466 : vector<1x1x32xf32> to vector<2x8x32xf32>
      %468 = arith.mulf %465, %467 : vector<2x8x32xf32>
      %469 = vector.shape_cast %447 : vector<1x32xf32> to vector<1x1x32xf32>
      %470 = vector.broadcast %469 : vector<1x1x32xf32> to vector<2x8x32xf32>
      %471 = arith.addf %468, %470 : vector<2x8x32xf32>
      %c0_141 = arith.constant 0 : index
      %c0_142 = arith.constant 0 : index
      %c0_143 = arith.constant 0 : index
      %472 = vector.load %arg24[%c0_141, %c0_142, %c0_143] : memref<2x8x32xf32, #tpu.memory_space<vmem>>, vector<2x8x32xf32>
      tpu.vector_store %arg24[%c0_141, %c0_142, %c0_143], %471 {strides = array<i32>} : memref<2x8x32xf32, #tpu.memory_space<vmem>>, vector<2x8x32xf32>,
    } else {
    }
    %c0 = arith.constant 0 : index
    %c0_1 = arith.constant 0 : index
    %c0_2 = arith.constant 0 : index
    %3 = vector.load %arg24[%c0, %c0_1, %c0_2] : memref<2x8x32xf32, #tpu.memory_space<vmem>>, vector<2x8x32xf32>
    %4 = vector.shape_cast %3 : vector<2x8x32xf32> to vector<16x32xf32>
    %5 = arith.truncf %4 : vector<16x32xf32> to vector<16x32xbf16>
    %6 = tpu.iota {dimensions = array<i32: 0>} : vector<8x8xi32>
    %7 = tpu.iota {dimensions = array<i32: 1>} : vector<8x8xi32>
    %8 = arith.cmpi sle, %7, %6 : vector<8x8xi32>
    %cst = arith.constant 0.000000e+00 : f32
    %cst_3 = arith.constant -1.000000e+09 : f32
    %9 = vector.broadcast %cst : f32 to vector<8x8xf32>
    %10 = vector.broadcast %cst_3 : f32 to vector<8x8xf32>
    %11 = arith.select %8, %9, %10 : vector<8x8xi1>, vector<8x8xf32>
    %c0_4 = arith.constant 0 : index
    %c0_5 = arith.constant 0 : index
    %c0_6 = arith.constant 0 : index
    %12 = vector.load %arg9[%c0_4, %c0_5, %c0_6] : memref<1x32x96xbf16, #tpu.memory_space<vmem>>, vector<1x32x96xbf16>
    %13 = vector.shape_cast %12 : vector<1x32x96xbf16> to vector<32x96xbf16>
    %cst_7 = arith.constant dense<0.000000e+00> : vector<16x96xf32>
    %14 = tpu.matmul %5, %13, %cst_7 {dimension_numbers = #tpu.dot_dimension_numbers<[1], [0], [0], [1], [0, 0, 1, 1], [], []>} : vector<16x32xbf16>, vector<32x96xbf16>, vector<16x96xf32> -> vector<16x96xf32>
    %15 = arith.truncf %14 : vector<16x96xf32> to vector<16x96xbf16>
    %16 = vector.shape_cast %15 : vector<16x96xbf16> to vector<2x8x96xbf16>
    %c0_8 = arith.constant 0 : index
    %c0_9 = arith.constant 0 : index
    %c0_10 = arith.constant 0 : index
    %17 = vector.load %arg4[%c0_8, %c0_9, %c0_10] : memref<2x1x8xf32, #tpu.memory_space<vmem>>, vector<1x1x8xf32>
    %18 = vector.shape_cast %17 : vector<1x1x8xf32> to vector<1x8xf32>
    %19 = vector.broadcast %18 : vector<1x8xf32> to vector<8x8xf32>
    %20 = arith.addf %11, %19 : vector<8x8xf32>
    %21 = vector.extract_strided_slice %16 {offsets = [0, 0, 0], sizes = [1, 8, 32], strides = [1, 1, 1]} : vector<2x8x96xbf16> to vector<1x8x32xbf16>
    %22 = vector.shape_cast %21 : vector<1x8x32xbf16> to vector<8x32xbf16>
    %23 = vector.extract_strided_slice %16 {offsets = [0, 0, 32], sizes = [1, 8, 32], strides = [1, 1, 1]} : vector<2x8x96xbf16> to vector<1x8x32xbf16>
    %24 = vector.shape_cast %23 : vector<1x8x32xbf16> to vector<8x32xbf16>
    %25 = vector.extract_strided_slice %16 {offsets = [0, 0, 64], sizes = [1, 8, 32], strides = [1, 1, 1]} : vector<2x8x96xbf16> to vector<1x8x32xbf16>
    %26 = vector.shape_cast %25 : vector<1x8x32xbf16> to vector<8x32xbf16>
    %c0_11 = arith.constant 0 : index
    %c0_12 = arith.constant 0 : index
    %c0_13 = arith.constant 0 : index
    %27 = vector.load %arg10[%c0_11, %c0_12, %c0_13] : memref<1x32x32xbf16, #tpu.memory_space<vmem>>, vector<1x32x32xbf16>
    %28 = vector.shape_cast %27 : vector<1x32x32xbf16> to vector<32x32xbf16>
    %29 = vector.extract_strided_slice %22 {offsets = [0, 0], sizes = [8, 8], strides = [1, 1]} : vector<8x32xbf16> to vector<8x8xbf16>
    %30 = vector.extract_strided_slice %22 {offsets = [0, 8], sizes = [8, 8], strides = [1, 1]} : vector<8x32xbf16> to vector<8x8xbf16>
    %31 = vector.extract_strided_slice %22 {offsets = [0, 16], sizes = [8, 8], strides = [1, 1]} : vector<8x32xbf16> to vector<8x8xbf16>
    %32 = vector.extract_strided_slice %22 {offsets = [0, 24], sizes = [8, 8], strides = [1, 1]} : vector<8x32xbf16> to vector<8x8xbf16>
    %33 = vector.shape_cast %29 : vector<8x8xbf16> to vector<1x8x8xbf16>
    %34 = vector.shape_cast %30 : vector<8x8xbf16> to vector<1x8x8xbf16>
    %35 = vector.shape_cast %31 : vector<8x8xbf16> to vector<1x8x8xbf16>
    %36 = vector.shape_cast %32 : vector<8x8xbf16> to vector<1x8x8xbf16>
    %37 = tpu.concatenate %33, %34, %35, %36 in 0 : vector<1x8x8xbf16>, vector<1x8x8xbf16>, vector<1x8x8xbf16>, vector<1x8x8xbf16> -> vector<4x8x8xbf16>
    %38 = vector.extract_strided_slice %24 {offsets = [0, 0], sizes = [8, 8], strides = [1, 1]} : vector<8x32xbf16> to vector<8x8xbf16>
    %39 = vector.extract_strided_slice %24 {offsets = [0, 8], sizes = [8, 8], strides = [1, 1]} : vector<8x32xbf16> to vector<8x8xbf16>
    %40 = vector.extract_strided_slice %24 {offsets = [0, 16], sizes = [8, 8], strides = [1, 1]} : vector<8x32xbf16> to vector<8x8xbf16>
    %41 = vector.extract_strided_slice %24 {offsets = [0, 24], sizes = [8, 8], strides = [1, 1]} : vector<8x32xbf16> to vector<8x8xbf16>
    %42 = vector.shape_cast %38 : vector<8x8xbf16> to vector<1x8x8xbf16>
    %43 = vector.shape_cast %39 : vector<8x8xbf16> to vector<1x8x8xbf16>
    %44 = vector.shape_cast %40 : vector<8x8xbf16> to vector<1x8x8xbf16>
    %45 = vector.shape_cast %41 : vector<8x8xbf16> to vector<1x8x8xbf16>
    %46 = tpu.concatenate %42, %43, %44, %45 in 0 : vector<1x8x8xbf16>, vector<1x8x8xbf16>, vector<1x8x8xbf16>, vector<1x8x8xbf16> -> vector<4x8x8xbf16>
    %47 = vector.extract_strided_slice %26 {offsets = [0, 0], sizes = [8, 8], strides = [1, 1]} : vector<8x32xbf16> to vector<8x8xbf16>
    %48 = vector.extract_strided_slice %26 {offsets = [0, 8], sizes = [8, 8], strides = [1, 1]} : vector<8x32xbf16> to vector<8x8xbf16>
    %49 = vector.extract_strided_slice %26 {offsets = [0, 16], sizes = [8, 8], strides = [1, 1]} : vector<8x32xbf16> to vector<8x8xbf16>
    %50 = vector.extract_strided_slice %26 {offsets = [0, 24], sizes = [8, 8], strides = [1, 1]} : vector<8x32xbf16> to vector<8x8xbf16>
    %51 = vector.shape_cast %47 : vector<8x8xbf16> to vector<1x8x8xbf16>
    %52 = vector.shape_cast %48 : vector<8x8xbf16> to vector<1x8x8xbf16>
    %53 = vector.shape_cast %49 : vector<8x8xbf16> to vector<1x8x8xbf16>
    %54 = vector.shape_cast %50 : vector<8x8xbf16> to vector<1x8x8xbf16>
    %55 = tpu.concatenate %51, %52, %53, %54 in 0 : vector<1x8x8xbf16>, vector<1x8x8xbf16>, vector<1x8x8xbf16>, vector<1x8x8xbf16> -> vector<4x8x8xbf16>
    %cst_14 = arith.constant 0xFF800000 : f32
    %56 = vector.broadcast %cst_14 : f32 to vector<4x8x1xf32>
    %cst_15 = arith.constant 0.000000e+00 : f32
    %57 = vector.broadcast %cst_15 : f32 to vector<4x8x1xf32>
    %cst_16 = arith.constant 0.000000e+00 : f32
    %58 = vector.broadcast %cst_16 : f32 to vector<4x8x8xf32>
    "tpu.trace_start"() <{level = 10 : i32, message = "hqd,hkd->hqk"}> : () -> ()
    %cst_17 = arith.constant dense<0.000000e+00> : vector<4x8x8xf32>
    %59 = tpu.matmul %37, %46, %cst_17 {dimension_numbers = #tpu.dot_dimension_numbers<[2], [2], [1], [1], [0, 0, 0, 1, 1, 1], [0], [0]>} : vector<4x8x8xbf16>, vector<4x8x8xbf16>, vector<4x8x8xf32> -> vector<4x8x8xf32>
    "tpu.trace_stop"() : () -> ()
    %60 = vector.shape_cast %20 : vector<8x8xf32> to vector<1x8x8xf32>
    %61 = vector.broadcast %60 : vector<1x8x8xf32> to vector<4x8x8xf32>
    %62 = arith.addf %59, %61 : vector<4x8x8xf32>
    %cst_18 = arith.constant dense<0xFF800000> : vector<4x8xf32>
    %63 = vector.multi_reduction <maximumf>, %62, %cst_18 [2] : vector<4x8x8xf32> to vector<4x8xf32>
    %64 = vector.shape_cast %63 : vector<4x8xf32> to vector<4x8x1xf32>
    %65 = arith.maximumf %56, %64 : vector<4x8x1xf32>
    %66 = arith.subf %56, %65 : vector<4x8x1xf32>
    %67 = math.exp %66 : vector<4x8x1xf32>
    %68 = vector.broadcast %65 : vector<4x8x1xf32> to vector<4x8x8xf32>
    %69 = arith.subf %62, %68 : vector<4x8x8xf32>
    %70 = math.exp %69 : vector<4x8x8xf32>
    %71 = arith.mulf %67, %57 : vector<4x8x1xf32>
    %cst_19 = arith.constant dense<0.000000e+00> : vector<4x8xf32>
    %72 = vector.multi_reduction <add>, %70, %cst_19 [2] : vector<4x8x8xf32> to vector<4x8xf32>
    %73 = vector.shape_cast %72 : vector<4x8xf32> to vector<4x8x1xf32>
    %74 = arith.addf %71, %73 : vector<4x8x1xf32>
    %75 = vector.broadcast %67 : vector<4x8x1xf32> to vector<4x8x8xf32>
    %76 = arith.mulf %75, %58 : vector<4x8x8xf32>
    %77 = arith.truncf %70 : vector<4x8x8xf32> to vector<4x8x8xbf16>
    "tpu.trace_start"() <{level = 10 : i32, message = "hqk,hkd->hqd"}> : () -> ()
    %cst_20 = arith.constant dense<0.000000e+00> : vector<4x8x8xf32>
    %78 = tpu.matmul %77, %55, %cst_20 {dimension_numbers = #tpu.dot_dimension_numbers<[2], [1], [1], [2], [0, 0, 0, 1, 1, 2], [0], [0]>} : vector<4x8x8xbf16>, vector<4x8x8xbf16>, vector<4x8x8xf32> -> vector<4x8x8xf32>
    "tpu.trace_stop"() : () -> ()
    %79 = arith.addf %76, %78 : vector<4x8x8xf32>
    %80 = tpu.reciprocal %74 {approx = true} : vector<4x8x1xf32> -> vector<4x8x1xf32>
    %81 = vector.broadcast %80 : vector<4x8x1xf32> to vector<4x8x8xf32>
    %82 = arith.mulf %79, %81 : vector<4x8x8xf32>
    %83 = vector.extract_strided_slice %82 {offsets = [0, 0, 0], sizes = [1, 8, 8], strides = [1, 1, 1]} : vector<4x8x8xf32> to vector<1x8x8xf32>
    %84 = vector.shape_cast %83 : vector<1x8x8xf32> to vector<8x8xf32>
    %85 = vector.extract_strided_slice %82 {offsets = [1, 0, 0], sizes = [1, 8, 8], strides = [1, 1, 1]} : vector<4x8x8xf32> to vector<1x8x8xf32>
    %86 = vector.shape_cast %85 : vector<1x8x8xf32> to vector<8x8xf32>
    %87 = vector.extract_strided_slice %82 {offsets = [2, 0, 0], sizes = [1, 8, 8], strides = [1, 1, 1]} : vector<4x8x8xf32> to vector<1x8x8xf32>
    %88 = vector.shape_cast %87 : vector<1x8x8xf32> to vector<8x8xf32>
    %89 = vector.extract_strided_slice %82 {offsets = [3, 0, 0], sizes = [1, 8, 8], strides = [1, 1, 1]} : vector<4x8x8xf32> to vector<1x8x8xf32>
    %90 = vector.shape_cast %89 : vector<1x8x8xf32> to vector<8x8xf32>
    %91 = tpu.concatenate %84, %86, %88, %90 in 1 : vector<8x8xf32>, vector<8x8xf32>, vector<8x8xf32>, vector<8x8xf32> -> vector<8x32xf32>
    %92 = arith.truncf %91 : vector<8x32xf32> to vector<8x32xbf16>
    %cst_21 = arith.constant dense<0.000000e+00> : vector<8x32xf32>
    %93 = tpu.matmul %92, %28, %cst_21 {dimension_numbers = #tpu.dot_dimension_numbers<[1], [0], [0], [1], [0, 0, 1, 1], [], []>} : vector<8x32xbf16>, vector<32x32xbf16>, vector<8x32xf32> -> vector<8x32xf32>
    %c1 = arith.constant 1 : index
    %c0_22 = arith.constant 0 : index
    %c0_23 = arith.constant 0 : index
    %94 = vector.load %arg4[%c1, %c0_22, %c0_23] : memref<2x1x8xf32, #tpu.memory_space<vmem>>, vector<1x1x8xf32>
    %95 = vector.shape_cast %94 : vector<1x1x8xf32> to vector<1x8xf32>
    %96 = vector.broadcast %95 : vector<1x8xf32> to vector<8x8xf32>
    %97 = arith.addf %11, %96 : vector<8x8xf32>
    %98 = vector.extract_strided_slice %16 {offsets = [1, 0, 0], sizes = [1, 8, 32], strides = [1, 1, 1]} : vector<2x8x96xbf16> to vector<1x8x32xbf16>
    %99 = vector.shape_cast %98 : vector<1x8x32xbf16> to vector<8x32xbf16>
    %100 = vector.extract_strided_slice %16 {offsets = [1, 0, 32], sizes = [1, 8, 32], strides = [1, 1, 1]} : vector<2x8x96xbf16> to vector<1x8x32xbf16>
    %101 = vector.shape_cast %100 : vector<1x8x32xbf16> to vector<8x32xbf16>
    %102 = vector.extract_strided_slice %16 {offsets = [1, 0, 64], sizes = [1, 8, 32], strides = [1, 1, 1]} : vector<2x8x96xbf16> to vector<1x8x32xbf16>
    %103 = vector.shape_cast %102 : vector<1x8x32xbf16> to vector<8x32xbf16>
    %c0_24 = arith.constant 0 : index
    %c0_25 = arith.constant 0 : index
    %c0_26 = arith.constant 0 : index
    %104 = vector.load %arg10[%c0_24, %c0_25, %c0_26] : memref<1x32x32xbf16, #tpu.memory_space<vmem>>, vector<1x32x32xbf16>
    %105 = vector.shape_cast %104 : vector<1x32x32xbf16> to vector<32x32xbf16>
    %106 = vector.extract_strided_slice %99 {offsets = [0, 0], sizes = [8, 8], strides = [1, 1]} : vector<8x32xbf16> to vector<8x8xbf16>
    %107 = vector.extract_strided_slice %99 {offsets = [0, 8], sizes = [8, 8], strides = [1, 1]} : vector<8x32xbf16> to vector<8x8xbf16>
    %108 = vector.extract_strided_slice %99 {offsets = [0, 16], sizes = [8, 8], strides = [1, 1]} : vector<8x32xbf16> to vector<8x8xbf16>
    %109 = vector.extract_strided_slice %99 {offsets = [0, 24], sizes = [8, 8], strides = [1, 1]} : vector<8x32xbf16> to vector<8x8xbf16>
    %110 = vector.shape_cast %106 : vector<8x8xbf16> to vector<1x8x8xbf16>
    %111 = vector.shape_cast %107 : vector<8x8xbf16> to vector<1x8x8xbf16>
    %112 = vector.shape_cast %108 : vector<8x8xbf16> to vector<1x8x8xbf16>
    %113 = vector.shape_cast %109 : vector<8x8xbf16> to vector<1x8x8xbf16>
    %114 = tpu.concatenate %110, %111, %112, %113 in 0 : vector<1x8x8xbf16>, vector<1x8x8xbf16>, vector<1x8x8xbf16>, vector<1x8x8xbf16> -> vector<4x8x8xbf16>
    %115 = vector.extract_strided_slice %101 {offsets = [0, 0], sizes = [8, 8], strides = [1, 1]} : vector<8x32xbf16> to vector<8x8xbf16>
    %116 = vector.extract_strided_slice %101 {offsets = [0, 8], sizes = [8, 8], strides = [1, 1]} : vector<8x32xbf16> to vector<8x8xbf16>
    %117 = vector.extract_strided_slice %101 {offsets = [0, 16], sizes = [8, 8], strides = [1, 1]} : vector<8x32xbf16> to vector<8x8xbf16>
    %118 = vector.extract_strided_slice %101 {offsets = [0, 24], sizes = [8, 8], strides = [1, 1]} : vector<8x32xbf16> to vector<8x8xbf16>
    %119 = vector.shape_cast %115 : vector<8x8xbf16> to vector<1x8x8xbf16>
    %120 = vector.shape_cast %116 : vector<8x8xbf16> to vector<1x8x8xbf16>
    %121 = vector.shape_cast %117 : vector<8x8xbf16> to vector<1x8x8xbf16>
    %122 = vector.shape_cast %118 : vector<8x8xbf16> to vector<1x8x8xbf16>
    %123 = tpu.concatenate %119, %120, %121, %122 in 0 : vector<1x8x8xbf16>, vector<1x8x8xbf16>, vector<1x8x8xbf16>, vector<1x8x8xbf16> -> vector<4x8x8xbf16>
    %124 = vector.extract_strided_slice %103 {offsets = [0, 0], sizes = [8, 8], strides = [1, 1]} : vector<8x32xbf16> to vector<8x8xbf16>
    %125 = vector.extract_strided_slice %103 {offsets = [0, 8], sizes = [8, 8], strides = [1, 1]} : vector<8x32xbf16> to vector<8x8xbf16>
    %126 = vector.extract_strided_slice %103 {offsets = [0, 16], sizes = [8, 8], strides = [1, 1]} : vector<8x32xbf16> to vector<8x8xbf16>
    %127 = vector.extract_strided_slice %103 {offsets = [0, 24], sizes = [8, 8], strides = [1, 1]} : vector<8x32xbf16> to vector<8x8xbf16>
    %128 = vector.shape_cast %124 : vector<8x8xbf16> to vector<1x8x8xbf16>
    %129 = vector.shape_cast %125 : vector<8x8xbf16> to vector<1x8x8xbf16>
    %130 = vector.shape_cast %126 : vector<8x8xbf16> to vector<1x8x8xbf16>
    %131 = vector.shape_cast %127 : vector<8x8xbf16> to vector<1x8x8xbf16>
    %132 = tpu.concatenate %128, %129, %130, %131 in 0 : vector<1x8x8xbf16>, vector<1x8x8xbf16>, vector<1x8x8xbf16>, vector<1x8x8xbf16> -> vector<4x8x8xbf16>
    %cst_27 = arith.constant 0xFF800000 : f32
    %133 = vector.broadcast %cst_27 : f32 to vector<4x8x1xf32>
    %cst_28 = arith.constant 0.000000e+00 : f32
    %134 = vector.broadcast %cst_28 : f32 to vector<4x8x1xf32>
    %cst_29 = arith.constant 0.000000e+00 : f32
    %135 = vector.broadcast %cst_29 : f32 to vector<4x8x8xf32>
    "tpu.trace_start"() <{level = 10 : i32, message = "hqd,hkd->hqk"}> : () -> ()
    %cst_30 = arith.constant dense<0.000000e+00> : vector<4x8x8xf32>
    %136 = tpu.matmul %114, %123, %cst_30 {dimension_numbers = #tpu.dot_dimension_numbers<[2], [2], [1], [1], [0, 0, 0, 1, 1, 1], [0], [0]>} : vector<4x8x8xbf16>, vector<4x8x8xbf16>, vector<4x8x8xf32> -> vector<4x8x8xf32>
    "tpu.trace_stop"() : () -> ()
    %137 = vector.shape_cast %97 : vector<8x8xf32> to vector<1x8x8xf32>
    %138 = vector.broadcast %137 : vector<1x8x8xf32> to vector<4x8x8xf32>
    %139 = arith.addf %136, %138 : vector<4x8x8xf32>
    %cst_31 = arith.constant dense<0xFF800000> : vector<4x8xf32>
    %140 = vector.multi_reduction <maximumf>, %139, %cst_31 [2] : vector<4x8x8xf32> to vector<4x8xf32>
    %141 = vector.shape_cast %140 : vector<4x8xf32> to vector<4x8x1xf32>
    %142 = arith.maximumf %133, %141 : vector<4x8x1xf32>
    %143 = arith.subf %133, %142 : vector<4x8x1xf32>
    %144 = math.exp %143 : vector<4x8x1xf32>
    %145 = vector.broadcast %142 : vector<4x8x1xf32> to vector<4x8x8xf32>
    %146 = arith.subf %139, %145 : vector<4x8x8xf32>
    %147 = math.exp %146 : vector<4x8x8xf32>
    %148 = arith.mulf %144, %134 : vector<4x8x1xf32>
    %cst_32 = arith.constant dense<0.000000e+00> : vector<4x8xf32>
    %149 = vector.multi_reduction <add>, %147, %cst_32 [2] : vector<4x8x8xf32> to vector<4x8xf32>
    %150 = vector.shape_cast %149 : vector<4x8xf32> to vector<4x8x1xf32>
    %151 = arith.addf %148, %150 : vector<4x8x1xf32>
    %152 = vector.broadcast %144 : vector<4x8x1xf32> to vector<4x8x8xf32>
    %153 = arith.mulf %152, %135 : vector<4x8x8xf32>
    %154 = arith.truncf %147 : vector<4x8x8xf32> to vector<4x8x8xbf16>
    "tpu.trace_start"() <{level = 10 : i32, message = "hqk,hkd->hqd"}> : () -> ()
    %cst_33 = arith.constant dense<0.000000e+00> : vector<4x8x8xf32>
    %155 = tpu.matmul %154, %132, %cst_33 {dimension_numbers = #tpu.dot_dimension_numbers<[2], [1], [1], [2], [0, 0, 0, 1, 1, 2], [0], [0]>} : vector<4x8x8xbf16>, vector<4x8x8xbf16>, vector<4x8x8xf32> -> vector<4x8x8xf32>
    "tpu.trace_stop"() : () -> ()
    %156 = arith.addf %153, %155 : vector<4x8x8xf32>
    %157 = tpu.reciprocal %151 {approx = true} : vector<4x8x1xf32> -> vector<4x8x1xf32>
    %158 = vector.broadcast %157 : vector<4x8x1xf32> to vector<4x8x8xf32>
    %159 = arith.mulf %156, %158 : vector<4x8x8xf32>
    %160 = vector.extract_strided_slice %159 {offsets = [0, 0, 0], sizes = [1, 8, 8], strides = [1, 1, 1]} : vector<4x8x8xf32> to vector<1x8x8xf32>
    %161 = vector.shape_cast %160 : vector<1x8x8xf32> to vector<8x8xf32>
    %162 = vector.extract_strided_slice %159 {offsets = [1, 0, 0], sizes = [1, 8, 8], strides = [1, 1, 1]} : vector<4x8x8xf32> to vector<1x8x8xf32>
    %163 = vector.shape_cast %162 : vector<1x8x8xf32> to vector<8x8xf32>
    %164 = vector.extract_strided_slice %159 {offsets = [2, 0, 0], sizes = [1, 8, 8], strides = [1, 1, 1]} : vector<4x8x8xf32> to vector<1x8x8xf32>
    %165 = vector.shape_cast %164 : vector<1x8x8xf32> to vector<8x8xf32>
    %166 = vector.extract_strided_slice %159 {offsets = [3, 0, 0], sizes = [1, 8, 8], strides = [1, 1, 1]} : vector<4x8x8xf32> to vector<1x8x8xf32>
    %167 = vector.shape_cast %166 : vector<1x8x8xf32> to vector<8x8xf32>
    %168 = tpu.concatenate %161, %163, %165, %167 in 1 : vector<8x8xf32>, vector<8x8xf32>, vector<8x8xf32>, vector<8x8xf32> -> vector<8x32xf32>
    %169 = arith.truncf %168 : vector<8x32xf32> to vector<8x32xbf16>
    %cst_34 = arith.constant dense<0.000000e+00> : vector<8x32xf32>
    %170 = tpu.matmul %169, %105, %cst_34 {dimension_numbers = #tpu.dot_dimension_numbers<[1], [0], [0], [1], [0, 0, 1, 1], [], []>} : vector<8x32xbf16>, vector<32x32xbf16>, vector<8x32xf32> -> vector<8x32xf32>
    %171 = tpu.concatenate %93, %170 in 0 : vector<8x32xf32>, vector<8x32xf32> -> vector<16x32xf32>
    %172 = arith.addf %171, %4 : vector<16x32xf32>
    %c0_35 = arith.constant 0 : index
    %c0_36 = arith.constant 0 : index
    %c0_37 = arith.constant 0 : index
    %173 = vector.load %arg11[%c0_35, %c0_36, %c0_37] : memref<1x1x32xf32, #tpu.memory_space<vmem>>, vector<1x1x32xf32>
    %174 = vector.shape_cast %173 : vector<1x1x32xf32> to vector<1x32xf32>
    %c0_38 = arith.constant 0 : index
    %c0_39 = arith.constant 0 : index
    %c0_40 = arith.constant 0 : index
    %175 = vector.load %arg12[%c0_38, %c0_39, %c0_40] : memref<1x1x32xf32, #tpu.memory_space<vmem>>, vector<1x1x32xf32>
    %176 = vector.shape_cast %175 : vector<1x1x32xf32> to vector<1x32xf32>
    %cst_41 = arith.constant dense<0.000000e+00> : vector<16xf32>
    %177 = vector.multi_reduction <add>, %172, %cst_41 [1] : vector<16x32xf32> to vector<16xf32>
    %178 = vector.shape_cast %177 : vector<16xf32> to vector<16x1xf32>
    %cst_42 = arith.constant 3.200000e+01 : f32
    %179 = vector.broadcast %cst_42 : f32 to vector<16x1xf32>
    %180 = arith.divf %178, %179 : vector<16x1xf32>
    %181 = vector.broadcast %180 : vector<16x1xf32> to vector<16x32xf32>
    %182 = arith.subf %172, %181 : vector<16x32xf32>
    %183 = arith.mulf %182, %182 : vector<16x32xf32>
    %cst_43 = arith.constant dense<0.000000e+00> : vector<16xf32>
    %184 = vector.multi_reduction <add>, %183, %cst_43 [1] : vector<16x32xf32> to vector<16xf32>
    %185 = vector.shape_cast %184 : vector<16xf32> to vector<16x1xf32>
    %cst_44 = arith.constant 3.200000e+01 : f32
    %186 = vector.broadcast %cst_44 : f32 to vector<16x1xf32>
    %187 = arith.divf %185, %186 : vector<16x1xf32>
    %188 = vector.broadcast %180 : vector<16x1xf32> to vector<16x32xf32>
    %189 = arith.subf %172, %188 : vector<16x32xf32>
    %cst_45 = arith.constant 9.99999997E-7 : f32
    %190 = vector.broadcast %cst_45 : f32 to vector<16x1xf32>
    %191 = arith.addf %187, %190 : vector<16x1xf32>
    %192 = math.rsqrt %191 : vector<16x1xf32>
    %193 = vector.broadcast %192 : vector<16x1xf32> to vector<16x32xf32>
    %194 = arith.mulf %189, %193 : vector<16x32xf32>
    %195 = vector.broadcast %174 : vector<1x32xf32> to vector<16x32xf32>
    %196 = arith.mulf %194, %195 : vector<16x32xf32>
    %197 = vector.broadcast %176 : vector<1x32xf32> to vector<16x32xf32>
    %198 = arith.addf %196, %197 : vector<16x32xf32>
    %199 = arith.truncf %198 : vector<16x32xf32> to vector<16x32xbf16>
    %c0_46 = arith.constant 0 : index
    %c0_47 = arith.constant 0 : index
    %c0_48 = arith.constant 0 : index
    %200 = vector.load %arg13[%c0_46, %c0_47, %c0_48] : memref<1x32x32xbf16, #tpu.memory_space<vmem>>, vector<1x32x32xbf16>
    %201 = vector.shape_cast %200 : vector<1x32x32xbf16> to vector<32x32xbf16>
    %cst_49 = arith.constant dense<0.000000e+00> : vector<16x32xf32>
    %202 = tpu.matmul %199, %201, %cst_49 {dimension_numbers = #tpu.dot_dimension_numbers<[1], [0], [0], [1], [0, 0, 1, 1], [], []>} : vector<16x32xbf16>, vector<32x32xbf16>, vector<16x32xf32> -> vector<16x32xf32>
    %203 = arith.truncf %202 : vector<16x32xf32> to vector<16x32xbf16>
    %204 = vector.shape_cast %203 : vector<16x32xbf16> to vector<2x8x32xbf16>
    %c0_50 = arith.constant 0 : index
    %c0_51 = arith.constant 0 : index
    %c0_52 = arith.constant 0 : index
    %205 = vector.load %arg3[%c0_50, %c0_51, %c0_52] : memref<2x8x32xbf16, #tpu.memory_space<vmem>>, vector<2x8x32xbf16>
    %206 = vector.shape_cast %205 : vector<2x8x32xbf16> to vector<16x32xbf16>
    %c0_53 = arith.constant 0 : index
    %c0_54 = arith.constant 0 : index
    %c0_55 = arith.constant 0 : index
    %207 = vector.load %arg14[%c0_53, %c0_54, %c0_55] : memref<1x32x64xbf16, #tpu.memory_space<vmem>>, vector<1x32x64xbf16>
    %208 = vector.shape_cast %207 : vector<1x32x64xbf16> to vector<32x64xbf16>
    %cst_56 = arith.constant dense<0.000000e+00> : vector<16x64xf32>
    %209 = tpu.matmul %206, %208, %cst_56 {dimension_numbers = #tpu.dot_dimension_numbers<[1], [0], [0], [1], [0, 0, 1, 1], [], []>} : vector<16x32xbf16>, vector<32x64xbf16>, vector<16x64xf32> -> vector<16x64xf32>
    %210 = arith.truncf %209 : vector<16x64xf32> to vector<16x64xbf16>
    %211 = vector.shape_cast %210 : vector<16x64xbf16> to vector<2x8x64xbf16>
    %212 = vector.extract_strided_slice %204 {offsets = [0, 0, 0], sizes = [1, 8, 32], strides = [1, 1, 1]} : vector<2x8x32xbf16> to vector<1x8x32xbf16>
    %213 = vector.shape_cast %212 : vector<1x8x32xbf16> to vector<8x32xbf16>
    %214 = vector.extract_strided_slice %211 {offsets = [0, 0, 0], sizes = [1, 8, 32], strides = [1, 1, 1]} : vector<2x8x64xbf16> to vector<1x8x32xbf16>
    %215 = vector.shape_cast %214 : vector<1x8x32xbf16> to vector<8x32xbf16>
    %216 = vector.extract_strided_slice %211 {offsets = [0, 0, 32], sizes = [1, 8, 32], strides = [1, 1, 1]} : vector<2x8x64xbf16> to vector<1x8x32xbf16>
    %217 = vector.shape_cast %216 : vector<1x8x32xbf16> to vector<8x32xbf16>
    %c0_57 = arith.constant 0 : index
    %c0_58 = arith.constant 0 : index
    %c0_59 = arith.constant 0 : index
    %218 = vector.load %arg15[%c0_57, %c0_58, %c0_59] : memref<1x32x32xbf16, #tpu.memory_space<vmem>>, vector<1x32x32xbf16>
    %219 = vector.shape_cast %218 : vector<1x32x32xbf16> to vector<32x32xbf16>
    %c0_60 = arith.constant 0 : index
    %c0_61 = arith.constant 0 : index
    %c0_62 = arith.constant 0 : index
    %220 = vector.load %arg5[%c0_60, %c0_61, %c0_62] : memref<2x1x8xf32, #tpu.memory_space<vmem>>, vector<1x1x8xf32>
    %221 = vector.shape_cast %220 : vector<1x1x8xf32> to vector<1x8xf32>
    %222 = vector.extract_strided_slice %213 {offsets = [0, 0], sizes = [8, 8], strides = [1, 1]} : vector<8x32xbf16> to vector<8x8xbf16>
    %223 = vector.extract_strided_slice %213 {offsets = [0, 8], sizes = [8, 8], strides = [1, 1]} : vector<8x32xbf16> to vector<8x8xbf16>
    %224 = vector.extract_strided_slice %213 {offsets = [0, 16], sizes = [8, 8], strides = [1, 1]} : vector<8x32xbf16> to vector<8x8xbf16>
    %225 = vector.extract_strided_slice %213 {offsets = [0, 24], sizes = [8, 8], strides = [1, 1]} : vector<8x32xbf16> to vector<8x8xbf16>
    %226 = vector.shape_cast %222 : vector<8x8xbf16> to vector<1x8x8xbf16>
    %227 = vector.shape_cast %223 : vector<8x8xbf16> to vector<1x8x8xbf16>
    %228 = vector.shape_cast %224 : vector<8x8xbf16> to vector<1x8x8xbf16>
    %229 = vector.shape_cast %225 : vector<8x8xbf16> to vector<1x8x8xbf16>
    %230 = tpu.concatenate %226, %227, %228, %229 in 0 : vector<1x8x8xbf16>, vector<1x8x8xbf16>, vector<1x8x8xbf16>, vector<1x8x8xbf16> -> vector<4x8x8xbf16>
    %231 = vector.extract_strided_slice %215 {offsets = [0, 0], sizes = [8, 8], strides = [1, 1]} : vector<8x32xbf16> to vector<8x8xbf16>
    %232 = vector.extract_strided_slice %215 {offsets = [0, 8], sizes = [8, 8], strides = [1, 1]} : vector<8x32xbf16> to vector<8x8xbf16>
    %233 = vector.extract_strided_slice %215 {offsets = [0, 16], sizes = [8, 8], strides = [1, 1]} : vector<8x32xbf16> to vector<8x8xbf16>
    %234 = vector.extract_strided_slice %215 {offsets = [0, 24], sizes = [8, 8], strides = [1, 1]} : vector<8x32xbf16> to vector<8x8xbf16>
    %235 = vector.shape_cast %231 : vector<8x8xbf16> to vector<1x8x8xbf16>
    %236 = vector.shape_cast %232 : vector<8x8xbf16> to vector<1x8x8xbf16>
    %237 = vector.shape_cast %233 : vector<8x8xbf16> to vector<1x8x8xbf16>
    %238 = vector.shape_cast %234 : vector<8x8xbf16> to vector<1x8x8xbf16>
    %239 = tpu.concatenate %235, %236, %237, %238 in 0 : vector<1x8x8xbf16>, vector<1x8x8xbf16>, vector<1x8x8xbf16>, vector<1x8x8xbf16> -> vector<4x8x8xbf16>
    %240 = vector.extract_strided_slice %217 {offsets = [0, 0], sizes = [8, 8], strides = [1, 1]} : vector<8x32xbf16> to vector<8x8xbf16>
    %241 = vector.extract_strided_slice %217 {offsets = [0, 8], sizes = [8, 8], strides = [1, 1]} : vector<8x32xbf16> to vector<8x8xbf16>
    %242 = vector.extract_strided_slice %217 {offsets = [0, 16], sizes = [8, 8], strides = [1, 1]} : vector<8x32xbf16> to vector<8x8xbf16>
    %243 = vector.extract_strided_slice %217 {offsets = [0, 24], sizes = [8, 8], strides = [1, 1]} : vector<8x32xbf16> to vector<8x8xbf16>
    %244 = vector.shape_cast %240 : vector<8x8xbf16> to vector<1x8x8xbf16>
    %245 = vector.shape_cast %241 : vector<8x8xbf16> to vector<1x8x8xbf16>
    %246 = vector.shape_cast %242 : vector<8x8xbf16> to vector<1x8x8xbf16>
    %247 = vector.shape_cast %243 : vector<8x8xbf16> to vector<1x8x8xbf16>
    %248 = tpu.concatenate %244, %245, %246, %247 in 0 : vector<1x8x8xbf16>, vector<1x8x8xbf16>, vector<1x8x8xbf16>, vector<1x8x8xbf16> -> vector<4x8x8xbf16>
    %cst_63 = arith.constant 0xFF800000 : f32
    %249 = vector.broadcast %cst_63 : f32 to vector<4x8x1xf32>
    %cst_64 = arith.constant 0.000000e+00 : f32
    %250 = vector.broadcast %cst_64 : f32 to vector<4x8x1xf32>
    %cst_65 = arith.constant 0.000000e+00 : f32
    %251 = vector.broadcast %cst_65 : f32 to vector<4x8x8xf32>
    "tpu.trace_start"() <{level = 10 : i32, message = "hqd,hkd->hqk"}> : () -> ()
    %cst_66 = arith.constant dense<0.000000e+00> : vector<4x8x8xf32>
    %252 = tpu.matmul %230, %239, %cst_66 {dimension_numbers = #tpu.dot_dimension_numbers<[2], [2], [1], [1], [0, 0, 0, 1, 1, 1], [0], [0]>} : vector<4x8x8xbf16>, vector<4x8x8xbf16>, vector<4x8x8xf32> -> vector<4x8x8xf32>
    "tpu.trace_stop"() : () -> ()
    %253 = vector.shape_cast %221 : vector<1x8xf32> to vector<1x1x8xf32>
    %254 = vector.broadcast %253 : vector<1x1x8xf32> to vector<4x8x8xf32>
    %255 = arith.addf %252, %254 : vector<4x8x8xf32>
    %cst_67 = arith.constant dense<0xFF800000> : vector<4x8xf32>
    %256 = vector.multi_reduction <maximumf>, %255, %cst_67 [2] : vector<4x8x8xf32> to vector<4x8xf32>
    %257 = vector.shape_cast %256 : vector<4x8xf32> to vector<4x8x1xf32>
    %258 = arith.maximumf %249, %257 : vector<4x8x1xf32>
    %259 = arith.subf %249, %258 : vector<4x8x1xf32>
    %260 = math.exp %259 : vector<4x8x1xf32>
    %261 = vector.broadcast %258 : vector<4x8x1xf32> to vector<4x8x8xf32>
    %262 = arith.subf %255, %261 : vector<4x8x8xf32>
    %263 = math.exp %262 : vector<4x8x8xf32>
    %264 = arith.mulf %260, %250 : vector<4x8x1xf32>
    %cst_68 = arith.constant dense<0.000000e+00> : vector<4x8xf32>
    %265 = vector.multi_reduction <add>, %263, %cst_68 [2] : vector<4x8x8xf32> to vector<4x8xf32>
    %266 = vector.shape_cast %265 : vector<4x8xf32> to vector<4x8x1xf32>
    %267 = arith.addf %264, %266 : vector<4x8x1xf32>
    %268 = vector.broadcast %260 : vector<4x8x1xf32> to vector<4x8x8xf32>
    %269 = arith.mulf %268, %251 : vector<4x8x8xf32>
    %270 = arith.truncf %263 : vector<4x8x8xf32> to vector<4x8x8xbf16>
    "tpu.trace_start"() <{level = 10 : i32, message = "hqk,hkd->hqd"}> : () -> ()
    %cst_69 = arith.constant dense<0.000000e+00> : vector<4x8x8xf32>
    %271 = tpu.matmul %270, %248, %cst_69 {dimension_numbers = #tpu.dot_dimension_numbers<[2], [1], [1], [2], [0, 0, 0, 1, 1, 2], [0], [0]>} : vector<4x8x8xbf16>, vector<4x8x8xbf16>, vector<4x8x8xf32> -> vector<4x8x8xf32>
    "tpu.trace_stop"() : () -> ()
    %272 = arith.addf %269, %271 : vector<4x8x8xf32>
    %273 = tpu.reciprocal %267 {approx = true} : vector<4x8x1xf32> -> vector<4x8x1xf32>
    %274 = vector.broadcast %273 : vector<4x8x1xf32> to vector<4x8x8xf32>
    %275 = arith.mulf %272, %274 : vector<4x8x8xf32>
    %276 = vector.extract_strided_slice %275 {offsets = [0, 0, 0], sizes = [1, 8, 8], strides = [1, 1, 1]} : vector<4x8x8xf32> to vector<1x8x8xf32>
    %277 = vector.shape_cast %276 : vector<1x8x8xf32> to vector<8x8xf32>
    %278 = vector.extract_strided_slice %275 {offsets = [1, 0, 0], sizes = [1, 8, 8], strides = [1, 1, 1]} : vector<4x8x8xf32> to vector<1x8x8xf32>
    %279 = vector.shape_cast %278 : vector<1x8x8xf32> to vector<8x8xf32>
    %280 = vector.extract_strided_slice %275 {offsets = [2, 0, 0], sizes = [1, 8, 8], strides = [1, 1, 1]} : vector<4x8x8xf32> to vector<1x8x8xf32>
    %281 = vector.shape_cast %280 : vector<1x8x8xf32> to vector<8x8xf32>
    %282 = vector.extract_strided_slice %275 {offsets = [3, 0, 0], sizes = [1, 8, 8], strides = [1, 1, 1]} : vector<4x8x8xf32> to vector<1x8x8xf32>
    %283 = vector.shape_cast %282 : vector<1x8x8xf32> to vector<8x8xf32>
    %284 = tpu.concatenate %277, %279, %281, %283 in 1 : vector<8x8xf32>, vector<8x8xf32>, vector<8x8xf32>, vector<8x8xf32> -> vector<8x32xf32>
    %285 = arith.truncf %284 : vector<8x32xf32> to vector<8x32xbf16>
    %cst_70 = arith.constant dense<0.000000e+00> : vector<8x32xf32>
    %286 = tpu.matmul %285, %219, %cst_70 {dimension_numbers = #tpu.dot_dimension_numbers<[1], [0], [0], [1], [0, 0, 1, 1], [], []>} : vector<8x32xbf16>, vector<32x32xbf16>, vector<8x32xf32> -> vector<8x32xf32>
    %287 = vector.extract_strided_slice %204 {offsets = [1, 0, 0], sizes = [1, 8, 32], strides = [1, 1, 1]} : vector<2x8x32xbf16> to vector<1x8x32xbf16>
    %288 = vector.shape_cast %287 : vector<1x8x32xbf16> to vector<8x32xbf16>
    %289 = vector.extract_strided_slice %211 {offsets = [1, 0, 0], sizes = [1, 8, 32], strides = [1, 1, 1]} : vector<2x8x64xbf16> to vector<1x8x32xbf16>
    %290 = vector.shape_cast %289 : vector<1x8x32xbf16> to vector<8x32xbf16>
    %291 = vector.extract_strided_slice %211 {offsets = [1, 0, 32], sizes = [1, 8, 32], strides = [1, 1, 1]} : vector<2x8x64xbf16> to vector<1x8x32xbf16>
    %292 = vector.shape_cast %291 : vector<1x8x32xbf16> to vector<8x32xbf16>
    %c0_71 = arith.constant 0 : index
    %c0_72 = arith.constant 0 : index
    %c0_73 = arith.constant 0 : index
    %293 = vector.load %arg15[%c0_71, %c0_72, %c0_73] : memref<1x32x32xbf16, #tpu.memory_space<vmem>>, vector<1x32x32xbf16>
    %294 = vector.shape_cast %293 : vector<1x32x32xbf16> to vector<32x32xbf16>
    %c1_74 = arith.constant 1 : index
    %c0_75 = arith.constant 0 : index
    %c0_76 = arith.constant 0 : index
    %295 = vector.load %arg5[%c1_74, %c0_75, %c0_76] : memref<2x1x8xf32, #tpu.memory_space<vmem>>, vector<1x1x8xf32>
    %296 = vector.shape_cast %295 : vector<1x1x8xf32> to vector<1x8xf32>
    %297 = vector.extract_strided_slice %288 {offsets = [0, 0], sizes = [8, 8], strides = [1, 1]} : vector<8x32xbf16> to vector<8x8xbf16>
    %298 = vector.extract_strided_slice %288 {offsets = [0, 8], sizes = [8, 8], strides = [1, 1]} : vector<8x32xbf16> to vector<8x8xbf16>
    %299 = vector.extract_strided_slice %288 {offsets = [0, 16], sizes = [8, 8], strides = [1, 1]} : vector<8x32xbf16> to vector<8x8xbf16>
    %300 = vector.extract_strided_slice %288 {offsets = [0, 24], sizes = [8, 8], strides = [1, 1]} : vector<8x32xbf16> to vector<8x8xbf16>
    %301 = vector.shape_cast %297 : vector<8x8xbf16> to vector<1x8x8xbf16>
    %302 = vector.shape_cast %298 : vector<8x8xbf16> to vector<1x8x8xbf16>
    %303 = vector.shape_cast %299 : vector<8x8xbf16> to vector<1x8x8xbf16>
    %304 = vector.shape_cast %300 : vector<8x8xbf16> to vector<1x8x8xbf16>
    %305 = tpu.concatenate %301, %302, %303, %304 in 0 : vector<1x8x8xbf16>, vector<1x8x8xbf16>, vector<1x8x8xbf16>, vector<1x8x8xbf16> -> vector<4x8x8xbf16>
    %306 = vector.extract_strided_slice %290 {offsets = [0, 0], sizes = [8, 8], strides = [1, 1]} : vector<8x32xbf16> to vector<8x8xbf16>
    %307 = vector.extract_strided_slice %290 {offsets = [0, 8], sizes = [8, 8], strides = [1, 1]} : vector<8x32xbf16> to vector<8x8xbf16>
    %308 = vector.extract_strided_slice %290 {offsets = [0, 16], sizes = [8, 8], strides = [1, 1]} : vector<8x32xbf16> to vector<8x8xbf16>
    %309 = vector.extract_strided_slice %290 {offsets = [0, 24], sizes = [8, 8], strides = [1, 1]} : vector<8x32xbf16> to vector<8x8xbf16>
    %310 = vector.shape_cast %306 : vector<8x8xbf16> to vector<1x8x8xbf16>
    %311 = vector.shape_cast %307 : vector<8x8xbf16> to vector<1x8x8xbf16>
    %312 = vector.shape_cast %308 : vector<8x8xbf16> to vector<1x8x8xbf16>
    %313 = vector.shape_cast %309 : vector<8x8xbf16> to vector<1x8x8xbf16>
    %314 = tpu.concatenate %310, %311, %312, %313 in 0 : vector<1x8x8xbf16>, vector<1x8x8xbf16>, vector<1x8x8xbf16>, vector<1x8x8xbf16> -> vector<4x8x8xbf16>
    %315 = vector.extract_strided_slice %292 {offsets = [0, 0], sizes = [8, 8], strides = [1, 1]} : vector<8x32xbf16> to vector<8x8xbf16>
    %316 = vector.extract_strided_slice %292 {offsets = [0, 8], sizes = [8, 8], strides = [1, 1]} : vector<8x32xbf16> to vector<8x8xbf16>
    %317 = vector.extract_strided_slice %292 {offsets = [0, 16], sizes = [8, 8], strides = [1, 1]} : vector<8x32xbf16> to vector<8x8xbf16>
    %318 = vector.extract_strided_slice %292 {offsets = [0, 24], sizes = [8, 8], strides = [1, 1]} : vector<8x32xbf16> to vector<8x8xbf16>
    %319 = vector.shape_cast %315 : vector<8x8xbf16> to vector<1x8x8xbf16>
    %320 = vector.shape_cast %316 : vector<8x8xbf16> to vector<1x8x8xbf16>
    %321 = vector.shape_cast %317 : vector<8x8xbf16> to vector<1x8x8xbf16>
    %322 = vector.shape_cast %318 : vector<8x8xbf16> to vector<1x8x8xbf16>
    %323 = tpu.concatenate %319, %320, %321, %322 in 0 : vector<1x8x8xbf16>, vector<1x8x8xbf16>, vector<1x8x8xbf16>, vector<1x8x8xbf16> -> vector<4x8x8xbf16>
    %cst_77 = arith.constant 0xFF800000 : f32
    %324 = vector.broadcast %cst_77 : f32 to vector<4x8x1xf32>
    %cst_78 = arith.constant 0.000000e+00 : f32
    %325 = vector.broadcast %cst_78 : f32 to vector<4x8x1xf32>
    %cst_79 = arith.constant 0.000000e+00 : f32
    %326 = vector.broadcast %cst_79 : f32 to vector<4x8x8xf32>
    "tpu.trace_start"() <{level = 10 : i32, message = "hqd,hkd->hqk"}> : () -> ()
    %cst_80 = arith.constant dense<0.000000e+00> : vector<4x8x8xf32>
    %327 = tpu.matmul %305, %314, %cst_80 {dimension_numbers = #tpu.dot_dimension_numbers<[2], [2], [1], [1], [0, 0, 0, 1, 1, 1], [0], [0]>} : vector<4x8x8xbf16>, vector<4x8x8xbf16>, vector<4x8x8xf32> -> vector<4x8x8xf32>
    "tpu.trace_stop"() : () -> ()
    %328 = vector.shape_cast %296 : vector<1x8xf32> to vector<1x1x8xf32>
    %329 = vector.broadcast %328 : vector<1x1x8xf32> to vector<4x8x8xf32>
    %330 = arith.addf %327, %329 : vector<4x8x8xf32>
    %cst_81 = arith.constant dense<0xFF800000> : vector<4x8xf32>
    %331 = vector.multi_reduction <maximumf>, %330, %cst_81 [2] : vector<4x8x8xf32> to vector<4x8xf32>
    %332 = vector.shape_cast %331 : vector<4x8xf32> to vector<4x8x1xf32>
    %333 = arith.maximumf %324, %332 : vector<4x8x1xf32>
    %334 = arith.subf %324, %333 : vector<4x8x1xf32>
    %335 = math.exp %334 : vector<4x8x1xf32>
    %336 = vector.broadcast %333 : vector<4x8x1xf32> to vector<4x8x8xf32>
    %337 = arith.subf %330, %336 : vector<4x8x8xf32>
    %338 = math.exp %337 : vector<4x8x8xf32>
    %339 = arith.mulf %335, %325 : vector<4x8x1xf32>
    %cst_82 = arith.constant dense<0.000000e+00> : vector<4x8xf32>
    %340 = vector.multi_reduction <add>, %338, %cst_82 [2] : vector<4x8x8xf32> to vector<4x8xf32>
    %341 = vector.shape_cast %340 : vector<4x8xf32> to vector<4x8x1xf32>
    %342 = arith.addf %339, %341 : vector<4x8x1xf32>
    %343 = vector.broadcast %335 : vector<4x8x1xf32> to vector<4x8x8xf32>
    %344 = arith.mulf %343, %326 : vector<4x8x8xf32>
    %345 = arith.truncf %338 : vector<4x8x8xf32> to vector<4x8x8xbf16>
    "tpu.trace_start"() <{level = 10 : i32, message = "hqk,hkd->hqd"}> : () -> ()
    %cst_83 = arith.constant dense<0.000000e+00> : vector<4x8x8xf32>
    %346 = tpu.matmul %345, %323, %cst_83 {dimension_numbers = #tpu.dot_dimension_numbers<[2], [1], [1], [2], [0, 0, 0, 1, 1, 2], [0], [0]>} : vector<4x8x8xbf16>, vector<4x8x8xbf16>, vector<4x8x8xf32> -> vector<4x8x8xf32>
    "tpu.trace_stop"() : () -> ()
    %347 = arith.addf %344, %346 : vector<4x8x8xf32>
    %348 = tpu.reciprocal %342 {approx = true} : vector<4x8x1xf32> -> vector<4x8x1xf32>
    %349 = vector.broadcast %348 : vector<4x8x1xf32> to vector<4x8x8xf32>
    %350 = arith.mulf %347, %349 : vector<4x8x8xf32>
    %351 = vector.extract_strided_slice %350 {offsets = [0, 0, 0], sizes = [1, 8, 8], strides = [1, 1, 1]} : vector<4x8x8xf32> to vector<1x8x8xf32>
    %352 = vector.shape_cast %351 : vector<1x8x8xf32> to vector<8x8xf32>
    %353 = vector.extract_strided_slice %350 {offsets = [1, 0, 0], sizes = [1, 8, 8], strides = [1, 1, 1]} : vector<4x8x8xf32> to vector<1x8x8xf32>
    %354 = vector.shape_cast %353 : vector<1x8x8xf32> to vector<8x8xf32>
    %355 = vector.extract_strided_slice %350 {offsets = [2, 0, 0], sizes = [1, 8, 8], strides = [1, 1, 1]} : vector<4x8x8xf32> to vector<1x8x8xf32>
    %356 = vector.shape_cast %355 : vector<1x8x8xf32> to vector<8x8xf32>
    %357 = vector.extract_strided_slice %350 {offsets = [3, 0, 0], sizes = [1, 8, 8], strides = [1, 1, 1]} : vector<4x8x8xf32> to vector<1x8x8xf32>
    %358 = vector.shape_cast %357 : vector<1x8x8xf32> to vector<8x8xf32>
    %359 = tpu.concatenate %352, %354, %356, %358 in 1 : vector<8x8xf32>, vector<8x8xf32>, vector<8x8xf32>, vector<8x8xf32> -> vector<8x32xf32>
    %360 = arith.truncf %359 : vector<8x32xf32> to vector<8x32xbf16>
    %cst_84 = arith.constant dense<0.000000e+00> : vector<8x32xf32>
    %361 = tpu.matmul %360, %294, %cst_84 {dimension_numbers = #tpu.dot_dimension_numbers<[1], [0], [0], [1], [0, 0, 1, 1], [], []>} : vector<8x32xbf16>, vector<32x32xbf16>, vector<8x32xf32> -> vector<8x32xf32>
    %362 = tpu.concatenate %286, %361 in 0 : vector<8x32xf32>, vector<8x32xf32> -> vector<16x32xf32>
    %363 = arith.addf %362, %198 : vector<16x32xf32>
    %c0_85 = arith.constant 0 : index
    %c0_86 = arith.constant 0 : index
    %c0_87 = arith.constant 0 : index
    %364 = vector.load %arg16[%c0_85, %c0_86, %c0_87] : memref<1x1x32xf32, #tpu.memory_space<vmem>>, vector<1x1x32xf32>
    %365 = vector.shape_cast %364 : vector<1x1x32xf32> to vector<1x32xf32>
    %c0_88 = arith.constant 0 : index
    %c0_89 = arith.constant 0 : index
    %c0_90 = arith.constant 0 : index
    %366 = vector.load %arg17[%c0_88, %c0_89, %c0_90] : memref<1x1x32xf32, #tpu.memory_space<vmem>>, vector<1x1x32xf32>
    %367 = vector.shape_cast %366 : vector<1x1x32xf32> to vector<1x32xf32>
    %cst_91 = arith.constant dense<0.000000e+00> : vector<16xf32>
    %368 = vector.multi_reduction <add>, %363, %cst_91 [1] : vector<16x32xf32> to vector<16xf32>
    %369 = vector.shape_cast %368 : vector<16xf32> to vector<16x1xf32>
    %cst_92 = arith.constant 3.200000e+01 : f32
    %370 = vector.broadcast %cst_92 : f32 to vector<16x1xf32>
    %371 = arith.divf %369, %370 : vector<16x1xf32>
    %372 = vector.broadcast %371 : vector<16x1xf32> to vector<16x32xf32>
    %373 = arith.subf %363, %372 : vector<16x32xf32>
    %374 = arith.mulf %373, %373 : vector<16x32xf32>
    %cst_93 = arith.constant dense<0.000000e+00> : vector<16xf32>
    %375 = vector.multi_reduction <add>, %374, %cst_93 [1] : vector<16x32xf32> to vector<16xf32>
    %376 = vector.shape_cast %375 : vector<16xf32> to vector<16x1xf32>
    %cst_94 = arith.constant 3.200000e+01 : f32
    %377 = vector.broadcast %cst_94 : f32 to vector<16x1xf32>
    %378 = arith.divf %376, %377 : vector<16x1xf32>
    %379 = vector.broadcast %371 : vector<16x1xf32> to vector<16x32xf32>
    %380 = arith.subf %363, %379 : vector<16x32xf32>
    %cst_95 = arith.constant 9.99999997E-7 : f32
    %381 = vector.broadcast %cst_95 : f32 to vector<16x1xf32>
    %382 = arith.addf %378, %381 : vector<16x1xf32>
    %383 = math.rsqrt %382 : vector<16x1xf32>
    %384 = vector.broadcast %383 : vector<16x1xf32> to vector<16x32xf32>
    %385 = arith.mulf %380, %384 : vector<16x32xf32>
    %386 = vector.broadcast %365 : vector<1x32xf32> to vector<16x32xf32>
    %387 = arith.mulf %385, %386 : vector<16x32xf32>
    %388 = vector.broadcast %367 : vector<1x32xf32> to vector<16x32xf32>
    %389 = arith.addf %387, %388 : vector<16x32xf32>
    %390 = arith.truncf %389 : vector<16x32xf32> to vector<16x32xbf16>
    %cst_96 = arith.constant 0.000000e+00 : f32
    %391 = vector.broadcast %cst_96 : f32 to vector<16x32xf32>
    %c0_97 = arith.constant 0 : index
    %c0_98 = arith.constant 0 : index
    %c0_99 = arith.constant 0 : index
    %392 = vector.load %arg18[%c0_97, %c0_98, %c0_99] : memref<1x32x64xbf16, #tpu.memory_space<vmem>>, vector<1x32x64xbf16>
    %393 = vector.shape_cast %392 : vector<1x32x64xbf16> to vector<32x64xbf16>
    %cst_100 = arith.constant dense<0.000000e+00> : vector<16x64xf32>
    %394 = tpu.matmul %390, %393, %cst_100 {dimension_numbers = #tpu.dot_dimension_numbers<[1], [0], [0], [1], [0, 0, 1, 1], [], []>} : vector<16x32xbf16>, vector<32x64xbf16>, vector<16x64xf32> -> vector<16x64xf32>
    %c0_101 = arith.constant 0 : index
    %c0_102 = arith.constant 0 : index
    %c0_103 = arith.constant 0 : index
    %395 = vector.load %arg19[%c0_101, %c0_102, %c0_103] : memref<1x1x64xf32, #tpu.memory_space<vmem>>, vector<1x1x64xf32>
    %396 = vector.shape_cast %395 : vector<1x1x64xf32> to vector<1x64xf32>
    %397 = vector.broadcast %396 : vector<1x64xf32> to vector<16x64xf32>
    %398 = arith.addf %394, %397 : vector<16x64xf32>
    %cst_104 = arith.constant 0.000000e+00 : f32
    %399 = vector.broadcast %cst_104 : f32 to vector<16x64xf32>
    %400 = arith.maximumf %398, %399 : vector<16x64xf32>
    %401 = arith.truncf %400 : vector<16x64xf32> to vector<16x64xbf16>
    %c0_105 = arith.constant 0 : index
    %c0_106 = arith.constant 0 : index
    %c0_107 = arith.constant 0 : index
    %402 = vector.load %arg20[%c0_105, %c0_106, %c0_107] : memref<1x64x32xbf16, #tpu.memory_space<vmem>>, vector<1x64x32xbf16>
    %403 = vector.shape_cast %402 : vector<1x64x32xbf16> to vector<64x32xbf16>
    %cst_108 = arith.constant dense<0.000000e+00> : vector<16x32xf32>
    %404 = tpu.matmul %401, %403, %cst_108 {dimension_numbers = #tpu.dot_dimension_numbers<[1], [0], [0], [1], [0, 0, 1, 1], [], []>} : vector<16x64xbf16>, vector<64x32xbf16>, vector<16x32xf32> -> vector<16x32xf32>
    %405 = arith.addf %391, %404 : vector<16x32xf32>
    %c0_109 = arith.constant 0 : index
    %c0_110 = arith.constant 0 : index
    %c0_111 = arith.constant 0 : index
    %406 = vector.load %arg21[%c0_109, %c0_110, %c0_111] : memref<1x1x32xf32, #tpu.memory_space<vmem>>, vector<1x1x32xf32>
    %407 = vector.shape_cast %406 : vector<1x1x32xf32> to vector<1x32xf32>
    %408 = vector.broadcast %407 : vector<1x32xf32> to vector<16x32xf32>
    %409 = arith.addf %405, %408 : vector<16x32xf32>
    %410 = arith.addf %409, %389 : vector<16x32xf32>
    %c0_112 = arith.constant 0 : index
    %c0_113 = arith.constant 0 : index
    %c0_114 = arith.constant 0 : index
    %411 = vector.load %arg22[%c0_112, %c0_113, %c0_114] : memref<1x1x32xf32, #tpu.memory_space<vmem>>, vector<1x1x32xf32>
    %412 = vector.shape_cast %411 : vector<1x1x32xf32> to vector<1x32xf32>
    %c0_115 = arith.constant 0 : index
    %c0_116 = arith.constant 0 : index
    %c0_117 = arith.constant 0 : index
    %413 = vector.load %arg23[%c0_115, %c0_116, %c0_117] : memref<1x1x32xf32, #tpu.memory_space<vmem>>, vector<1x1x32xf32>
    %414 = vector.shape_cast %413 : vector<1x1x32xf32> to vector<1x32xf32>
    %cst_118 = arith.constant dense<0.000000e+00> : vector<16xf32>
    %415 = vector.multi_reduction <add>, %410, %cst_118 [1] : vector<16x32xf32> to vector<16xf32>
    %416 = vector.shape_cast %415 : vector<16xf32> to vector<16x1xf32>
    %cst_119 = arith.constant 3.200000e+01 : f32
    %417 = vector.broadcast %cst_119 : f32 to vector<16x1xf32>
    %418 = arith.divf %416, %417 : vector<16x1xf32>
    %419 = vector.broadcast %418 : vector<16x1xf32> to vector<16x32xf32>
    %420 = arith.subf %410, %419 : vector<16x32xf32>
    %421 = arith.mulf %420, %420 : vector<16x32xf32>
    %cst_120 = arith.constant dense<0.000000e+00> : vector<16xf32>
    %422 = vector.multi_reduction <add>, %421, %cst_120 [1] : vector<16x32xf32> to vector<16xf32>
    %423 = vector.shape_cast %422 : vector<16xf32> to vector<16x1xf32>
    %cst_121 = arith.constant 3.200000e+01 : f32
    %424 = vector.broadcast %cst_121 : f32 to vector<16x1xf32>
    %425 = arith.divf %423, %424 : vector<16x1xf32>
    %426 = vector.broadcast %418 : vector<16x1xf32> to vector<16x32xf32>
    %427 = arith.subf %410, %426 : vector<16x32xf32>
    %cst_122 = arith.constant 9.99999997E-7 : f32
    %428 = vector.broadcast %cst_122 : f32 to vector<16x1xf32>
    %429 = arith.addf %425, %428 : vector<16x1xf32>
    %430 = math.rsqrt %429 : vector<16x1xf32>
    %431 = vector.broadcast %430 : vector<16x1xf32> to vector<16x32xf32>
    %432 = arith.mulf %427, %431 : vector<16x32xf32>
    %433 = vector.broadcast %412 : vector<1x32xf32> to vector<16x32xf32>
    %434 = arith.mulf %432, %433 : vector<16x32xf32>
    %435 = vector.broadcast %414 : vector<1x32xf32> to vector<16x32xf32>
    %436 = arith.addf %434, %435 : vector<16x32xf32>
    %437 = vector.shape_cast %436 : vector<16x32xf32> to vector<2x8x32xf32>
    %c0_123 = arith.constant 0 : index
    %c0_124 = arith.constant 0 : index
    %c0_125 = arith.constant 0 : index
    %438 = vector.load %arg24[%c0_123, %c0_124, %c0_125] : memref<2x8x32xf32, #tpu.memory_space<vmem>>, vector<2x8x32xf32>
    tpu.vector_store %arg24[%c0_123, %c0_124, %c0_125], %437 {strides = array<i32>} : memref<2x8x32xf32, #tpu.memory_space<vmem>>, vector<2x8x32xf32>,
    return
  }
  func.func @transform_0(%arg0: i32, %arg1: i32) -> (i32, i32, i32) {
    %c0_i32 = arith.constant 0 : i32
    %c0_i32_0 = arith.constant 0 : i32
    %c0_i32_1 = arith.constant 0 : i32
    return %arg0, %c0_i32, %c0_i32_0 : i32, i32, i32
  }
  func.func @transform_1(%arg0: i32, %arg1: i32) -> (i32, i32, i32) {
    %c0_i32 = arith.constant 0 : i32
    %c0_i32_0 = arith.constant 0 : i32
    %c0_i32_1 = arith.constant 0 : i32
    return %arg0, %c0_i32, %c0_i32_0 : i32, i32, i32
  }
  func.func @transform_2(%arg0: i32, %arg1: i32) -> (i32, i32, i32) {
    %c0_i32 = arith.constant 0 : i32
    %c0_i32_0 = arith.constant 0 : i32
    %c0_i32_1 = arith.constant 0 : i32
    return %arg0, %c0_i32, %c0_i32_0 : i32, i32, i32
  }
  func.func @transform_3(%arg0: i32, %arg1: i32) -> (i32, i32, i32) {
    %c0_i32 = arith.constant 0 : i32
    %c0_i32_0 = arith.constant 0 : i32
    %c0_i32_1 = arith.constant 0 : i32
    return %arg0, %c0_i32, %c0_i32_0 : i32, i32, i32
  }
  func.func @transform_4(%arg0: i32, %arg1: i32) -> (i32, i32) {
    %c0_i32 = arith.constant 0 : i32
    %c0_i32_0 = arith.constant 0 : i32
    %c0_i32_1 = arith.constant 0 : i32
    return %c0_i32, %c0_i32_0 : i32, i32
  }
  func.func @transform_5(%arg0: i32, %arg1: i32) -> (i32, i32) {
    %c0_i32 = arith.constant 0 : i32
    %c0_i32_0 = arith.constant 0 : i32
    %c0_i32_1 = arith.constant 0 : i32
    return %c0_i32, %c0_i32_0 : i32, i32
  }
  func.func @transform_6(%arg0: i32, %arg1: i32) -> (i32, i32) {
    %c0_i32 = arith.constant 0 : i32
    %c0_i32_0 = arith.constant 0 : i32
    %c0_i32_1 = arith.constant 0 : i32
    return %c0_i32, %c0_i32_0 : i32, i32
  }
  func.func @transform_7(%arg0: i32, %arg1: i32) -> (i32, i32, i32) {
    %c0_i32 = arith.constant 0 : i32
    %c0_i32_0 = arith.constant 0 : i32
    %c0_i32_1 = arith.constant 0 : i32
    return %arg1, %c0_i32, %c0_i32_0 : i32, i32, i32
  }
  func.func @transform_8(%arg0: i32, %arg1: i32) -> (i32, i32, i32) {
    %c0_i32 = arith.constant 0 : i32
    %c0_i32_0 = arith.constant 0 : i32
    %c0_i32_1 = arith.constant 0 : i32
    return %arg1, %c0_i32, %c0_i32_0 : i32, i32, i32
  }
  func.func @transform_9(%arg0: i32, %arg1: i32) -> (i32, i32, i32) {
    %c0_i32 = arith.constant 0 : i32
    %c0_i32_0 = arith.constant 0 : i32
    %c0_i32_1 = arith.constant 0 : i32
    return %arg1, %c0_i32, %c0_i32_0 : i32, i32, i32
  }
  func.func @transform_10(%arg0: i32, %arg1: i32) -> (i32, i32, i32) {
    %c0_i32 = arith.constant 0 : i32
    %c0_i32_0 = arith.constant 0 : i32
    %c0_i32_1 = arith.constant 0 : i32
    return %arg1, %c0_i32, %c0_i32_0 : i32, i32, i32
  }
  func.func @transform_11(%arg0: i32, %arg1: i32) -> (i32, i32, i32) {
    %c0_i32 = arith.constant 0 : i32
    %c0_i32_0 = arith.constant 0 : i32
    %c0_i32_1 = arith.constant 0 : i32
    return %arg1, %c0_i32, %c0_i32_0 : i32, i32, i32
  }
  func.func @transform_12(%arg0: i32, %arg1: i32) -> (i32, i32, i32) {
    %c0_i32 = arith.constant 0 : i32
    %c0_i32_0 = arith.constant 0 : i32
    %c0_i32_1 = arith.constant 0 : i32
    return %arg1, %c0_i32, %c0_i32_0 : i32, i32, i32
  }
  func.func @transform_13(%arg0: i32, %arg1: i32) -> (i32, i32, i32) {
    %c0_i32 = arith.constant 0 : i32
    %c0_i32_0 = arith.constant 0 : i32
    %c0_i32_1 = arith.constant 0 : i32
    return %arg1, %c0_i32, %c0_i32_0 : i32, i32, i32
  }
  func.func @transform_14(%arg0: i32, %arg1: i32) -> (i32, i32, i32) {
    %c0_i32 = arith.constant 0 : i32
    %c0_i32_0 = arith.constant 0 : i32
    %c0_i32_1 = arith.constant 0 : i32
    return %arg1, %c0_i32, %c0_i32_0 : i32, i32, i32
  }
  func.func @transform_15(%arg0: i32, %arg1: i32) -> (i32, i32, i32) {
    %c0_i32 = arith.constant 0 : i32
    %c0_i32_0 = arith.constant 0 : i32
    %c0_i32_1 = arith.constant 0 : i32
    return %arg1, %c0_i32, %c0_i32_0 : i32, i32, i32
  }
  func.func @transform_16(%arg0: i32, %arg1: i32) -> (i32, i32, i32) {
    %c0_i32 = arith.constant 0 : i32
    %c0_i32_0 = arith.constant 0 : i32
    %c0_i32_1 = arith.constant 0 : i32
    return %arg1, %c0_i32, %c0_i32_0 : i32, i32, i32
  }
  func.func @transform_17(%arg0: i32, %arg1: i32) -> (i32, i32, i32) {
    %c0_i32 = arith.constant 0 : i32
    %c0_i32_0 = arith.constant 0 : i32
    %c0_i32_1 = arith.constant 0 : i32
    return %arg1, %c0_i32, %c0_i32_0 : i32, i32, i32
  }
  func.func @transform_18(%arg0: i32, %arg1: i32) -> (i32, i32, i32) {
    %c0_i32 = arith.constant 0 : i32
    %c0_i32_0 = arith.constant 0 : i32
    %c0_i32_1 = arith.constant 0 : i32
    return %arg1, %c0_i32, %c0_i32_0 : i32, i32, i32
  }
  func.func @transform_19(%arg0: i32, %arg1: i32) -> (i32, i32, i32) {
    %c0_i32 = arith.constant 0 : i32
    %c0_i32_0 = arith.constant 0 : i32
    %c0_i32_1 = arith.constant 0 : i32
    return %arg1, %c0_i32, %c0_i32_0 : i32, i32, i32
  }
  func.func @transform_20(%arg0: i32, %arg1: i32) -> (i32, i32, i32) {
    %c0_i32 = arith.constant 0 : i32
    %c0_i32_0 = arith.constant 0 : i32
    %c0_i32_1 = arith.constant 0 : i32
    return %arg1, %c0_i32, %c0_i32_0 : i32, i32, i32
  }
  func.func @transform_21(%arg0: i32, %arg1: i32) -> (i32, i32, i32) {
    %c0_i32 = arith.constant 0 : i32
    %c0_i32_0 = arith.constant 0 : i32
    %c0_i32_1 = arith.constant 0 : i32
    return %arg1, %c0_i32, %c0_i32_0 : i32, i32, i32
  }
  func.func @transform_22(%arg0: i32, %arg1: i32) -> (i32, i32, i32) {
    %c0_i32 = arith.constant 0 : i32
    %c0_i32_0 = arith.constant 0 : i32
    %c0_i32_1 = arith.constant 0 : i32
    return %arg0, %c0_i32, %c0_i32_0 : i32, i32, i32
  }
}

</mosaic_0001>

<llo_original>
// kernel: tpu_custom_call.1
$region0: #{tpu_custom_call.1}
  #allocation0 [shape = 'u32[]', space=smem, size = 0x4, offset = 0x4, fixed_abs, tag = 'smem constant byte address 0x4 - core index']
  #allocation1 [shape = 'u32[144,128]{1,0:T(1,128)}', space=vmem, size = 0x12000, scoped, tag = 'internal scratch']
  %s0 = inlined_call_operand.hbm [shape: f32[2,8,32], index: 0, kind: input, shape index: {}]
  %s1 = inlined_call_operand.hbm [shape: bf16[2,8,32], index: 1, kind: input, shape index: {}]
  %s2 = inlined_call_operand.hbm [shape: f32[2,1,8], index: 2, kind: input, shape index: {}]
  %s3 = inlined_call_operand.hbm [shape: f32[2,1,8], index: 3, kind: input, shape index: {}]
  %s4 = inlined_call_operand.hbm [shape: f32[8,32], index: 4, kind: input, shape index: {}]
  %s5 = inlined_call_operand.hbm [shape: f32[1,32], index: 5, kind: input, shape index: {}]
  %s6 = inlined_call_operand.hbm [shape: f32[1,32], index: 6, kind: input, shape index: {}]
  %s7 = inlined_call_operand.hbm [shape: bf16[2,32,96], index: 7, kind: input, shape index: {}]
  %s8 = inlined_call_operand.hbm [shape: bf16[2,32,32], index: 8, kind: input, shape index: {}]
  %s9 = inlined_call_operand.hbm [shape: f32[2,1,32], index: 9, kind: input, shape index: {}]
  %s10 = inlined_call_operand.hbm [shape: f32[2,1,32], index: 10, kind: input, shape index: {}]
  %s11 = inlined_call_operand.hbm [shape: bf16[2,32,32], index: 11, kind: input, shape index: {}]
  %s12 = inlined_call_operand.hbm [shape: bf16[2,32,64], index: 12, kind: input, shape index: {}]
  %s13 = inlined_call_operand.hbm [shape: bf16[2,32,32], index: 13, kind: input, shape index: {}]
  %s14 = inlined_call_operand.hbm [shape: f32[2,1,32], index: 14, kind: input, shape index: {}]
  %s15 = inlined_call_operand.hbm [shape: f32[2,1,32], index: 15, kind: input, shape index: {}]
  %s16 = inlined_call_operand.hbm [shape: bf16[2,32,64], index: 16, kind: input, shape index: {}]
  %s17 = inlined_call_operand.hbm [shape: f32[2,1,64], index: 17, kind: input, shape index: {}]
  %s18 = inlined_call_operand.hbm [shape: bf16[2,64,32], index: 18, kind: input, shape index: {}]
  %s19 = inlined_call_operand.hbm [shape: f32[2,1,32], index: 19, kind: input, shape index: {}]
  %s20 = inlined_call_operand.hbm [shape: f32[2,1,32], index: 20, kind: input, shape index: {}]
  %s21 = inlined_call_operand.hbm [shape: f32[2,1,32], index: 21, kind: input, shape index: {}]
  %s22 = inlined_call_operand.hbm [shape: f32[2,8,32], index: 22, kind: output, shape index: {}]
  %s23 = sld [smem:[#allocation0]]
  $region213: #{tpu_custom_call.1} parent=0
    _
  %s25 = ssub.s32 1, %s23
  %s26 = scalar_select 0, %s25, %s23
  $region1: #{tpu_custom_call.1} parent=0
    #allocation2 [shape = 'u8[8192]{0}', space=vmem, size = 0x2000, scoped, tag = 'input window, operand 0, single buffered']
    #allocation3 [shape = 's32[2]{0}', space=sflag, size = 0x8, scoped, tag = 'scoped memory for tpu_custom_call.1']
    #allocation4 [shape = 's32[2]{0}', space=sflag, size = 0x8, scoped, tag = 'scoped memory for tpu_custom_call.1']
    #allocation5 [shape = 'u8[4096]{0}', space=vmem, size = 0x1000, scoped, tag = 'input window, operand 1, single buffered']
    #allocation6 [shape = 's32[1]{0}', space=sflag, size = 0x4, scoped, tag = 'scoped memory for tpu_custom_call.1']
    #allocation7 [shape = 'u8[1024]{0}', space=vmem, size = 0x400, scoped, tag = 'input window, operand 2, single buffered']
    #allocation8 [shape = 'u8[1024]{0}', space=vmem, size = 0x400, scoped, tag = 'input window, operand 3, single buffered']
    #allocation9 [shape = 's32[1]{0}', space=sflag, size = 0x4, scoped, tag = 'scoped memory for tpu_custom_call.1']
    #allocation10 [shape = 'u8[4096]{0}', space=vmem, size = 0x1000, scoped, tag = 'input window, operand 4, single buffered']
    #allocation11 [shape = 'u8[512]{0}', space=vmem, size = 0x400, scoped, tag = 'input window, operand 5, single buffered']
    #allocation12 [shape = 's32[1]{0}', space=sflag, size = 0x4, scoped, tag = 'scoped memory for tpu_custom_call.1']
    #allocation13 [shape = 'u8[512]{0}', space=vmem, size = 0x400, scoped, tag = 'input window, operand 6, single buffered']
    #allocation14 [shape = 'u8[16384]{0}', space=vmem, size = 0x4000, scoped, tag = 'input window, operand 7']
    #allocation15 [shape = 's32[2]{0}', space=sflag, size = 0x8, scoped, tag = 'scoped memory for tpu_custom_call.1']
    #allocation16 [shape = 'u8[16384]{0}', space=vmem, size = 0x4000, scoped, tag = 'input window, operand 8']
    #allocation17 [shape = 'u8[1024]{0}', space=vmem, size = 0x400, scoped, tag = 'input window, operand 9']
    #allocation18 [shape = 's32[2]{0}', space=sflag, size = 0x8, scoped, tag = 'scoped memory for tpu_custom_call.1']
    #allocation19 [shape = 'u8[1024]{0}', space=vmem, size = 0x400, scoped, tag = 'input window, operand 10']
    #allocation20 [shape = 'u8[16384]{0}', space=vmem, size = 0x4000, scoped, tag = 'input window, operand 11']
    #allocation21 [shape = 's32[2]{0}', space=sflag, size = 0x8, scoped, tag = 'scoped memory for tpu_custom_call.1']
    #allocation22 [shape = 'u8[16384]{0}', space=vmem, size = 0x4000, scoped, tag = 'input window, operand 12']
    #allocation23 [shape = 'u8[16384]{0}', space=vmem, size = 0x4000, scoped, tag = 'input window, operand 13']
    #allocation24 [shape = 's32[2]{0}', space=sflag, size = 0x8, scoped, tag = 'scoped memory for tpu_custom_call.1']
    #allocation25 [shape = 'u8[1024]{0}', space=vmem, size = 0x400, scoped, tag = 'input window, operand 14']
    #allocation26 [shape = 'u8[1024]{0}', space=vmem, size = 0x400, scoped, tag = 'input window, operand 15']
    #allocation27 [shape = 's32[2]{0}', space=sflag, size = 0x8, scoped, tag = 'scoped memory for tpu_custom_call.1']
    #allocation28 [shape = 'u8[16384]{0}', space=vmem, size = 0x4000, scoped, tag = 'input window, operand 16']
    #allocation29 [shape = 'u8[1024]{0}', space=vmem, size = 0x400, scoped, tag = 'input window, operand 17']
    #allocation30 [shape = 's32[2]{0}', space=sflag, size = 0x8, scoped, tag = 'scoped memory for tpu_custom_call.1']
    #allocation31 [shape = 'u8[32768]{0}', space=vmem, size = 0x8000, scoped, tag = 'input window, operand 18']
    #allocation32 [shape = 'u8[1024]{0}', space=vmem, size = 0x400, scoped, tag = 'input window, operand 19']
    #allocation33 [shape = 's32[2]{0}', space=sflag, size = 0x8, scoped, tag = 'scoped memory for tpu_custom_call.1']
    #allocation34 [shape = 'u8[1024]{0}', space=vmem, size = 0x400, scoped, tag = 'input window, operand 20']
    #allocation35 [shape = 'u8[1024]{0}', space=vmem, size = 0x400, scoped, tag = 'input window, operand 21']
    #allocation36 [shape = 's32[2]{0}', space=sflag, size = 0x8, scoped, tag = 'scoped memory for tpu_custom_call.1']
    #allocation37 [shape = 'u8[8192]{0}', space=vmem, size = 0x2000, scoped, tag = 'output window, operand 0, single buffered']
    %27 = vsyncpa [#allocation3], 0
    %28 = vsyncpa [#allocation6], 0
    %29 = vsyncpa [#allocation9], 0
    %30 = vsyncpa [#allocation12], 0
    %31 = vsyncpa [#allocation15], 0
    %s32 = scalar_lea.sflag [#allocation15], 1
    %33 = vsyncpa %s32, 0
    %34 = vsyncpa [#allocation18], 0
    %s35 = scalar_lea.sflag [#allocation18], 1
    %36 = vsyncpa %s35, 0
    %37 = vsyncpa [#allocation21], 0
    %s38 = scalar_lea.sflag [#allocation21], 1
    %39 = vsyncpa %s38, 0
    %40 = vsyncpa [#allocation24], 0
    %s41 = scalar_lea.sflag [#allocation24], 1
    %42 = vsyncpa %s41, 0
    %43 = vsyncpa [#allocation27], 0
    %s44 = scalar_lea.sflag [#allocation27], 1
    %45 = vsyncpa %s44, 0
    %46 = vsyncpa [#allocation30], 0
    %s47 = scalar_lea.sflag [#allocation30], 1
    %48 = vsyncpa %s47, 0
    %49 = vsyncpa [#allocation33], 0
    %s50 = scalar_lea.sflag [#allocation33], 1
    %51 = vsyncpa %s50, 0
    %52 = vsyncpa [#allocation36], 0
    %s53 = scalar_lea.sflag [#allocation36], 1
    %54 = vsyncpa %s53, 0
    %55 = vsyncpa [#allocation4], 0
    loop: start=0, step=1, limit=4
    $region2: #{tpu_custom_call.1} parent=1 // loop_pre_header
      _
    $region3: #{tpu_custom_call.1} parent=1 // loop_header
      %s57 = sphi 0, %s61
      %p58 = scmp.ge.s32.totalorder %s57, 4
      %s64 = sphi 0, %s76
      %s65 = sphi 0, %s72
      %s66 = sphi 0, %s64
      %s67 = sphi 0, %s65
      %s68 = sphi 0, %s66
      %s69 = sphi 0, %s67
      %s79 = sphi 0, %s81
      %s82 = sphi 0, %s79
      %s83 = sphi 0, %s82
      %s99 = sphi 0, %s83
      %s105 = sphi 0, %s107
      %s108 = sphi 0, %s105
      %s109 = sphi 0, %s108
      %s125 = sphi 0, %s109
      %s131 = sphi 0, %s133
      %s134 = sphi 0, %s131
      %s135 = sphi 0, %s134
      %s151 = sphi 0, %s135
      %s157 = sphi 0, %s159
      %s160 = sphi 0, %s157
      %s161 = sphi 0, %s160
      %s177 = sphi 0, %s161
      %s181 = sphi 0, %s181
      %s183 = sphi 0, %s181
      %s184 = sphi 0, %s183
      %s198 = sphi 0, %s184
      %s202 = sphi 0, %s202
      %s204 = sphi 0, %s202
      %s205 = sphi 0, %s204
      %s219 = sphi 0, %s205
      %s223 = sphi 0, %s223
      %s225 = sphi 0, %s223
      %s226 = sphi 0, %s225
      %s240 = sphi 0, %s226
      %s246 = sphi 0, %s248
      %s249 = sphi 0, %s246
      %s250 = sphi 0, %s249
      %s266 = sphi 0, %s250
      %s272 = sphi 0, %s274
      %s275 = sphi 0, %s272
      %s276 = sphi 0, %s275
      %s292 = sphi 0, %s276
      %s298 = sphi 0, %s300
      %s301 = sphi 0, %s298
      %s302 = sphi 0, %s301
      %s318 = sphi 0, %s302
      %s324 = sphi 0, %s326
      %s327 = sphi 0, %s324
      %s328 = sphi 0, %s327
      %s344 = sphi 0, %s328
      %s350 = sphi 0, %s352
      %s353 = sphi 0, %s350
      %s354 = sphi 0, %s353
      %s370 = sphi 0, %s354
      %s376 = sphi 0, %s378
      %s379 = sphi 0, %s376
      %s380 = sphi 0, %s379
      %s396 = sphi 0, %s380
      %s402 = sphi 0, %s404
      %s405 = sphi 0, %s402
      %s406 = sphi 0, %s405
      %s422 = sphi 0, %s406
      %s428 = sphi 0, %s430
      %s431 = sphi 0, %s428
      %s432 = sphi 0, %s431
      %s448 = sphi 0, %s432
      %s454 = sphi 0, %s456
      %s457 = sphi 0, %s454
      %s458 = sphi 0, %s457
      %s474 = sphi 0, %s458
      %s480 = sphi 0, %s482
      %s483 = sphi 0, %s480
      %s484 = sphi 0, %s483
      %s500 = sphi 0, %s484
      %s506 = sphi 0, %s508
      %s509 = sphi 0, %s506
      %s510 = sphi 0, %s509
      %s526 = sphi 0, %s510
      %s532 = sphi 0, %s534
      %s535 = sphi 0, %s532
      %s536 = sphi 0, %s535
      %s552 = sphi 0, %s536
      %s558 = sphi 0, %s560
      %s561 = sphi 0, %s558
      %s562 = sphi 0, %s561
      %s578 = sphi 0, %s562
      %s584 = sphi 0, %s586
      %s587 = sphi 0, %s584
      %s588 = sphi 0, %s587
      %s604 = sphi 0, %s588
      %s610 = sphi 0, %s612
      %s613 = sphi 0, %s610
      %s614 = sphi 0, %s613
      %s630 = sphi 0, %s614
      %s636 = sphi 0, %s638
      %s639 = sphi 0, %s636
      %s640 = sphi 0, %s639
      %s656 = sphi 0, %s640
    $region4: #{tpu_custom_call.1} parent=1 // loop_header_branch
      %60 = sbr.rel (%p58) target = $region8
    $region5: #{tpu_custom_call.1} parent=1 // loop_body
      %s62 = ssub.s32 %s57, 1
      %s63 = ssub.s32 %s57, 2
      %s70 = sadd.s32 1, %s65
      %p71 = scmp.ge.s32.totalorder %s70, 2
      %s72 = scalar_select %p71, 0, %s70
      %s73 = sadd.s32 1, %s64
      %s74 = scalar_select %p71, %s73, %s64
      %p75 = scmp.ge.s32.totalorder %s74, 1
      %s76 = scalar_select %p75, 0, %s74
      %s77 = ssub.s32 %s64, %s76
      %p78 = scmp.eq.s32.totalorder %s77, 0
      %s80 = sadd.s32 %s79, 1
      %s81 = scalar_select %p78, %s79, %s80
      %p84 = pneg %p78
      %p85 = scmp.eq.s32.totalorder %s57, 1
      %p86 = por %p84, %p85
      %p87 = scmp.ne.s32.totalorder %s79, %s82
      %p88 = scmp.eq.s32.totalorder %s57, 0
      %p89 = por %p87, %p88
      %p90 = scmp.ne.s32.totalorder %s79, %s82
      %p91 = scmp.eq.s32.totalorder %s62, 1
      %p92 = por %p90, %p91
      %p93 = scmp.ne.s32.totalorder %s82, %s83
      %p94 = scmp.eq.s32.totalorder %s62, 0
      %p95 = por %p93, %p94
      %p96 = scmp.ne.s32.totalorder %s82, %s83
      %p97 = scmp.eq.s32.totalorder %s63, 1
      %p98 = por %p96, %p97
      %p100 = scmp.ne.s32.totalorder %s83, %s99
      %p101 = scmp.eq.s32.totalorder %s63, 0
      %p102 = por %p100, %p101
      %s103 = ssub.s32 %s64, %s76
      %p104 = scmp.eq.s32.totalorder %s103, 0
      %s106 = sadd.s32 %s105, 1
      %s107 = scalar_select %p104, %s105, %s106
      %p110 = pneg %p104
      %p111 = scmp.eq.s32.totalorder %s57, 1
      %p112 = por %p110, %p111
      %p113 = scmp.ne.s32.totalorder %s105, %s108
      %p114 = scmp.eq.s32.totalorder %s57, 0
      %p115 = por %p113, %p114
      %p116 = scmp.ne.s32.totalorder %s105, %s108
      %p117 = scmp.eq.s32.totalorder %s62, 1
      %p118 = por %p116, %p117
      %p119 = scmp.ne.s32.totalorder %s108, %s109
      %p120 = scmp.eq.s32.totalorder %s62, 0
      %p121 = por %p119, %p120
      %p122 = scmp.ne.s32.totalorder %s108, %s109
      %p123 = scmp.eq.s32.totalorder %s63, 1
      %p124 = por %p122, %p123
      %p126 = scmp.ne.s32.totalorder %s109, %s125
      %p127 = scmp.eq.s32.totalorder %s63, 0
      %p128 = por %p126, %p127
      %s129 = ssub.s32 %s64, %s76
      %p130 = scmp.eq.s32.totalorder %s129, 0
      %s132 = sadd.s32 %s131, 1
      %s133 = scalar_select %p130, %s131, %s132
      %p136 = pneg %p130
      %p137 = scmp.eq.s32.totalorder %s57, 1
      %p138 = por %p136, %p137
      %p139 = scmp.ne.s32.totalorder %s131, %s134
      %p140 = scmp.eq.s32.totalorder %s57, 0
      %p141 = por %p139, %p140
      %p142 = scmp.ne.s32.totalorder %s131, %s134
      %p143 = scmp.eq.s32.totalorder %s62, 1
      %p144 = por %p142, %p143
      %p145 = scmp.ne.s32.totalorder %s134, %s135
      %p146 = scmp.eq.s32.totalorder %s62, 0
      %p147 = por %p145, %p146
      %p148 = scmp.ne.s32.totalorder %s134, %s135
      %p149 = scmp.eq.s32.totalorder %s63, 1
      %p150 = por %p148, %p149
      %p152 = scmp.ne.s32.totalorder %s135, %s151
      %p153 = scmp.eq.s32.totalorder %s63, 0
      %p154 = por %p152, %p153
      %s155 = ssub.s32 %s64, %s76
      %p156 = scmp.eq.s32.totalorder %s155, 0
      %s158 = sadd.s32 %s157, 1
      %s159 = scalar_select %p156, %s157, %s158
      %p162 = pneg %p156
      %p163 = scmp.eq.s32.totalorder %s57, 1
      %p164 = por %p162, %p163
      %p165 = scmp.ne.s32.totalorder %s157, %s160
      %p166 = scmp.eq.s32.totalorder %s57, 0
      %p167 = por %p165, %p166
      %p168 = scmp.ne.s32.totalorder %s157, %s160
      %p169 = scmp.eq.s32.totalorder %s62, 1
      %p170 = por %p168, %p169
      %p171 = scmp.ne.s32.totalorder %s160, %s161
      %p172 = scmp.eq.s32.totalorder %s62, 0
      %p173 = por %p171, %p172
      %p174 = scmp.ne.s32.totalorder %s160, %s161
      %p175 = scmp.eq.s32.totalorder %s63, 1
      %p176 = por %p174, %p175
      %p178 = scmp.ne.s32.totalorder %s161, %s177
      %p179 = scmp.eq.s32.totalorder %s63, 0
      %p180 = por %p178, %p179
      %s182 = sadd.s32 %s181, 1
      %p185 = scmp.eq.s32.totalorder %s57, 1
      %p186 = scmp.ne.s32.totalorder %s181, %s183
      %p187 = scmp.eq.s32.totalorder %s57, 0
      %p188 = por %p186, %p187
      %p189 = scmp.ne.s32.totalorder %s181, %s183
      %p190 = scmp.eq.s32.totalorder %s62, 1
      %p191 = por %p189, %p190
      %p192 = scmp.ne.s32.totalorder %s183, %s184
      %p193 = scmp.eq.s32.totalorder %s62, 0
      %p194 = por %p192, %p193
      %p195 = scmp.ne.s32.totalorder %s183, %s184
      %p196 = scmp.eq.s32.totalorder %s63, 1
      %p197 = por %p195, %p196
      %p199 = scmp.ne.s32.totalorder %s184, %s198
      %p200 = scmp.eq.s32.totalorder %s63, 0
      %p201 = por %p199, %p200
      %s203 = sadd.s32 %s202, 1
      %p206 = scmp.eq.s32.totalorder %s57, 1
      %p207 = scmp.ne.s32.totalorder %s202, %s204
      %p208 = scmp.eq.s32.totalorder %s57, 0
      %p209 = por %p207, %p208
      %p210 = scmp.ne.s32.totalorder %s202, %s204
      %p211 = scmp.eq.s32.totalorder %s62, 1
      %p212 = por %p210, %p211
      %p213 = scmp.ne.s32.totalorder %s204, %s205
      %p214 = scmp.eq.s32.totalorder %s62, 0
      %p215 = por %p213, %p214
      %p216 = scmp.ne.s32.totalorder %s204, %s205
      %p217 = scmp.eq.s32.totalorder %s63, 1
      %p218 = por %p216, %p217
      %p220 = scmp.ne.s32.totalorder %s205, %s219
      %p221 = scmp.eq.s32.totalorder %s63, 0
      %p222 = por %p220, %p221
      %s224 = sadd.s32 %s223, 1
      %p227 = scmp.eq.s32.totalorder %s57, 1
      %p228 = scmp.ne.s32.totalorder %s223, %s225
      %p229 = scmp.eq.s32.totalorder %s57, 0
      %p230 = por %p228, %p229
      %p231 = scmp.ne.s32.totalorder %s223, %s225
      %p232 = scmp.eq.s32.totalorder %s62, 1
      %p233 = por %p231, %p232
      %p234 = scmp.ne.s32.totalorder %s225, %s226
      %p235 = scmp.eq.s32.totalorder %s62, 0
      %p236 = por %p234, %p235
      %p237 = scmp.ne.s32.totalorder %s225, %s226
      %p238 = scmp.eq.s32.totalorder %s63, 1
      %p239 = por %p237, %p238
      %p241 = scmp.ne.s32.totalorder %s226, %s240
      %p242 = scmp.eq.s32.totalorder %s63, 0
      %p243 = por %p241, %p242
      %s244 = ssub.s32 %s65, %s72
      %p245 = scmp.eq.s32.totalorder %s244, 0
      %s247 = sadd.s32 %s246, 1
      %s248 = scalar_select %p245, %s246, %s247
      %p251 = pneg %p245
      %p252 = scmp.eq.s32.totalorder %s57, 1
      %p253 = por %p251, %p252
      %p254 = scmp.ne.s32.totalorder %s246, %s249
      %p255 = scmp.eq.s32.totalorder %s57, 0
      %p256 = por %p254, %p255
      %p257 = scmp.ne.s32.totalorder %s246, %s249
      %p258 = scmp.eq.s32.totalorder %s62, 1
      %p259 = por %p257, %p258
      %p260 = scmp.ne.s32.totalorder %s249, %s250
      %p261 = scmp.eq.s32.totalorder %s62, 0
      %p262 = por %p260, %p261
      %p263 = scmp.ne.s32.totalorder %s249, %s250
      %p264 = scmp.eq.s32.totalorder %s63, 1
      %p265 = por %p263, %p264
      %p267 = scmp.ne.s32.totalorder %s250, %s266
      %p268 = scmp.eq.s32.totalorder %s63, 0
      %p269 = por %p267, %p268
      %s270 = ssub.s32 %s65, %s72
      %p271 = scmp.eq.s32.totalorder %s270, 0
      %s273 = sadd.s32 %s272, 1
      %s274 = scalar_select %p271, %s272, %s273
      %p277 = pneg %p271
      %p278 = scmp.eq.s32.totalorder %s57, 1
      %p279 = por %p277, %p278
      %p280 = scmp.ne.s32.totalorder %s272, %s275
      %p281 = scmp.eq.s32.totalorder %s57, 0
      %p282 = por %p280, %p281
      %p283 = scmp.ne.s32.totalorder %s272, %s275
      %p284 = scmp.eq.s32.totalorder %s62, 1
      %p285 = por %p283, %p284
      %p286 = scmp.ne.s32.totalorder %s275, %s276
      %p287 = scmp.eq.s32.totalorder %s62, 0
      %p288 = por %p286, %p287
      %p289 = scmp.ne.s32.totalorder %s275, %s276
      %p290 = scmp.eq.s32.totalorder %s63, 1
      %p291 = por %p289, %p290
      %p293 = scmp.ne.s32.totalorder %s276, %s292
      %p294 = scmp.eq.s32.totalorder %s63, 0
      %p295 = por %p293, %p294
      %s296 = ssub.s32 %s65, %s72
      %p297 = scmp.eq.s32.totalorder %s296, 0
      %s299 = sadd.s32 %s298, 1
      %s300 = scalar_select %p297, %s298, %s299
      %p303 = pneg %p297
      %p304 = scmp.eq.s32.totalorder %s57, 1
      %p305 = por %p303, %p304
      %p306 = scmp.ne.s32.totalorder %s298, %s301
      %p307 = scmp.eq.s32.totalorder %s57, 0
      %p308 = por %p306, %p307
      %p309 = scmp.ne.s32.totalorder %s298, %s301
      %p310 = scmp.eq.s32.totalorder %s62, 1
      %p311 = por %p309, %p310
      %p312 = scmp.ne.s32.totalorder %s301, %s302
      %p313 = scmp.eq.s32.totalorder %s62, 0
      %p314 = por %p312, %p313
      %p315 = scmp.ne.s32.totalorder %s301, %s302
      %p316 = scmp.eq.s32.totalorder %s63, 1
      %p317 = por %p315, %p316
      %p319 = scmp.ne.s32.totalorder %s302, %s318
      %p320 = scmp.eq.s32.totalorder %s63, 0
      %p321 = por %p319, %p320
      %s322 = ssub.s32 %s65, %s72
      %p323 = scmp.eq.s32.totalorder %s322, 0
      %s325 = sadd.s32 %s324, 1
      %s326 = scalar_select %p323, %s324, %s325
      %p329 = pneg %p323
      %p330 = scmp.eq.s32.totalorder %s57, 1
      %p331 = por %p329, %p330
      %p332 = scmp.ne.s32.totalorder %s324, %s327
      %p333 = scmp.eq.s32.totalorder %s57, 0
      %p334 = por %p332, %p333
      %p335 = scmp.ne.s32.totalorder %s324, %s327
      %p336 = scmp.eq.s32.totalorder %s62, 1
      %p337 = por %p335, %p336
      %p338 = scmp.ne.s32.totalorder %s327, %s328
      %p339 = scmp.eq.s32.totalorder %s62, 0
      %p340 = por %p338, %p339
      %p341 = scmp.ne.s32.totalorder %s327, %s328
      %p342 = scmp.eq.s32.totalorder %s63, 1
      %p343 = por %p341, %p342
      %p345 = scmp.ne.s32.totalorder %s328, %s344
      %p346 = scmp.eq.s32.totalorder %s63, 0
      %p347 = por %p345, %p346
      %s348 = ssub.s32 %s65, %s72
      %p349 = scmp.eq.s32.totalorder %s348, 0
      %s351 = sadd.s32 %s350, 1
      %s352 = scalar_select %p349, %s350, %s351
      %p355 = pneg %p349
      %p356 = scmp.eq.s32.totalorder %s57, 1
      %p357 = por %p355, %p356
      %p358 = scmp.ne.s32.totalorder %s350, %s353
      %p359 = scmp.eq.s32.totalorder %s57, 0
      %p360 = por %p358, %p359
      %p361 = scmp.ne.s32.totalorder %s350, %s353
      %p362 = scmp.eq.s32.totalorder %s62, 1
      %p363 = por %p361, %p362
      %p364 = scmp.ne.s32.totalorder %s353, %s354
      %p365 = scmp.eq.s32.totalorder %s62, 0
      %p366 = por %p364, %p365
      %p367 = scmp.ne.s32.totalorder %s353, %s354
      %p368 = scmp.eq.s32.totalorder %s63, 1
      %p369 = por %p367, %p368
      %p371 = scmp.ne.s32.totalorder %s354, %s370
      %p372 = scmp.eq.s32.totalorder %s63, 0
      %p373 = por %p371, %p372
      %s374 = ssub.s32 %s65, %s72
      %p375 = scmp.eq.s32.totalorder %s374, 0
      %s377 = sadd.s32 %s376, 1
      %s378 = scalar_select %p375, %s376, %s377
      %p381 = pneg %p375
      %p382 = scmp.eq.s32.totalorder %s57, 1
      %p383 = por %p381, %p382
      %p384 = scmp.ne.s32.totalorder %s376, %s379
      %p385 = scmp.eq.s32.totalorder %s57, 0
      %p386 = por %p384, %p385
      %p387 = scmp.ne.s32.totalorder %s376, %s379
      %p388 = scmp.eq.s32.totalorder %s62, 1
      %p389 = por %p387, %p388
      %p390 = scmp.ne.s32.totalorder %s379, %s380
      %p391 = scmp.eq.s32.totalorder %s62, 0
      %p392 = por %p390, %p391
      %p393 = scmp.ne.s32.totalorder %s379, %s380
      %p394 = scmp.eq.s32.totalorder %s63, 1
      %p395 = por %p393, %p394
      %p397 = scmp.ne.s32.totalorder %s380, %s396
      %p398 = scmp.eq.s32.totalorder %s63, 0
      %p399 = por %p397, %p398
      %s400 = ssub.s32 %s65, %s72
      %p401 = scmp.eq.s32.totalorder %s400, 0
      %s403 = sadd.s32 %s402, 1
      %s404 = scalar_select %p401, %s402, %s403
      %p407 = pneg %p401
      %p408 = scmp.eq.s32.totalorder %s57, 1
      %p409 = por %p407, %p408
      %p410 = scmp.ne.s32.totalorder %s402, %s405
      %p411 = scmp.eq.s32.totalorder %s57, 0
      %p412 = por %p410, %p411
      %p413 = scmp.ne.s32.totalorder %s402, %s405
      %p414 = scmp.eq.s32.totalorder %s62, 1
      %p415 = por %p413, %p414
      %p416 = scmp.ne.s32.totalorder %s405, %s406
      %p417 = scmp.eq.s32.totalorder %s62, 0
      %p418 = por %p416, %p417
      %p419 = scmp.ne.s32.totalorder %s405, %s406
      %p420 = scmp.eq.s32.totalorder %s63, 1
      %p421 = por %p419, %p420
      %p423 = scmp.ne.s32.totalorder %s406, %s422
      %p424 = scmp.eq.s32.totalorder %s63, 0
      %p425 = por %p423, %p424
      %s426 = ssub.s32 %s65, %s72
      %p427 = scmp.eq.s32.totalorder %s426, 0
      %s429 = sadd.s32 %s428, 1
      %s430 = scalar_select %p427, %s428, %s429
      %p433 = pneg %p427
      %p434 = scmp.eq.s32.totalorder %s57, 1
      %p435 = por %p433, %p434
      %p436 = scmp.ne.s32.totalorder %s428, %s431
      %p437 = scmp.eq.s32.totalorder %s57, 0
      %p438 = por %p436, %p437
      %p439 = scmp.ne.s32.totalorder %s428, %s431
      %p440 = scmp.eq.s32.totalorder %s62, 1
      %p441 = por %p439, %p440
      %p442 = scmp.ne.s32.totalorder %s431, %s432
      %p443 = scmp.eq.s32.totalorder %s62, 0
      %p444 = por %p442, %p443
      %p445 = scmp.ne.s32.totalorder %s431, %s432
      %p446 = scmp.eq.s32.totalorder %s63, 1
      %p447 = por %p445, %p446
      %p449 = scmp.ne.s32.totalorder %s432, %s448
      %p450 = scmp.eq.s32.totalorder %s63, 0
      %p451 = por %p449, %p450
      %s452 = ssub.s32 %s65, %s72
      %p453 = scmp.eq.s32.totalorder %s452, 0
      %s455 = sadd.s32 %s454, 1
      %s456 = scalar_select %p453, %s454, %s455
      %p459 = pneg %p453
      %p460 = scmp.eq.s32.totalorder %s57, 1
      %p461 = por %p459, %p460
      %p462 = scmp.ne.s32.totalorder %s454, %s457
      %p463 = scmp.eq.s32.totalorder %s57, 0
      %p464 = por %p462, %p463
      %p465 = scmp.ne.s32.totalorder %s454, %s457
      %p466 = scmp.eq.s32.totalorder %s62, 1
      %p467 = por %p465, %p466
      %p468 = scmp.ne.s32.totalorder %s457, %s458
      %p469 = scmp.eq.s32.totalorder %s62, 0
      %p470 = por %p468, %p469
      %p471 = scmp.ne.s32.totalorder %s457, %s458
      %p472 = scmp.eq.s32.totalorder %s63, 1
      %p473 = por %p471, %p472
      %p475 = scmp.ne.s32.totalorder %s458, %s474
      %p476 = scmp.eq.s32.totalorder %s63, 0
      %p477 = por %p475, %p476
      %s478 = ssub.s32 %s65, %s72
      %p479 = scmp.eq.s32.totalorder %s478, 0
      %s481 = sadd.s32 %s480, 1
      %s482 = scalar_select %p479, %s480, %s481
      %p485 = pneg %p479
      %p486 = scmp.eq.s32.totalorder %s57, 1
      %p487 = por %p485, %p486
      %p488 = scmp.ne.s32.totalorder %s480, %s483
      %p489 = scmp.eq.s32.totalorder %s57, 0
      %p490 = por %p488, %p489
      %p491 = scmp.ne.s32.totalorder %s480, %s483
      %p492 = scmp.eq.s32.totalorder %s62, 1
      %p493 = por %p491, %p492
      %p494 = scmp.ne.s32.totalorder %s483, %s484
      %p495 = scmp.eq.s32.totalorder %s62, 0
      %p496 = por %p494, %p495
      %p497 = scmp.ne.s32.totalorder %s483, %s484
      %p498 = scmp.eq.s32.totalorder %s63, 1
      %p499 = por %p497, %p498
      %p501 = scmp.ne.s32.totalorder %s484, %s500
      %p502 = scmp.eq.s32.totalorder %s63, 0
      %p503 = por %p501, %p502
      %s504 = ssub.s32 %s65, %s72
      %p505 = scmp.eq.s32.totalorder %s504, 0
      %s507 = sadd.s32 %s506, 1
      %s508 = scalar_select %p505, %s506, %s507
      %p511 = pneg %p505
      %p512 = scmp.eq.s32.totalorder %s57, 1
      %p513 = por %p511, %p512
      %p514 = scmp.ne.s32.totalorder %s506, %s509
      %p515 = scmp.eq.s32.totalorder %s57, 0
      %p516 = por %p514, %p515
      %p517 = scmp.ne.s32.totalorder %s506, %s509
      %p518 = scmp.eq.s32.totalorder %s62, 1
      %p519 = por %p517, %p518
      %p520 = scmp.ne.s32.totalorder %s509, %s510
      %p521 = scmp.eq.s32.totalorder %s62, 0
      %p522 = por %p520, %p521
      %p523 = scmp.ne.s32.totalorder %s509, %s510
      %p524 = scmp.eq.s32.totalorder %s63, 1
      %p525 = por %p523, %p524
      %p527 = scmp.ne.s32.totalorder %s510, %s526
      %p528 = scmp.eq.s32.totalorder %s63, 0
      %p529 = por %p527, %p528
      %s530 = ssub.s32 %s65, %s72
      %p531 = scmp.eq.s32.totalorder %s530, 0
      %s533 = sadd.s32 %s532, 1
      %s534 = scalar_select %p531, %s532, %s533
      %p537 = pneg %p531
      %p538 = scmp.eq.s32.totalorder %s57, 1
      %p539 = por %p537, %p538
      %p540 = scmp.ne.s32.totalorder %s532, %s535
      %p541 = scmp.eq.s32.totalorder %s57, 0
      %p542 = por %p540, %p541
      %p543 = scmp.ne.s32.totalorder %s532, %s535
      %p544 = scmp.eq.s32.totalorder %s62, 1
      %p545 = por %p543, %p544
      %p546 = scmp.ne.s32.totalorder %s535, %s536
      %p547 = scmp.eq.s32.totalorder %s62, 0
      %p548 = por %p546, %p547
      %p549 = scmp.ne.s32.totalorder %s535, %s536
      %p550 = scmp.eq.s32.totalorder %s63, 1
      %p551 = por %p549, %p550
      %p553 = scmp.ne.s32.totalorder %s536, %s552
      %p554 = scmp.eq.s32.totalorder %s63, 0
      %p555 = por %p553, %p554
      %s556 = ssub.s32 %s65, %s72
      %p557 = scmp.eq.s32.totalorder %s556, 0
      %s559 = sadd.s32 %s558, 1
      %s560 = scalar_select %p557, %s558, %s559
      %p563 = pneg %p557
      %p564 = scmp.eq.s32.totalorder %s57, 1
      %p565 = por %p563, %p564
      %p566 = scmp.ne.s32.totalorder %s558, %s561
      %p567 = scmp.eq.s32.totalorder %s57, 0
      %p568 = por %p566, %p567
      %p569 = scmp.ne.s32.totalorder %s558, %s561
      %p570 = scmp.eq.s32.totalorder %s62, 1
      %p571 = por %p569, %p570
      %p572 = scmp.ne.s32.totalorder %s561, %s562
      %p573 = scmp.eq.s32.totalorder %s62, 0
      %p574 = por %p572, %p573
      %p575 = scmp.ne.s32.totalorder %s561, %s562
      %p576 = scmp.eq.s32.totalorder %s63, 1
      %p577 = por %p575, %p576
      %p579 = scmp.ne.s32.totalorder %s562, %s578
      %p580 = scmp.eq.s32.totalorder %s63, 0
      %p581 = por %p579, %p580
      %s582 = ssub.s32 %s65, %s72
      %p583 = scmp.eq.s32.totalorder %s582, 0
      %s585 = sadd.s32 %s584, 1
      %s586 = scalar_select %p583, %s584, %s585
      %p589 = pneg %p583
      %p590 = scmp.eq.s32.totalorder %s57, 1
      %p591 = por %p589, %p590
      %p592 = scmp.ne.s32.totalorder %s584, %s587
      %p593 = scmp.eq.s32.totalorder %s57, 0
      %p594 = por %p592, %p593
      %p595 = scmp.ne.s32.totalorder %s584, %s587
      %p596 = scmp.eq.s32.totalorder %s62, 1
      %p597 = por %p595, %p596
      %p598 = scmp.ne.s32.totalorder %s587, %s588
      %p599 = scmp.eq.s32.totalorder %s62, 0
      %p600 = por %p598, %p599
      %p601 = scmp.ne.s32.totalorder %s587, %s588
      %p602 = scmp.eq.s32.totalorder %s63, 1
      %p603 = por %p601, %p602
      %p605 = scmp.ne.s32.totalorder %s588, %s604
      %p606 = scmp.eq.s32.totalorder %s63, 0
      %p607 = por %p605, %p606
      %s608 = ssub.s32 %s65, %s72
      %p609 = scmp.eq.s32.totalorder %s608, 0
      %s611 = sadd.s32 %s610, 1
      %s612 = scalar_select %p609, %s610, %s611
      %p615 = pneg %p609
      %p616 = scmp.eq.s32.totalorder %s57, 1
      %p617 = por %p615, %p616
      %p618 = scmp.ne.s32.totalorder %s610, %s613
      %p619 = scmp.eq.s32.totalorder %s57, 0
      %p620 = por %p618, %p619
      %p621 = scmp.ne.s32.totalorder %s610, %s613
      %p622 = scmp.eq.s32.totalorder %s62, 1
      %p623 = por %p621, %p622
      %p624 = scmp.ne.s32.totalorder %s613, %s614
      %p625 = scmp.eq.s32.totalorder %s62, 0
      %p626 = por %p624, %p625
      %p627 = scmp.ne.s32.totalorder %s613, %s614
      %p628 = scmp.eq.s32.totalorder %s63, 1
      %p629 = por %p627, %p628
      %p631 = scmp.ne.s32.totalorder %s614, %s630
      %p632 = scmp.eq.s32.totalorder %s63, 0
      %p633 = por %p631, %p632
      %s634 = ssub.s32 %s64, %s76
      %p635 = scmp.eq.s32.totalorder %s634, 0
      %s637 = sadd.s32 %s636, 1
      %s638 = scalar_select %p635, %s636, %s637
      %p641 = pneg %p635
      %p642 = scmp.eq.s32.totalorder %s57, 1
      %p643 = por %p641, %p642
      %p644 = scmp.ne.s32.totalorder %s636, %s639
      %p645 = scmp.eq.s32.totalorder %s57, 0
      %p646 = por %p644, %p645
      %p647 = scmp.ne.s32.totalorder %s636, %s639
      %p648 = scmp.eq.s32.totalorder %s62, 1
      %p649 = por %p647, %p648
      %p650 = scmp.ne.s32.totalorder %s639, %s640
      %p651 = scmp.eq.s32.totalorder %s62, 0
      %p652 = por %p650, %p651
      %p653 = scmp.ne.s32.totalorder %s639, %s640
      %p654 = scmp.eq.s32.totalorder %s63, 1
      %p655 = por %p653, %p654
      %p657 = scmp.ne.s32.totalorder %s640, %s656
      %p658 = scmp.eq.s32.totalorder %s63, 0
      %p659 = por %p657, %p658
      %p660 = scmp.le.s32.totalorder 1, %s57
      %p661 = scmp.lt.s32.totalorder %s57, 3
      %p662 = pnand %p660, %p661
      %p663 = pneg %p662
      // Predicated region
      $region9: #{tpu_custom_call.1} parent=5 // pred_check
        _
      $region10: #{tpu_custom_call.1} parent=5 // pred_check_branch
        %665 = sbr.rel (%p662) target = $region12
      $region11: #{tpu_custom_call.1} parent=5 // pred_region
        %s666 = ssub.s32 %s57, 1
        // Predicated region
        $region13: #{tpu_custom_call.1} parent=11 // pred_check
          %p667 = pneg %p95
        $region14: #{tpu_custom_call.1} parent=11 // pred_check_branch
          %669 = sbr.rel (%p667) target = $region16
        $region15: #{tpu_custom_call.1} parent=11 // pred_region
          %s670 = smul.u32 2, %s66
          %s672 = ssub.s32 256, 256
          %673 = vsyncadd [#allocation3], %s672
          %s674 = smul.addr %s670, 128
          %s675 = scalar_lea.hbm %s0, %s674
          %s676 = sshll.u32 [#allocation2], 4
          %s677 = int_to_ptr.vmem [resolvable:$true] %s676
          %682 = dma.hbm_to_vmem [thread:$0]  %s675, 256, %s677, [#allocation3], 128, 128, 8
        $region16: #{tpu_custom_call.1} parent=11 // pred_fallthru
          _
        // Predicated region
        $region17: #{tpu_custom_call.1} parent=11 // pred_check
          %p683 = pneg %p121
        $region18: #{tpu_custom_call.1} parent=11 // pred_check_branch
          %685 = sbr.rel (%p683) target = $region20
        $region19: #{tpu_custom_call.1} parent=11 // pred_region
          %s686 = smul.u32 2, %s66
          %s688 = ssub.s32 128, 128
          %689 = vsyncadd [#allocation6], %s688
          %s690 = smul.addr %s686, 64
          %s691 = scalar_lea.hbm %s1, %s690
          %s692 = sshll.u32 [#allocation5], 4
          %s693 = int_to_ptr.vmem [resolvable:$true] %s692
          %698 = dma.hbm_to_vmem [thread:$0]  %s691, 128, %s693, [#allocation6], 64, 64, 4
        $region20: #{tpu_custom_call.1} parent=11 // pred_fallthru
          _
        // Predicated region
        $region21: #{tpu_custom_call.1} parent=11 // pred_check
          %p699 = pneg %p147
        $region22: #{tpu_custom_call.1} parent=11 // pred_check_branch
          %701 = sbr.rel (%p699) target = $region24
        $region23: #{tpu_custom_call.1} parent=11 // pred_region
          %s702 = smul.u32 2, %s66
          %s704 = ssub.s32 32, 32
          %705 = vsyncadd [#allocation6], %s704
          %s706 = smul.addr %s702, 16
          %s707 = scalar_lea.hbm %s2, %s706
          %s708 = sshll.u32 [#allocation7], 4
          %s709 = int_to_ptr.vmem [resolvable:$true] %s708
          %714 = dma.hbm_to_vmem [thread:$0]  %s707, 32, %s709, [#allocation6], 16, 16, 1
        $region24: #{tpu_custom_call.1} parent=11 // pred_fallthru
          _
        // Predicated region
        $region25: #{tpu_custom_call.1} parent=11 // pred_check
          %p715 = pneg %p173
        $region26: #{tpu_custom_call.1} parent=11 // pred_check_branch
          %717 = sbr.rel (%p715) target = $region28
        $region27: #{tpu_custom_call.1} parent=11 // pred_region
          %s718 = smul.u32 2, %s66
          %s720 = ssub.s32 32, 32
          %721 = vsyncadd [#allocation9], %s720
          %s722 = smul.addr %s718, 16
          %s723 = scalar_lea.hbm %s3, %s722
          %s724 = sshll.u32 [#allocation8], 4
          %s725 = int_to_ptr.vmem [resolvable:$true] %s724
          %730 = dma.hbm_to_vmem [thread:$0]  %s723, 32, %s725, [#allocation9], 16, 16, 1
        $region28: #{tpu_custom_call.1} parent=11 // pred_fallthru
          _
        // Predicated region
        $region29: #{tpu_custom_call.1} parent=11 // pred_check
          %p731 = pneg %p194
        $region30: #{tpu_custom_call.1} parent=11 // pred_check_branch
          %733 = sbr.rel (%p731) target = $region32
        $region31: #{tpu_custom_call.1} parent=11 // pred_region
          %s735 = ssub.s32 128, 128
          %736 = vsyncadd [#allocation9], %s735
          %s738 = sshll.u32 [#allocation10], 4
          %s739 = int_to_ptr.vmem [resolvable:$true] %s738
          %741 = dma.hbm_to_vmem [thread:$0]  %s4, 128, %s739, [#allocation9]
        $region32: #{tpu_custom_call.1} parent=11 // pred_fallthru
          _
        // Predicated region
        $region33: #{tpu_custom_call.1} parent=11 // pred_check
          %p742 = pneg %p215
        $region34: #{tpu_custom_call.1} parent=11 // pred_check_branch
          %744 = sbr.rel (%p742) target = $region36
        $region35: #{tpu_custom_call.1} parent=11 // pred_region
          %s746 = ssub.s32 16, 16
          %747 = vsyncadd [#allocation12], %s746
          %s749 = sshll.u32 [#allocation11], 4
          %s750 = int_to_ptr.vmem [resolvable:$true] %s749
          %752 = dma.hbm_to_vmem [thread:$0]  %s5, 16, %s750, [#allocation12]
        $region36: #{tpu_custom_call.1} parent=11 // pred_fallthru
          _
        // Predicated region
        $region37: #{tpu_custom_call.1} parent=11 // pred_check
          %p753 = pneg %p236
        $region38: #{tpu_custom_call.1} parent=11 // pred_check_branch
          %755 = sbr.rel (%p753) target = $region40
        $region39: #{tpu_custom_call.1} parent=11 // pred_region
          %s757 = ssub.s32 16, 16
          %758 = vsyncadd [#allocation12], %s757
          %s760 = sshll.u32 [#allocation13], 4
          %s761 = int_to_ptr.vmem [resolvable:$true] %s760
          %763 = dma.hbm_to_vmem [thread:$0]  %s6, 16, %s761, [#allocation12]
        $region40: #{tpu_custom_call.1} parent=11 // pred_fallthru
          _
      $region12: #{tpu_custom_call.1} parent=5 // pred_fallthru
        _
      %p764 = scmp.lt.s32.totalorder %s57, 2
      // Predicated region
      $region41: #{tpu_custom_call.1} parent=5 // pred_check
        %p765 = pneg %p764
      $region42: #{tpu_custom_call.1} parent=5 // pred_check_branch
        %767 = sbr.rel (%p765) target = $region44
      $region43: #{tpu_custom_call.1} parent=5 // pred_region
        // Predicated region
        $region45: #{tpu_custom_call.1} parent=43 // pred_check
          %p768 = pneg %p256
        $region46: #{tpu_custom_call.1} parent=43 // pred_check_branch
          %770 = sbr.rel (%p768) target = $region48
        $region47: #{tpu_custom_call.1} parent=43 // pred_region
          %s771 = sand.u32 %s57, 1
          %s772 = scalar_lea.sflag [#allocation15], %s771
          %s773 = sand.u32 %s246, 1
          %s774 = smul.addr %s773, 16
          %s775 = scalar_lea.vmem [#allocation14], %s774
          %s777 = ssub.s32 256, 256
          %778 = vsyncadd %s772, %s777
          %s779 = smul.addr %s65, 4
          %s780 = smul.addr %s779, 64
          %s781 = scalar_lea.hbm %s7, %s780
          %s782 = sshll.u32 %s775, 4
          %s783 = int_to_ptr.vmem [resolvable:$true] %s782
          %788 = dma.hbm_to_vmem [thread:$0]  %s781, 256, %s783, %s772, 64, 64, 4
        $region48: #{tpu_custom_call.1} parent=43 // pred_fallthru
          _
        // Predicated region
        $region49: #{tpu_custom_call.1} parent=43 // pred_check
          %p789 = pneg %p282
        $region50: #{tpu_custom_call.1} parent=43 // pred_check_branch
          %791 = sbr.rel (%p789) target = $region52
        $region51: #{tpu_custom_call.1} parent=43 // pred_region
          %s792 = sand.u32 %s57, 1
          %s793 = scalar_lea.sflag [#allocation15], %s792
          %s794 = sand.u32 %s272, 1
          %s795 = smul.addr %s794, 16
          %s796 = scalar_lea.vmem [#allocation16], %s795
          %s798 = ssub.s32 256, 256
          %799 = vsyncadd %s793, %s798
          %s800 = smul.addr %s65, 4
          %s801 = smul.addr %s800, 64
          %s802 = scalar_lea.hbm %s8, %s801
          %s803 = sshll.u32 %s796, 4
          %s804 = int_to_ptr.vmem [resolvable:$true] %s803
          %809 = dma.hbm_to_vmem [thread:$0]  %s802, 256, %s804, %s793, 64, 64, 4
        $region52: #{tpu_custom_call.1} parent=43 // pred_fallthru
          _
        // Predicated region
        $region53: #{tpu_custom_call.1} parent=43 // pred_check
          %p810 = pneg %p308
        $region54: #{tpu_custom_call.1} parent=43 // pred_check_branch
          %812 = sbr.rel (%p810) target = $region56
        $region55: #{tpu_custom_call.1} parent=43 // pred_region
          %s813 = sand.u32 %s57, 1
          %s814 = scalar_lea.sflag [#allocation18], %s813
          %s815 = sand.u32 %s298, 1
          %s816 = scalar_lea.vmem [#allocation17], %s815
          %s818 = ssub.s32 16, 16
          %819 = vsyncadd %s814, %s818
          %s820 = smul.addr %s65, 16
          %s821 = scalar_lea.hbm %s9, %s820
          %s823 = sshll.u32 %s816, 4
          %s824 = int_to_ptr.vmem [resolvable:$true] %s823
          %826 = dma.hbm_to_vmem [thread:$0]  %s821, 16, %s824, %s814
        $region56: #{tpu_custom_call.1} parent=43 // pred_fallthru
          _
        // Predicated region
        $region57: #{tpu_custom_call.1} parent=43 // pred_check
          %p827 = pneg %p334
        $region58: #{tpu_custom_call.1} parent=43 // pred_check_branch
          %829 = sbr.rel (%p827) target = $region60
        $region59: #{tpu_custom_call.1} parent=43 // pred_region
          %s830 = sand.u32 %s57, 1
          %s831 = scalar_lea.sflag [#allocation18], %s830
          %s832 = sand.u32 %s324, 1
          %s833 = scalar_lea.vmem [#allocation19], %s832
          %s835 = ssub.s32 16, 16
          %836 = vsyncadd %s831, %s835
          %s837 = smul.addr %s65, 16
          %s838 = scalar_lea.hbm %s10, %s837
          %s840 = sshll.u32 %s833, 4
          %s841 = int_to_ptr.vmem [resolvable:$true] %s840
          %843 = dma.hbm_to_vmem [thread:$0]  %s838, 16, %s841, %s831
        $region60: #{tpu_custom_call.1} parent=43 // pred_fallthru
          _
        // Predicated region
        $region61: #{tpu_custom_call.1} parent=43 // pred_check
          %p844 = pneg %p360
        $region62: #{tpu_custom_call.1} parent=43 // pred_check_branch
          %846 = sbr.rel (%p844) target = $region64
        $region63: #{tpu_custom_call.1} parent=43 // pred_region
          %s847 = sand.u32 %s57, 1
          %s848 = scalar_lea.sflag [#allocation21], %s847
          %s849 = sand.u32 %s350, 1
          %s850 = smul.addr %s849, 16
          %s851 = scalar_lea.vmem [#allocation20], %s850
          %s853 = ssub.s32 256, 256
          %854 = vsyncadd %s848, %s853
          %s855 = smul.addr %s65, 4
          %s856 = smul.addr %s855, 64
          %s857 = scalar_lea.hbm %s11, %s856
          %s858 = sshll.u32 %s851, 4
          %s859 = int_to_ptr.vmem [resolvable:$true] %s858
          %864 = dma.hbm_to_vmem [thread:$0]  %s857, 256, %s859, %s848, 64, 64, 4
        $region64: #{tpu_custom_call.1} parent=43 // pred_fallthru
          _
        // Predicated region
        $region65: #{tpu_custom_call.1} parent=43 // pred_check
          %p865 = pneg %p386
        $region66: #{tpu_custom_call.1} parent=43 // pred_check_branch
          %867 = sbr.rel (%p865) target = $region68
        $region67: #{tpu_custom_call.1} parent=43 // pred_region
          %s868 = sand.u32 %s57, 1
          %s869 = scalar_lea.sflag [#allocation21], %s868
          %s870 = sand.u32 %s376, 1
          %s871 = smul.addr %s870, 16
          %s872 = scalar_lea.vmem [#allocation22], %s871
          %s874 = ssub.s32 256, 256
          %875 = vsyncadd %s869, %s874
          %s876 = smul.addr %s65, 4
          %s877 = smul.addr %s876, 64
          %s878 = scalar_lea.hbm %s12, %s877
          %s879 = sshll.u32 %s872, 4
          %s880 = int_to_ptr.vmem [resolvable:$true] %s879
          %885 = dma.hbm_to_vmem [thread:$0]  %s878, 256, %s880, %s869, 64, 64, 4
        $region68: #{tpu_custom_call.1} parent=43 // pred_fallthru
          _
        // Predicated region
        $region69: #{tpu_custom_call.1} parent=43 // pred_check
          %p886 = pneg %p412
        $region70: #{tpu_custom_call.1} parent=43 // pred_check_branch
          %888 = sbr.rel (%p886) target = $region72
        $region71: #{tpu_custom_call.1} parent=43 // pred_region
          %s889 = sand.u32 %s57, 1
          %s890 = scalar_lea.sflag [#allocation24], %s889
          %s891 = sand.u32 %s402, 1
          %s892 = smul.addr %s891, 16
          %s893 = scalar_lea.vmem [#allocation23], %s892
          %s895 = ssub.s32 256, 256
          %896 = vsyncadd %s890, %s895
          %s897 = smul.addr %s65, 4
          %s898 = smul.addr %s897, 64
          %s899 = scalar_lea.hbm %s13, %s898
          %s900 = sshll.u32 %s893, 4
          %s901 = int_to_ptr.vmem [resolvable:$true] %s900
          %906 = dma.hbm_to_vmem [thread:$0]  %s899, 256, %s901, %s890, 64, 64, 4
        $region72: #{tpu_custom_call.1} parent=43 // pred_fallthru
          _
        // Predicated region
        $region73: #{tpu_custom_call.1} parent=43 // pred_check
          %p907 = pneg %p438
        $region74: #{tpu_custom_call.1} parent=43 // pred_check_branch
          %909 = sbr.rel (%p907) target = $region76
        $region75: #{tpu_custom_call.1} parent=43 // pred_region
          %s910 = sand.u32 %s57, 1
          %s911 = scalar_lea.sflag [#allocation24], %s910
          %s912 = sand.u32 %s428, 1
          %s913 = scalar_lea.vmem [#allocation25], %s912
          %s915 = ssub.s32 16, 16
          %916 = vsyncadd %s911, %s915
          %s917 = smul.addr %s65, 16
          %s918 = scalar_lea.hbm %s14, %s917
          %s920 = sshll.u32 %s913, 4
          %s921 = int_to_ptr.vmem [resolvable:$true] %s920
          %923 = dma.hbm_to_vmem [thread:$0]  %s918, 16, %s921, %s911
        $region76: #{tpu_custom_call.1} parent=43 // pred_fallthru
          _
        // Predicated region
        $region77: #{tpu_custom_call.1} parent=43 // pred_check
          %p924 = pneg %p464
        $region78: #{tpu_custom_call.1} parent=43 // pred_check_branch
          %926 = sbr.rel (%p924) target = $region80
        $region79: #{tpu_custom_call.1} parent=43 // pred_region
          %s927 = sand.u32 %s57, 1
          %s928 = scalar_lea.sflag [#allocation27], %s927
          %s929 = sand.u32 %s454, 1
          %s930 = scalar_lea.vmem [#allocation26], %s929
          %s932 = ssub.s32 16, 16
          %933 = vsyncadd %s928, %s932
          %s934 = smul.addr %s65, 16
          %s935 = scalar_lea.hbm %s15, %s934
          %s937 = sshll.u32 %s930, 4
          %s938 = int_to_ptr.vmem [resolvable:$true] %s937
          %940 = dma.hbm_to_vmem [thread:$0]  %s935, 16, %s938, %s928
        $region80: #{tpu_custom_call.1} parent=43 // pred_fallthru
          _
        // Predicated region
        $region81: #{tpu_custom_call.1} parent=43 // pred_check
          %p941 = pneg %p490
        $region82: #{tpu_custom_call.1} parent=43 // pred_check_branch
          %943 = sbr.rel (%p941) target = $region84
        $region83: #{tpu_custom_call.1} parent=43 // pred_region
          %s944 = sand.u32 %s57, 1
          %s945 = scalar_lea.sflag [#allocation27], %s944
          %s946 = sand.u32 %s480, 1
          %s947 = smul.addr %s946, 16
          %s948 = scalar_lea.vmem [#allocation28], %s947
          %s950 = ssub.s32 256, 256
          %951 = vsyncadd %s945, %s950
          %s952 = smul.addr %s65, 4
          %s953 = smul.addr %s952, 64
          %s954 = scalar_lea.hbm %s16, %s953
          %s955 = sshll.u32 %s948, 4
          %s956 = int_to_ptr.vmem [resolvable:$true] %s955
          %961 = dma.hbm_to_vmem [thread:$0]  %s954, 256, %s956, %s945, 64, 64, 4
        $region84: #{tpu_custom_call.1} parent=43 // pred_fallthru
          _
        // Predicated region
        $region85: #{tpu_custom_call.1} parent=43 // pred_check
          %p962 = pneg %p516
        $region86: #{tpu_custom_call.1} parent=43 // pred_check_branch
          %964 = sbr.rel (%p962) target = $region88
        $region87: #{tpu_custom_call.1} parent=43 // pred_region
          %s965 = sand.u32 %s57, 1
          %s966 = scalar_lea.sflag [#allocation30], %s965
          %s967 = sand.u32 %s506, 1
          %s968 = scalar_lea.vmem [#allocation29], %s967
          %s970 = ssub.s32 16, 16
          %971 = vsyncadd %s966, %s970
          %s972 = smul.addr %s65, 16
          %s973 = scalar_lea.hbm %s17, %s972
          %s975 = sshll.u32 %s968, 4
          %s976 = int_to_ptr.vmem [resolvable:$true] %s975
          %978 = dma.hbm_to_vmem [thread:$0]  %s973, 16, %s976, %s966
        $region88: #{tpu_custom_call.1} parent=43 // pred_fallthru
          _
        // Predicated region
        $region89: #{tpu_custom_call.1} parent=43 // pred_check
          %p979 = pneg %p542
        $region90: #{tpu_custom_call.1} parent=43 // pred_check_branch
          %981 = sbr.rel (%p979) target = $region92
        $region91: #{tpu_custom_call.1} parent=43 // pred_region
          %s982 = sand.u32 %s57, 1
          %s983 = scalar_lea.sflag [#allocation30], %s982
          %s984 = sand.u32 %s532, 1
          %s985 = smul.addr %s984, 32
          %s986 = scalar_lea.vmem [#allocation31], %s985
          %s988 = ssub.s32 512, 512
          %989 = vsyncadd %s983, %s988
          %s990 = smul.addr %s65, 8
          %s991 = smul.addr %s990, 64
          %s992 = scalar_lea.hbm %s18, %s991
          %s993 = sshll.u32 %s986, 4
          %s994 = int_to_ptr.vmem [resolvable:$true] %s993
          %999 = dma.hbm_to_vmem [thread:$0]  %s992, 512, %s994, %s983, 64, 64, 4
        $region92: #{tpu_custom_call.1} parent=43 // pred_fallthru
          _
        // Predicated region
        $region93: #{tpu_custom_call.1} parent=43 // pred_check
          %p1000 = pneg %p568
        $region94: #{tpu_custom_call.1} parent=43 // pred_check_branch
          %1002 = sbr.rel (%p1000) target = $region96
        $region95: #{tpu_custom_call.1} parent=43 // pred_region
          %s1003 = sand.u32 %s57, 1
          %s1004 = scalar_lea.sflag [#allocation33], %s1003
          %s1005 = sand.u32 %s558, 1
          %s1006 = scalar_lea.vmem [#allocation32], %s1005
          %s1008 = ssub.s32 16, 16
          %1009 = vsyncadd %s1004, %s1008
          %s1010 = smul.addr %s65, 16
          %s1011 = scalar_lea.hbm %s19, %s1010
          %s1013 = sshll.u32 %s1006, 4
          %s1014 = int_to_ptr.vmem [resolvable:$true] %s1013
          %1016 = dma.hbm_to_vmem [thread:$0]  %s1011, 16, %s1014, %s1004
        $region96: #{tpu_custom_call.1} parent=43 // pred_fallthru
          _
        // Predicated region
        $region97: #{tpu_custom_call.1} parent=43 // pred_check
          %p1017 = pneg %p594
        $region98: #{tpu_custom_call.1} parent=43 // pred_check_branch
          %1019 = sbr.rel (%p1017) target = $region100
        $region99: #{tpu_custom_call.1} parent=43 // pred_region
          %s1020 = sand.u32 %s57, 1
          %s1021 = scalar_lea.sflag [#allocation33], %s1020
          %s1022 = sand.u32 %s584, 1
          %s1023 = scalar_lea.vmem [#allocation34], %s1022
          %s1025 = ssub.s32 16, 16
          %1026 = vsyncadd %s1021, %s1025
          %s1027 = smul.addr %s65, 16
          %s1028 = scalar_lea.hbm %s20, %s1027
          %s1030 = sshll.u32 %s1023, 4
          %s1031 = int_to_ptr.vmem [resolvable:$true] %s1030
          %1033 = dma.hbm_to_vmem [thread:$0]  %s1028, 16, %s1031, %s1021
        $region100: #{tpu_custom_call.1} parent=43 // pred_fallthru
          _
        // Predicated region
        $region101: #{tpu_custom_call.1} parent=43 // pred_check
          %p1034 = pneg %p620
        $region102: #{tpu_custom_call.1} parent=43 // pred_check_branch
          %1036 = sbr.rel (%p1034) target = $region104
        $region103: #{tpu_custom_call.1} parent=43 // pred_region
          %s1037 = sand.u32 %s610, 1
          %s1038 = scalar_lea.sflag [#allocation36], %s1037
          %s1039 = sand.u32 %s610, 1
          %s1040 = scalar_lea.vmem [#allocation35], %s1039
          %s1042 = ssub.s32 16, 16
          %1043 = vsyncadd %s1038, %s1042
          %s1044 = smul.addr %s65, 16
          %s1045 = scalar_lea.hbm %s21, %s1044
          %s1047 = sshll.u32 %s1040, 4
          %s1048 = int_to_ptr.vmem [resolvable:$true] %s1047
          %1050 = dma.hbm_to_vmem [thread:$0]  %s1045, 16, %s1048, %s1038
        $region104: #{tpu_custom_call.1} parent=43 // pred_fallthru
          _
      $region44: #{tpu_custom_call.1} parent=5 // pred_fallthru
        _
      %p1051 = scmp.le.s32.totalorder 1, %s57
      %p1052 = scmp.lt.s32.totalorder %s57, 3
      %p1053 = pnand %p1051, %p1052
      %p1054 = pneg %p1053
      // Predicated region
      $region105: #{tpu_custom_call.1} parent=5 // pred_check
        _
      $region106: #{tpu_custom_call.1} parent=5 // pred_check_branch
        %1056 = sbr.rel (%p1053) target = $region108
      $region107: #{tpu_custom_call.1} parent=5 // pred_region
        %s1057 = ssub.s32 %s57, 1
        // Predicated region
        $region109: #{tpu_custom_call.1} parent=107 // pred_check
          %p1058 = pneg %p95
        $region110: #{tpu_custom_call.1} parent=107 // pred_check_branch
          %1060 = sbr.rel (%p1058) target = $region112
        $region111: #{tpu_custom_call.1} parent=107 // pred_region
          %1061 = dma.done [#allocation3], 256
        $region112: #{tpu_custom_call.1} parent=107 // pred_fallthru
          _
        // Predicated region
        $region113: #{tpu_custom_call.1} parent=107 // pred_check
          %p1062 = pneg %p121
        $region114: #{tpu_custom_call.1} parent=107 // pred_check_branch
          %1064 = sbr.rel (%p1062) target = $region116
        $region115: #{tpu_custom_call.1} parent=107 // pred_region
          %1065 = dma.done [#allocation6], 128
        $region116: #{tpu_custom_call.1} parent=107 // pred_fallthru
          _
        // Predicated region
        $region117: #{tpu_custom_call.1} parent=107 // pred_check
          %p1066 = pneg %p147
        $region118: #{tpu_custom_call.1} parent=107 // pred_check_branch
          %1068 = sbr.rel (%p1066) target = $region120
        $region119: #{tpu_custom_call.1} parent=107 // pred_region
          %1069 = dma.done [#allocation6], 32
        $region120: #{tpu_custom_call.1} parent=107 // pred_fallthru
          _
        // Predicated region
        $region121: #{tpu_custom_call.1} parent=107 // pred_check
          %p1070 = pneg %p173
        $region122: #{tpu_custom_call.1} parent=107 // pred_check_branch
          %1072 = sbr.rel (%p1070) target = $region124
        $region123: #{tpu_custom_call.1} parent=107 // pred_region
          %1073 = dma.done [#allocation9], 32
        $region124: #{tpu_custom_call.1} parent=107 // pred_fallthru
          _
        // Predicated region
        $region125: #{tpu_custom_call.1} parent=107 // pred_check
          %p1074 = pneg %p194
        $region126: #{tpu_custom_call.1} parent=107 // pred_check_branch
          %1076 = sbr.rel (%p1074) target = $region128
        $region127: #{tpu_custom_call.1} parent=107 // pred_region
          %1077 = dma.done [#allocation9], 128
        $region128: #{tpu_custom_call.1} parent=107 // pred_fallthru
          _
        // Predicated region
        $region129: #{tpu_custom_call.1} parent=107 // pred_check
          %p1078 = pneg %p215
        $region130: #{tpu_custom_call.1} parent=107 // pred_check_branch
          %1080 = sbr.rel (%p1078) target = $region132
        $region131: #{tpu_custom_call.1} parent=107 // pred_region
          %1081 = dma.done [#allocation12], 16
        $region132: #{tpu_custom_call.1} parent=107 // pred_fallthru
          _
        // Predicated region
        $region133: #{tpu_custom_call.1} parent=107 // pred_check
          %p1082 = pneg %p236
        $region134: #{tpu_custom_call.1} parent=107 // pred_check_branch
          %1084 = sbr.rel (%p1082) target = $region136
        $region135: #{tpu_custom_call.1} parent=107 // pred_region
          %1085 = dma.done [#allocation12], 16
        $region136: #{tpu_custom_call.1} parent=107 // pred_fallthru
          _
        %s1086 = sand.u32 %s62, 1
        %s1087 = scalar_lea.sflag [#allocation15], %s1086
        %s1088 = sand.u32 %s249, 1
        %s1089 = smul.addr %s1088, 16
        %s1090 = scalar_lea.vmem [#allocation14], %s1089
        // Predicated region
        $region137: #{tpu_custom_call.1} parent=107 // pred_check
          %p1091 = pneg %p262
        $region138: #{tpu_custom_call.1} parent=107 // pred_check_branch
          %1093 = sbr.rel (%p1091) target = $region140
        $region139: #{tpu_custom_call.1} parent=107 // pred_region
          %1094 = dma.done %s1087, 256
        $region140: #{tpu_custom_call.1} parent=107 // pred_fallthru
          _
        %s1095 = sand.u32 %s62, 1
        %s1096 = scalar_lea.sflag [#allocation15], %s1095
        %s1097 = sand.u32 %s275, 1
        %s1098 = smul.addr %s1097, 16
        %s1099 = scalar_lea.vmem [#allocation16], %s1098
        // Predicated region
        $region141: #{tpu_custom_call.1} parent=107 // pred_check
          %p1100 = pneg %p288
        $region142: #{tpu_custom_call.1} parent=107 // pred_check_branch
          %1102 = sbr.rel (%p1100) target = $region144
        $region143: #{tpu_custom_call.1} parent=107 // pred_region
          %1103 = dma.done %s1096, 256
        $region144: #{tpu_custom_call.1} parent=107 // pred_fallthru
          _
        %s1104 = sand.u32 %s62, 1
        %s1105 = scalar_lea.sflag [#allocation18], %s1104
        %s1106 = sand.u32 %s301, 1
        %s1107 = scalar_lea.vmem [#allocation17], %s1106
        // Predicated region
        $region145: #{tpu_custom_call.1} parent=107 // pred_check
          %p1108 = pneg %p314
        $region146: #{tpu_custom_call.1} parent=107 // pred_check_branch
          %1110 = sbr.rel (%p1108) target = $region148
        $region147: #{tpu_custom_call.1} parent=107 // pred_region
          %1111 = dma.done %s1105, 16
        $region148: #{tpu_custom_call.1} parent=107 // pred_fallthru
          _
        %s1112 = sand.u32 %s62, 1
        %s1113 = scalar_lea.sflag [#allocation18], %s1112
        %s1114 = sand.u32 %s327, 1
        %s1115 = scalar_lea.vmem [#allocation19], %s1114
        // Predicated region
        $region149: #{tpu_custom_call.1} parent=107 // pred_check
          %p1116 = pneg %p340
        $region150: #{tpu_custom_call.1} parent=107 // pred_check_branch
          %1118 = sbr.rel (%p1116) target = $region152
        $region151: #{tpu_custom_call.1} parent=107 // pred_region
          %1119 = dma.done %s1113, 16
        $region152: #{tpu_custom_call.1} parent=107 // pred_fallthru
          _
        %s1120 = sand.u32 %s62, 1
        %s1121 = scalar_lea.sflag [#allocation21], %s1120
        %s1122 = sand.u32 %s353, 1
        %s1123 = smul.addr %s1122, 16
        %s1124 = scalar_lea.vmem [#allocation20], %s1123
        // Predicated region
        $region153: #{tpu_custom_call.1} parent=107 // pred_check
          %p1125 = pneg %p366
        $region154: #{tpu_custom_call.1} parent=107 // pred_check_branch
          %1127 = sbr.rel (%p1125) target = $region156
        $region155: #{tpu_custom_call.1} parent=107 // pred_region
          %1128 = dma.done %s1121, 256
        $region156: #{tpu_custom_call.1} parent=107 // pred_fallthru
          _
        %s1129 = sand.u32 %s62, 1
        %s1130 = scalar_lea.sflag [#allocation21], %s1129
        %s1131 = sand.u32 %s379, 1
        %s1132 = smul.addr %s1131, 16
        %s1133 = scalar_lea.vmem [#allocation22], %s1132
        // Predicated region
        $region157: #{tpu_custom_call.1} parent=107 // pred_check
          %p1134 = pneg %p392
        $region158: #{tpu_custom_call.1} parent=107 // pred_check_branch
          %1136 = sbr.rel (%p1134) target = $region160
        $region159: #{tpu_custom_call.1} parent=107 // pred_region
          %1137 = dma.done %s1130, 256
        $region160: #{tpu_custom_call.1} parent=107 // pred_fallthru
          _
        %s1138 = sand.u32 %s62, 1
        %s1139 = scalar_lea.sflag [#allocation24], %s1138
        %s1140 = sand.u32 %s405, 1
        %s1141 = smul.addr %s1140, 16
        %s1142 = scalar_lea.vmem [#allocation23], %s1141
        // Predicated region
        $region161: #{tpu_custom_call.1} parent=107 // pred_check
          %p1143 = pneg %p418
        $region162: #{tpu_custom_call.1} parent=107 // pred_check_branch
          %1145 = sbr.rel (%p1143) target = $region164
        $region163: #{tpu_custom_call.1} parent=107 // pred_region
          %1146 = dma.done %s1139, 256
        $region164: #{tpu_custom_call.1} parent=107 // pred_fallthru
          _
        %s1147 = sand.u32 %s62, 1
        %s1148 = scalar_lea.sflag [#allocation24], %s1147
        %s1149 = sand.u32 %s431, 1
        %s1150 = scalar_lea.vmem [#allocation25], %s1149
        // Predicated region
        $region165: #{tpu_custom_call.1} parent=107 // pred_check
          %p1151 = pneg %p444
        $region166: #{tpu_custom_call.1} parent=107 // pred_check_branch
          %1153 = sbr.rel (%p1151) target = $region168
        $region167: #{tpu_custom_call.1} parent=107 // pred_region
          %1154 = dma.done %s1148, 16
        $region168: #{tpu_custom_call.1} parent=107 // pred_fallthru
          _
        %s1155 = sand.u32 %s62, 1
        %s1156 = scalar_lea.sflag [#allocation27], %s1155
        %s1157 = sand.u32 %s457, 1
        %s1158 = scalar_lea.vmem [#allocation26], %s1157
        // Predicated region
        $region169: #{tpu_custom_call.1} parent=107 // pred_check
          %p1159 = pneg %p470
        $region170: #{tpu_custom_call.1} parent=107 // pred_check_branch
          %1161 = sbr.rel (%p1159) target = $region172
        $region171: #{tpu_custom_call.1} parent=107 // pred_region
          %1162 = dma.done %s1156, 16
        $region172: #{tpu_custom_call.1} parent=107 // pred_fallthru
          _
        %s1163 = sand.u32 %s62, 1
        %s1164 = scalar_lea.sflag [#allocation27], %s1163
        %s1165 = sand.u32 %s483, 1
        %s1166 = smul.addr %s1165, 16
        %s1167 = scalar_lea.vmem [#allocation28], %s1166
        // Predicated region
        $region173: #{tpu_custom_call.1} parent=107 // pred_check
          %p1168 = pneg %p496
        $region174: #{tpu_custom_call.1} parent=107 // pred_check_branch
          %1170 = sbr.rel (%p1168) target = $region176
        $region175: #{tpu_custom_call.1} parent=107 // pred_region
          %1171 = dma.done %s1164, 256
        $region176: #{tpu_custom_call.1} parent=107 // pred_fallthru
          _
        %s1172 = sand.u32 %s62, 1
        %s1173 = scalar_lea.sflag [#allocation30], %s1172
        %s1174 = sand.u32 %s509, 1
        %s1175 = scalar_lea.vmem [#allocation29], %s1174
        // Predicated region
        $region177: #{tpu_custom_call.1} parent=107 // pred_check
          %p1176 = pneg %p522
        $region178: #{tpu_custom_call.1} parent=107 // pred_check_branch
          %1178 = sbr.rel (%p1176) target = $region180
        $region179: #{tpu_custom_call.1} parent=107 // pred_region
          %1179 = dma.done %s1173, 16
        $region180: #{tpu_custom_call.1} parent=107 // pred_fallthru
          _
        %s1180 = sand.u32 %s62, 1
        %s1181 = scalar_lea.sflag [#allocation30], %s1180
        %s1182 = sand.u32 %s535, 1
        %s1183 = smul.addr %s1182, 32
        %s1184 = scalar_lea.vmem [#allocation31], %s1183
        // Predicated region
        $region181: #{tpu_custom_call.1} parent=107 // pred_check
          %p1185 = pneg %p548
        $region182: #{tpu_custom_call.1} parent=107 // pred_check_branch
          %1187 = sbr.rel (%p1185) target = $region184
        $region183: #{tpu_custom_call.1} parent=107 // pred_region
          %1188 = dma.done %s1181, 512
        $region184: #{tpu_custom_call.1} parent=107 // pred_fallthru
          _
        %s1189 = sand.u32 %s62, 1
        %s1190 = scalar_lea.sflag [#allocation33], %s1189
        %s1191 = sand.u32 %s561, 1
        %s1192 = scalar_lea.vmem [#allocation32], %s1191
        // Predicated region
        $region185: #{tpu_custom_call.1} parent=107 // pred_check
          %p1193 = pneg %p574
        $region186: #{tpu_custom_call.1} parent=107 // pred_check_branch
          %1195 = sbr.rel (%p1193) target = $region188
        $region187: #{tpu_custom_call.1} parent=107 // pred_region
          %1196 = dma.done %s1190, 16
        $region188: #{tpu_custom_call.1} parent=107 // pred_fallthru
          _
        %s1197 = sand.u32 %s62, 1
        %s1198 = scalar_lea.sflag [#allocation33], %s1197
        %s1199 = sand.u32 %s587, 1
        %s1200 = scalar_lea.vmem [#allocation34], %s1199
        // Predicated region
        $region189: #{tpu_custom_call.1} parent=107 // pred_check
          %p1201 = pneg %p600
        $region190: #{tpu_custom_call.1} parent=107 // pred_check_branch
          %1203 = sbr.rel (%p1201) target = $region192
        $region191: #{tpu_custom_call.1} parent=107 // pred_region
          %1204 = dma.done %s1198, 16
        $region192: #{tpu_custom_call.1} parent=107 // pred_fallthru
          _
        %s1205 = sand.u32 %s613, 1
        %s1206 = scalar_lea.sflag [#allocation36], %s1205
        %s1207 = sand.u32 %s613, 1
        %s1208 = scalar_lea.vmem [#allocation35], %s1207
        // Predicated region
        $region193: #{tpu_custom_call.1} parent=107 // pred_check
          %p1209 = pneg %p626
        $region194: #{tpu_custom_call.1} parent=107 // pred_check_branch
          %1211 = sbr.rel (%p1209) target = $region196
        $region195: #{tpu_custom_call.1} parent=107 // pred_region
          %1212 = dma.done %s1206, 16
        $region196: #{tpu_custom_call.1} parent=107 // pred_fallthru
          _
        %p1213 = pneg %p95
        %p1214 = pneg %p92
        %p1215 = pneg %p121
        %p1216 = pneg %p118
        %p1217 = pneg %p147
        %p1218 = pneg %p144
        %p1219 = pneg %p173
        %p1220 = pneg %p170
        %p1221 = pneg %p194
        %p1222 = pneg %p191
        %p1223 = pneg %p215
        %p1224 = pneg %p212
        %p1225 = pneg %p236
        %p1226 = pneg %p233
        %s1227 = sand.u32 %s62, 1
        %s1228 = scalar_lea.sflag [#allocation15], %s1227
        %s1229 = sand.u32 %s249, 1
        %s1230 = smul.addr %s1229, 16
        %s1231 = scalar_lea.vmem [#allocation14], %s1230
        %p1232 = pneg %p262
        %p1233 = pneg %p259
        %s1234 = sand.u32 %s62, 1
        %s1235 = scalar_lea.sflag [#allocation15], %s1234
        %s1236 = sand.u32 %s275, 1
        %s1237 = smul.addr %s1236, 16
        %s1238 = scalar_lea.vmem [#allocation16], %s1237
        %p1239 = pneg %p288
        %p1240 = pneg %p285
        %s1241 = sand.u32 %s62, 1
        %s1242 = scalar_lea.sflag [#allocation18], %s1241
        %s1243 = sand.u32 %s301, 1
        %s1244 = scalar_lea.vmem [#allocation17], %s1243
        %p1245 = pneg %p314
        %p1246 = pneg %p311
        %s1247 = sand.u32 %s62, 1
        %s1248 = scalar_lea.sflag [#allocation18], %s1247
        %s1249 = sand.u32 %s327, 1
        %s1250 = scalar_lea.vmem [#allocation19], %s1249
        %p1251 = pneg %p340
        %p1252 = pneg %p337
        %s1253 = sand.u32 %s62, 1
        %s1254 = scalar_lea.sflag [#allocation21], %s1253
        %s1255 = sand.u32 %s353, 1
        %s1256 = smul.addr %s1255, 16
        %s1257 = scalar_lea.vmem [#allocation20], %s1256
        %p1258 = pneg %p366
        %p1259 = pneg %p363
        %s1260 = sand.u32 %s62, 1
        %s1261 = scalar_lea.sflag [#allocation21], %s1260
        %s1262 = sand.u32 %s379, 1
        %s1263 = smul.addr %s1262, 16
        %s1264 = scalar_lea.vmem [#allocation22], %s1263
        %p1265 = pneg %p392
        %p1266 = pneg %p389
        %s1267 = sand.u32 %s62, 1
        %s1268 = scalar_lea.sflag [#allocation24], %s1267
        %s1269 = sand.u32 %s405, 1
        %s1270 = smul.addr %s1269, 16
        %s1271 = scalar_lea.vmem [#allocation23], %s1270
        %p1272 = pneg %p418
        %p1273 = pneg %p415
        %s1274 = sand.u32 %s62, 1
        %s1275 = scalar_lea.sflag [#allocation24], %s1274
        %s1276 = sand.u32 %s431, 1
        %s1277 = scalar_lea.vmem [#allocation25], %s1276
        %p1278 = pneg %p444
        %p1279 = pneg %p441
        %s1280 = sand.u32 %s62, 1
        %s1281 = scalar_lea.sflag [#allocation27], %s1280
        %s1282 = sand.u32 %s457, 1
        %s1283 = scalar_lea.vmem [#allocation26], %s1282
        %p1284 = pneg %p470
        %p1285 = pneg %p467
        %s1286 = sand.u32 %s62, 1
        %s1287 = scalar_lea.sflag [#allocation27], %s1286
        %s1288 = sand.u32 %s483, 1
        %s1289 = smul.addr %s1288, 16
        %s1290 = scalar_lea.vmem [#allocation28], %s1289
        %p1291 = pneg %p496
        %p1292 = pneg %p493
        %s1293 = sand.u32 %s62, 1
        %s1294 = scalar_lea.sflag [#allocation30], %s1293
        %s1295 = sand.u32 %s509, 1
        %s1296 = scalar_lea.vmem [#allocation29], %s1295
        %p1297 = pneg %p522
        %p1298 = pneg %p519
        %s1299 = sand.u32 %s62, 1
        %s1300 = scalar_lea.sflag [#allocation30], %s1299
        %s1301 = sand.u32 %s535, 1
        %s1302 = smul.addr %s1301, 32
        %s1303 = scalar_lea.vmem [#allocation31], %s1302
        %p1304 = pneg %p548
        %p1305 = pneg %p545
        %s1306 = sand.u32 %s62, 1
        %s1307 = scalar_lea.sflag [#allocation33], %s1306
        %s1308 = sand.u32 %s561, 1
        %s1309 = scalar_lea.vmem [#allocation32], %s1308
        %p1310 = pneg %p574
        %p1311 = pneg %p571
        %s1312 = sand.u32 %s62, 1
        %s1313 = scalar_lea.sflag [#allocation33], %s1312
        %s1314 = sand.u32 %s587, 1
        %s1315 = scalar_lea.vmem [#allocation34], %s1314
        %p1316 = pneg %p600
        %p1317 = pneg %p597
        %s1318 = sand.u32 %s613, 1
        %s1319 = scalar_lea.sflag [#allocation36], %s1318
        %s1320 = sand.u32 %s613, 1
        %s1321 = scalar_lea.vmem [#allocation35], %s1320
        %p1322 = pneg %p626
        %p1323 = pneg %p623
        %p1324 = pneg %p652
        %p1325 = pneg %p649
        %s1326 = smul.u32 2, %s66
        %s1327 = smul.u32 2, %s66
        %s1328 = smul.u32 2, %s66
        %s1329 = smul.u32 2, %s66
        %s1330 = smul.u32 2, %s66
        %p1332 = scmp.eq.s32.totalorder %s67, 0
        // Predicated region
        $region197: #{tpu_custom_call.1} parent=107 // pred_check
          %p1333 = pneg %p1332
        $region198: #{tpu_custom_call.1} parent=107 // pred_check_branch
          %1335 = sbr.rel (%p1333) target = $region200
        $region199: #{tpu_custom_call.1} parent=107 // pred_region
          %v1336 = vld [vmem:[#allocation2] sm:$0xff]
          %v1337 = vld [vmem:[#allocation2 + $0x8] sm:$0xff]
          %v1338 = vld [vmem:[#allocation10] sm:$0xff]
          %v1339 = vadd.f32 %v1336, %v1338
          %v1340 = vadd.f32 %v1337, %v1338
          %v1341 = vld [vmem:[#allocation11] sm:$0x1]
          %v1342 = vld [vmem:[#allocation13] sm:$0x1]
          %vm1343 = vcmask 261120
          %v1344 = vsel %vm1343, %v1339, 0.0
          %1345 = vadd.xlane.f32.xlu0 %v1344
          %v1346 = vpop.xlane.xlu0 %1345
          %v1347 = vsel %vm1343, %v1340, 0.0
          %1348 = vadd.xlane.f32.xlu0 %v1347
          %v1349 = vpop.xlane.xlu0 %1348
          %v1350 = vrcp.pop 32.0
          %v1351 = vmul.f32 %v1346, %v1350
          %v1352 = vmul.f32 %v1349, %v1350
          %v1353 = vsub.f32 %v1339, %v1351
          %v1354 = vsub.f32 %v1340, %v1352
          %v1355 = vmul.f32 %v1353, %v1353
          %v1356 = vmul.f32 %v1354, %v1354
          %v1357 = vsel %vm1343, %v1355, 0.0
          %1358 = vadd.xlane.f32.xlu0 %v1357
          %v1359 = vpop.xlane.xlu0 %1358
          %v1360 = vsel %vm1343, %v1356, 0.0
          %1361 = vadd.xlane.f32.xlu0 %v1360
          %v1362 = vpop.xlane.xlu0 %1361
          %v1363 = vmul.f32 %v1359, %v1350
          %v1364 = vmul.f32 %v1362, %v1350
          %v1365 = vadd.f32 %v1363, 1e-06
          %v1366 = vadd.f32 %v1364, 1e-06
          %v1367 = vrsqrt.pop %v1365
          %v1368 = vrsqrt.pop %v1366
          %v1369 = vmul.f32 %v1353, %v1367
          %v1370 = vmul.f32 %v1354, %v1368
          %v1372 = vlaneseq
          %v1373 = vshrl.u32 %v1372, 7
          %v1374 = vsub.s32 0, %v1373
          %v1375 = vrot.slane %v1341, %v1374
          %v1377 = vmul.f32 %v1369, %v1375
          %v1378 = vmul.f32 %v1370, %v1375
          %v1380 = vlaneseq
          %v1381 = vshrl.u32 %v1380, 7
          %v1382 = vsub.s32 0, %v1381
          %v1383 = vrot.slane %v1342, %v1382
          %v1385 = vadd.f32 %v1377, %v1383
          %v1386 = vadd.f32 %v1378, %v1383
          %1387 = vst.msk [vmem:[#allocation37] sm:$0xff] %vm1343, %v1385
          %1388 = vst.msk [vmem:[#allocation37 + $0x8] sm:$0xff] %vm1343, %v1386
        $region200: #{tpu_custom_call.1} parent=107 // pred_fallthru
          _
        %v1389 = vld [vmem:[#allocation37] sm:$0xff]
        %v1390 = vld [vmem:[#allocation37 + $0x8] sm:$0xff]
        %v1391 = vpack.c.bf16 %v1390, %v1389
        %v1392 = vlaneseq
        %v1393 = vshrl.u32 %v1392, 7
        %v1394 = vlaneseq
        %v1395 = vand.u32 %v1394, 127
        %vm1396 = vcmp.le.s32.totalorder %v1395, %v1393
        %v1397 = vsel %vm1396, 0.0, -1e+09
        %v1398 = vld [vmem:[%s1090] sm:$0xf]
        %v1399 = vld [vmem:[%s1090 + $0x4] sm:$0xf]
        %v1400 = vld [vmem:[%s1090 + $0x8] sm:$0xf]
        %v1401 = vld [vmem:[%s1090 + $0xc] sm:$0xf]
        %v1406 = vunpack.c.l.b16 %v1398
        %v1407 = vunpack.c.l.b16 %v1399
        %v1408 = vunpack.c.l.b16 %v1400
        %v1409 = vunpack.c.l.b16 %v1401
        %v1410 = vpack.c.b16 %v1407, %v1406
        %v1411 = vpack.c.b16 %v1409, %v1408
        %vm1414 = vcmask 261120
        %v1416 = vsel %vm1414, %v1391, 0
        %1418 = vmatprep.subr.bf16.mxu0 0
        %1419 = vmatpush1.bf16.msra.mxu0 %v1410
        %1420 = vmatprep.subr.bf16.mxu0 0
        %1421 = vmatpush1.bf16.msra.mxu0 %v1411
        %1422 = vmatprep.subr.bf16.mxu0 0
        %1423 = vmatpush1.bf16.msra.mxu0 0
        %1424 = vmatprep.subr.bf16.mxu0 0
        %1425 = vmatpush1.bf16.msra.mxu0 0
        %1426 = vmatprep.subr.bf16.mxu0 0
        %1427 = vmatpush1.bf16.msra.mxu0 0
        %1428 = vmatprep.subr.bf16.mxu0 0
        %1429 = vmatpush1.bf16.msra.mxu0 0
        %1430 = vmatprep.subr.bf16.mxu0 0
        %1431 = vmatpush1.bf16.msra.mxu0 0
        %1432 = vmatprep.subr.bf16.mxu0 0
        %1433 = vmatpush1.bf16.msra.mxu0 0
        %1434 = vmatprep.subr.bf16.mxu0 0
        %1435 = vmatpush1.bf16.msra.mxu0 0
        %1436 = vmatprep.subr.bf16.mxu0 0
        %1437 = vmatpush1.bf16.msra.mxu0 0
        %1438 = vmatprep.subr.bf16.mxu0 0
        %1439 = vmatpush1.bf16.msra.mxu0 0
        %1440 = vmatprep.subr.bf16.mxu0 0
        %1441 = vmatpush1.bf16.msra.mxu0 0
        %1442 = vmatprep.subr.bf16.mxu0 0
        %1443 = vmatpush1.bf16.msra.mxu0 0
        %1444 = vmatprep.subr.bf16.mxu0 0
        %1445 = vmatpush1.bf16.msra.mxu0 0
        %1446 = vmatprep.subr.bf16.mxu0 0
        %1447 = vmatpush1.bf16.msra.mxu0 0
        %1448 = vmatprep.subr.bf16.mxu0 0
        %1449 = vmatpush1.bf16.msra.mxu0 0
        %1450 = vmatprep.mubr.bf16.mxu0 0
        %1451 = vmatmul.mubr.bf16.gmra.mrb[0].mxu0 %v1416
        %v1452 = vpop.f32.mrb[0].mxu0
        %v1453 = vadd.f32 0.0, %v1452
        %v1454 = vpop.f32.mrb[0].mxu0
        %v1455 = vpop.f32.mrb[0].mxu0
        %v1456 = vadd.f32 0.0, %v1455
        %v1457 = vpop.f32.mrb[0].mxu0
        %1458 = vdwg.mxu0
        %v1459 = vpack.c.bf16 %v1456, %v1453
        %v1461 = vunpack.c.l.b16 %v1459
        %v1462 = vunpack.c.h.b16 %v1459
        %v1463 = vpack.c.b16 %v1461, %v1461
        %v1464 = vpack.c.b16 %v1462, %v1462
        %v1465 = vld [vmem:[#allocation7] sm:$0x1]
        %v1467 = vlaneseq
        %v1468 = vshrl.u32 %v1467, 7
        %v1469 = vsub.s32 0, %v1468
        %v1470 = vrot.slane %v1465, %v1469
        %v1472 = vadd.f32 %v1397, %v1470
        %v1473 = vld [vmem:[%s1099] sm:$0xf]
        %v1474 = vld [vmem:[%s1099 + $0x4] sm:$0xf]
        %v1475 = vld [vmem:[%s1099 + $0x8] sm:$0xf]
        %v1476 = vld [vmem:[%s1099 + $0xc] sm:$0xf]
        %1477 = vrot.lane.b32.xlu0 %v1463, 120
        %v1478 = vpop.permute.xlu0 %1477
        %1479 = vrot.lane.b32.xlu0 %v1463, 112
        %v1480 = vpop.permute.xlu0 %1479
        %1481 = vrot.lane.b32.xlu0 %v1463, 104
        %v1482 = vpop.permute.xlu0 %1481
        %1483 = vrot.lane.b32.xlu0 %v1463, 96
        %v1484 = vpop.permute.xlu0 %1483
        %vm1485 = vcmask 64512
        %v1487 = vsel %vm1485, %v1463, 0
        %v1490 = vsel %vm1485, %v1484, 0
        %1492 = vmatprep.subr.bf16.mxu0 0
        %1493 = vmatpush1.bf16.xpose.msra.mxu0 %v1490
        %1494 = vmatprep.subr.bf16.mxu0 0
        %1495 = vmatpush1.bf16.xpose.msra.mxu0 0
        %1496 = vmatprep.subr.bf16.mxu0 0
        %1497 = vmatpush1.bf16.xpose.msra.mxu0 0
        %1498 = vmatprep.subr.bf16.mxu0 0
        %1499 = vmatpush1.bf16.xpose.msra.mxu0 0
        %1500 = vmatprep.subr.bf16.mxu0 0
        %1501 = vmatpush1.bf16.xpose.msra.mxu0 0
        %1502 = vmatprep.subr.bf16.mxu0 0
        %1503 = vmatpush1.bf16.xpose.msra.mxu0 0
        %1504 = vmatprep.subr.bf16.mxu0 0
        %1505 = vmatpush1.bf16.xpose.msra.mxu0 0
        %1506 = vmatprep.subr.bf16.mxu0 0
        %1507 = vmatpush1.bf16.xpose.msra.mxu0 0
        %1508 = vmatprep.subr.bf16.mxu0 0
        %1509 = vmatpush1.bf16.xpose.msra.mxu0 0
        %1510 = vmatprep.subr.bf16.mxu0 0
        %1511 = vmatpush1.bf16.xpose.msra.mxu0 0
        %1512 = vmatprep.subr.bf16.mxu0 0
        %1513 = vmatpush1.bf16.xpose.msra.mxu0 0
        %1514 = vmatprep.subr.bf16.mxu0 0
        %1515 = vmatpush1.bf16.xpose.msra.mxu0 0
        %1516 = vmatprep.subr.bf16.mxu0 0
        %1517 = vmatpush1.bf16.xpose.msra.mxu0 0
        %1518 = vmatprep.subr.bf16.mxu0 0
        %1519 = vmatpush1.bf16.xpose.msra.mxu0 0
        %1520 = vmatprep.subr.bf16.mxu0 0
        %1521 = vmatpush1.bf16.xpose.msra.mxu0 0
        %1522 = vmatprep.subr.bf16.mxu0 0
        %1523 = vmatpush1.bf16.xpose.msra.mxu0 0
        %1524 = vmatprep.mubr.bf16.mxu0 0
        %1525 = vmatmul.mubr.bf16.gmra.mrb[0].mxu0 %v1487
        %v1526 = vpop.f32.mrb[0].mxu0
        %v1527 = vadd.f32 %v1472, %v1526
        %v1528 = vpop.f32.mrb[0].mxu0
        %v1529 = vpop.f32.mrb[0].mxu0
        %v1530 = vpop.f32.mrb[0].mxu0
        %1531 = vdwg.mxu0
        %v1532 = vunpack.c.l.b16 %v1478
        %v1533 = vpack.c.b16 %v1532, %v1532
        %1534 = vrot.lane.b32.xlu0 %v1533, 96
        %v1535 = vpop.permute.xlu0 %1534
        %v1537 = vsel %vm1485, %v1478, 0
        %v1540 = vsel %vm1485, %v1535, 0
        %1542 = vmatprep.subr.bf16.mxu0 0
        %1543 = vmatpush1.bf16.xpose.msra.mxu0 %v1540
        %1544 = vmatprep.subr.bf16.mxu0 0
        %1545 = vmatpush1.bf16.xpose.msra.mxu0 0
        %1546 = vmatprep.subr.bf16.mxu0 0
        %1547 = vmatpush1.bf16.xpose.msra.mxu0 0
        %1548 = vmatprep.subr.bf16.mxu0 0
        %1549 = vmatpush1.bf16.xpose.msra.mxu0 0
        %1550 = vmatprep.subr.bf16.mxu0 0
        %1551 = vmatpush1.bf16.xpose.msra.mxu0 0
        %1552 = vmatprep.subr.bf16.mxu0 0
        %1553 = vmatpush1.bf16.xpose.msra.mxu0 0
        %1554 = vmatprep.subr.bf16.mxu0 0
        %1555 = vmatpush1.bf16.xpose.msra.mxu0 0
        %1556 = vmatprep.subr.bf16.mxu0 0
        %1557 = vmatpush1.bf16.xpose.msra.mxu0 0
        %1558 = vmatprep.subr.bf16.mxu0 0
        %1559 = vmatpush1.bf16.xpose.msra.mxu0 0
        %1560 = vmatprep.subr.bf16.mxu0 0
        %1561 = vmatpush1.bf16.xpose.msra.mxu0 0
        %1562 = vmatprep.subr.bf16.mxu0 0
        %1563 = vmatpush1.bf16.xpose.msra.mxu0 0
        %1564 = vmatprep.subr.bf16.mxu0 0
        %1565 = vmatpush1.bf16.xpose.msra.mxu0 0
        %1566 = vmatprep.subr.bf16.mxu0 0
        %1567 = vmatpush1.bf16.xpose.msra.mxu0 0
        %1568 = vmatprep.subr.bf16.mxu0 0
        %1569 = vmatpush1.bf16.xpose.msra.mxu0 0
        %1570 = vmatprep.subr.bf16.mxu0 0
        %1571 = vmatpush1.bf16.xpose.msra.mxu0 0
        %1572 = vmatprep.subr.bf16.mxu0 0
        %1573 = vmatpush1.bf16.xpose.msra.mxu0 0
        %1574 = vmatprep.mubr.bf16.mxu0 0
        %1575 = vmatmul.mubr.bf16.gmra.mrb[0].mxu0 %v1537
        %v1576 = vpop.f32.mrb[0].mxu0
        %v1577 = vadd.f32 %v1472, %v1576
        %v1578 = vpop.f32.mrb[0].mxu0
        %v1579 = vpop.f32.mrb[0].mxu0
        %v1580 = vpop.f32.mrb[0].mxu0
        %1581 = vdwg.mxu0
        %v1582 = vunpack.c.l.b16 %v1480
        %v1583 = vpack.c.b16 %v1582, %v1582
        %1584 = vrot.lane.b32.xlu0 %v1583, 96
        %v1585 = vpop.permute.xlu0 %1584
        %v1587 = vsel %vm1485, %v1480, 0
        %v1590 = vsel %vm1485, %v1585, 0
        %1592 = vmatprep.subr.bf16.mxu0 0
        %1593 = vmatpush1.bf16.xpose.msra.mxu0 %v1590
        %1594 = vmatprep.subr.bf16.mxu0 0
        %1595 = vmatpush1.bf16.xpose.msra.mxu0 0
        %1596 = vmatprep.subr.bf16.mxu0 0
        %1597 = vmatpush1.bf16.xpose.msra.mxu0 0
        %1598 = vmatprep.subr.bf16.mxu0 0
        %1599 = vmatpush1.bf16.xpose.msra.mxu0 0
        %1600 = vmatprep.subr.bf16.mxu0 0
        %1601 = vmatpush1.bf16.xpose.msra.mxu0 0
        %1602 = vmatprep.subr.bf16.mxu0 0
        %1603 = vmatpush1.bf16.xpose.msra.mxu0 0
        %1604 = vmatprep.subr.bf16.mxu0 0
        %1605 = vmatpush1.bf16.xpose.msra.mxu0 0
        %1606 = vmatprep.subr.bf16.mxu0 0
        %1607 = vmatpush1.bf16.xpose.msra.mxu0 0
        %1608 = vmatprep.subr.bf16.mxu0 0
        %1609 = vmatpush1.bf16.xpose.msra.mxu0 0
        %1610 = vmatprep.subr.bf16.mxu0 0
        %1611 = vmatpush1.bf16.xpose.msra.mxu0 0
        %1612 = vmatprep.subr.bf16.mxu0 0
        %1613 = vmatpush1.bf16.xpose.msra.mxu0 0
        %1614 = vmatprep.subr.bf16.mxu0 0
        %1615 = vmatpush1.bf16.xpose.msra.mxu0 0
        %1616 = vmatprep.subr.bf16.mxu0 0
        %1617 = vmatpush1.bf16.xpose.msra.mxu0 0
        %1618 = vmatprep.subr.bf16.mxu0 0
        %1619 = vmatpush1.bf16.xpose.msra.mxu0 0
        %1620 = vmatprep.subr.bf16.mxu0 0
        %1621 = vmatpush1.bf16.xpose.msra.mxu0 0
        %1622 = vmatprep.subr.bf16.mxu0 0
        %1623 = vmatpush1.bf16.xpose.msra.mxu0 0
        %1624 = vmatprep.mubr.bf16.mxu0 0
        %1625 = vmatmul.mubr.bf16.gmra.mrb[0].mxu0 %v1587
        %v1626 = vpop.f32.mrb[0].mxu0
        %v1627 = vadd.f32 %v1472, %v1626
        %v1628 = vpop.f32.mrb[0].mxu0
        %v1629 = vpop.f32.mrb[0].mxu0
        %v1630 = vpop.f32.mrb[0].mxu0
        %1631 = vdwg.mxu0
        %v1632 = vunpack.c.l.b16 %v1482
        %v1633 = vpack.c.b16 %v1632, %v1632
        %1634 = vrot.lane.b32.xlu0 %v1633, 96
        %v1635 = vpop.permute.xlu0 %1634
        %v1637 = vsel %vm1485, %v1482, 0
        %v1640 = vsel %vm1485, %v1635, 0
        %1642 = vmatprep.subr.bf16.mxu0 0
        %1643 = vmatpush1.bf16.xpose.msra.mxu0 %v1640
        %1644 = vmatprep.subr.bf16.mxu0 0
        %1645 = vmatpush1.bf16.xpose.msra.mxu0 0
        %1646 = vmatprep.subr.bf16.mxu0 0
        %1647 = vmatpush1.bf16.xpose.msra.mxu0 0
        %1648 = vmatprep.subr.bf16.mxu0 0
        %1649 = vmatpush1.bf16.xpose.msra.mxu0 0
        %1650 = vmatprep.subr.bf16.mxu0 0
        %1651 = vmatpush1.bf16.xpose.msra.mxu0 0
        %1652 = vmatprep.subr.bf16.mxu0 0
        %1653 = vmatpush1.bf16.xpose.msra.mxu0 0
        %1654 = vmatprep.subr.bf16.mxu0 0
        %1655 = vmatpush1.bf16.xpose.msra.mxu0 0
        %1656 = vmatprep.subr.bf16.mxu0 0
        %1657 = vmatpush1.bf16.xpose.msra.mxu0 0
        %1658 = vmatprep.subr.bf16.mxu0 0
        %1659 = vmatpush1.bf16.xpose.msra.mxu0 0
        %1660 = vmatprep.subr.bf16.mxu0 0
        %1661 = vmatpush1.bf16.xpose.msra.mxu0 0
        %1662 = vmatprep.subr.bf16.mxu0 0
        %1663 = vmatpush1.bf16.xpose.msra.mxu0 0
        %1664 = vmatprep.subr.bf16.mxu0 0
        %1665 = vmatpush1.bf16.xpose.msra.mxu0 0
        %1666 = vmatprep.subr.bf16.mxu0 0
        %1667 = vmatpush1.bf16.xpose.msra.mxu0 0
        %1668 = vmatprep.subr.bf16.mxu0 0
        %1669 = vmatpush1.bf16.xpose.msra.mxu0 0
        %1670 = vmatprep.subr.bf16.mxu0 0
        %1671 = vmatpush1.bf16.xpose.msra.mxu0 0
        %1672 = vmatprep.subr.bf16.mxu0 0
        %1673 = vmatpush1.bf16.xpose.msra.mxu0 0
        %1674 = vmatprep.mubr.bf16.mxu0 0
        %1675 = vmatmul.mubr.bf16.gmra.mrb[0].mxu0 %v1637
        %v1676 = vpop.f32.mrb[0].mxu0
        %v1677 = vadd.f32 %v1472, %v1676
        %v1678 = vpop.f32.mrb[0].mxu0
        %v1679 = vpop.f32.mrb[0].mxu0
        %v1680 = vpop.f32.mrb[0].mxu0
        %1681 = vdwg.mxu0
        %v1682 = vsel %vm1485, %v1527, -inf
        %1683 = vmax.xlane.f32.xlu0 %v1682
        %v1684 = vpop.xlane.xlu0 %1683
        %v1685 = vsel %vm1485, %v1577, -inf
        %1686 = vmax.xlane.f32.xlu0 %v1685
        %v1687 = vpop.xlane.xlu0 %1686
        %v1688 = vsel %vm1485, %v1627, -inf
        %1689 = vmax.xlane.f32.xlu0 %v1688
        %v1690 = vpop.xlane.xlu0 %1689
        %v1691 = vsel %vm1485, %v1677, -inf
        %1692 = vmax.xlane.f32.xlu0 %v1691
        %v1693 = vpop.xlane.xlu0 %1692
        %v1694 = vsub.f32 -inf, %v1684
        %v1695 = vsub.f32 -inf, %v1687
        %v1696 = vsub.f32 -inf, %v1690
        %v1697 = vsub.f32 -inf, %v1693
        %v1698 = vmul.f32 %v1694, 1.442695
        %v1699 = vpow.pop %v1698
        %v1700 = vmul.f32 %v1695, 1.442695
        %v1701 = vpow.pop %v1700
        %v1702 = vmul.f32 %v1696, 1.442695
        %v1703 = vpow.pop %v1702
        %v1704 = vmul.f32 %v1697, 1.442695
        %v1705 = vpow.pop %v1704
        %v1706 = vsub.f32 %v1527, %v1684
        %v1707 = vsub.f32 %v1577, %v1687
        %v1708 = vsub.f32 %v1627, %v1690
        %v1709 = vsub.f32 %v1677, %v1693
        %v1710 = vmul.f32 %v1706, 1.442695
        %v1711 = vpow.pop %v1710
        %v1712 = vmul.f32 %v1707, 1.442695
        %v1713 = vpow.pop %v1712
        %v1714 = vmul.f32 %v1708, 1.442695
        %v1715 = vpow.pop %v1714
        %v1716 = vmul.f32 %v1709, 1.442695
        %v1717 = vpow.pop %v1716
        %v1718 = vmul.f32 %v1699, 0.0
        %v1719 = vmul.f32 %v1701, 0.0
        %v1720 = vmul.f32 %v1703, 0.0
        %v1721 = vmul.f32 %v1705, 0.0
        %v1722 = vsel %vm1485, %v1711, 0.0
        %1723 = vadd.xlane.f32.xlu0 %v1722
        %v1724 = vpop.xlane.xlu0 %1723
        %v1725 = vsel %vm1485, %v1713, 0.0
        %1726 = vadd.xlane.f32.xlu0 %v1725
        %v1727 = vpop.xlane.xlu0 %1726
        %v1728 = vsel %vm1485, %v1715, 0.0
        %1729 = vadd.xlane.f32.xlu0 %v1728
        %v1730 = vpop.xlane.xlu0 %1729
        %v1731 = vsel %vm1485, %v1717, 0.0
        %1732 = vadd.xlane.f32.xlu0 %v1731
        %v1733 = vpop.xlane.xlu0 %1732
        %v1734 = vadd.f32 %v1718, %v1724
        %v1735 = vadd.f32 %v1719, %v1727
        %v1736 = vadd.f32 %v1720, %v1730
        %v1737 = vadd.f32 %v1721, %v1733
        %v1738 = vpack.c.bf16 %v1711, %v1711
        %v1739 = vpack.c.bf16 %v1713, %v1713
        %v1740 = vpack.c.bf16 %v1715, %v1715
        %v1741 = vpack.c.bf16 %v1717, %v1717
        %1742 = vrot.lane.b32.xlu0 %v1463, 64
        %v1743 = vpop.permute.xlu0 %1742
        %v1745 = vsel %vm1485, %v1738, 0
        %vm1747 = vcmask 1043456
        %v1749 = vsel %vm1747, %v1743, 0
        %1751 = vmatprep.subr.bf16.mxu0 0
        %1752 = vmatpush1.bf16.msra.mxu0 %v1749
        %1753 = vmatprep.subr.bf16.mxu0 0
        %1754 = vmatpush1.bf16.msra.mxu0 0
        %1755 = vmatprep.subr.bf16.mxu0 0
        %1756 = vmatpush1.bf16.msra.mxu0 0
        %1757 = vmatprep.subr.bf16.mxu0 0
        %1758 = vmatpush1.bf16.msra.mxu0 0
        %1759 = vmatprep.subr.bf16.mxu0 0
        %1760 = vmatpush1.bf16.msra.mxu0 0
        %1761 = vmatprep.subr.bf16.mxu0 0
        %1762 = vmatpush1.bf16.msra.mxu0 0
        %1763 = vmatprep.subr.bf16.mxu0 0
        %1764 = vmatpush1.bf16.msra.mxu0 0
        %1765 = vmatprep.subr.bf16.mxu0 0
        %1766 = vmatpush1.bf16.msra.mxu0 0
        %1767 = vmatprep.subr.bf16.mxu0 0
        %1768 = vmatpush1.bf16.msra.mxu0 0
        %1769 = vmatprep.subr.bf16.mxu0 0
        %1770 = vmatpush1.bf16.msra.mxu0 0
        %1771 = vmatprep.subr.bf16.mxu0 0
        %1772 = vmatpush1.bf16.msra.mxu0 0
        %1773 = vmatprep.subr.bf16.mxu0 0
        %1774 = vmatpush1.bf16.msra.mxu0 0
        %1775 = vmatprep.subr.bf16.mxu0 0
        %1776 = vmatpush1.bf16.msra.mxu0 0
        %1777 = vmatprep.subr.bf16.mxu0 0
        %1778 = vmatpush1.bf16.msra.mxu0 0
        %1779 = vmatprep.subr.bf16.mxu0 0
        %1780 = vmatpush1.bf16.msra.mxu0 0
        %1781 = vmatprep.subr.bf16.mxu0 0
        %1782 = vmatpush1.bf16.msra.mxu0 0
        %1783 = vmatprep.mubr.bf16.mxu0 0
        %1784 = vmatmul.mubr.bf16.gmra.mrb[0].mxu0 %v1745
        %v1785 = vpop.f32.mrb[0].mxu0
        %v1786 = vadd.f32 0.0, %v1785
        %v1787 = vpop.f32.mrb[0].mxu0
        %v1788 = vpop.f32.mrb[0].mxu0
        %v1789 = vpop.f32.mrb[0].mxu0
        %1790 = vdwg.mxu0
        %1791 = vrot.lane.b32.xlu0 %v1533, 64
        %v1792 = vpop.permute.xlu0 %1791
        %v1794 = vsel %vm1485, %v1739, 0
        %v1797 = vsel %vm1747, %v1792, 0
        %1799 = vmatprep.subr.bf16.mxu0 0
        %1800 = vmatpush1.bf16.msra.mxu0 %v1797
        %1801 = vmatprep.subr.bf16.mxu0 0
        %1802 = vmatpush1.bf16.msra.mxu0 0
        %1803 = vmatprep.subr.bf16.mxu0 0
        %1804 = vmatpush1.bf16.msra.mxu0 0
        %1805 = vmatprep.subr.bf16.mxu0 0
        %1806 = vmatpush1.bf16.msra.mxu0 0
        %1807 = vmatprep.subr.bf16.mxu0 0
        %1808 = vmatpush1.bf16.msra.mxu0 0
        %1809 = vmatprep.subr.bf16.mxu0 0
        %1810 = vmatpush1.bf16.msra.mxu0 0
        %1811 = vmatprep.subr.bf16.mxu0 0
        %1812 = vmatpush1.bf16.msra.mxu0 0
        %1813 = vmatprep.subr.bf16.mxu0 0
        %1814 = vmatpush1.bf16.msra.mxu0 0
        %1815 = vmatprep.subr.bf16.mxu0 0
        %1816 = vmatpush1.bf16.msra.mxu0 0
        %1817 = vmatprep.subr.bf16.mxu0 0
        %1818 = vmatpush1.bf16.msra.mxu0 0
        %1819 = vmatprep.subr.bf16.mxu0 0
        %1820 = vmatpush1.bf16.msra.mxu0 0
        %1821 = vmatprep.subr.bf16.mxu0 0
        %1822 = vmatpush1.bf16.msra.mxu0 0
        %1823 = vmatprep.subr.bf16.mxu0 0
        %1824 = vmatpush1.bf16.msra.mxu0 0
        %1825 = vmatprep.subr.bf16.mxu0 0
        %1826 = vmatpush1.bf16.msra.mxu0 0
        %1827 = vmatprep.subr.bf16.mxu0 0
        %1828 = vmatpush1.bf16.msra.mxu0 0
        %1829 = vmatprep.subr.bf16.mxu0 0
        %1830 = vmatpush1.bf16.msra.mxu0 0
        %1831 = vmatprep.mubr.bf16.mxu0 0
        %1832 = vmatmul.mubr.bf16.gmra.mrb[0].mxu0 %v1794
        %v1833 = vpop.f32.mrb[0].mxu0
        %v1834 = vadd.f32 0.0, %v1833
        %v1835 = vpop.f32.mrb[0].mxu0
        %v1836 = vpop.f32.mrb[0].mxu0
        %v1837 = vpop.f32.mrb[0].mxu0
        %1838 = vdwg.mxu0
        %1839 = vrot.lane.b32.xlu0 %v1583, 64
        %v1840 = vpop.permute.xlu0 %1839
        %v1842 = vsel %vm1485, %v1740, 0
        %v1845 = vsel %vm1747, %v1840, 0
        %1847 = vmatprep.subr.bf16.mxu0 0
        %1848 = vmatpush1.bf16.msra.mxu0 %v1845
        %1849 = vmatprep.subr.bf16.mxu0 0
        %1850 = vmatpush1.bf16.msra.mxu0 0
        %1851 = vmatprep.subr.bf16.mxu0 0
        %1852 = vmatpush1.bf16.msra.mxu0 0
        %1853 = vmatprep.subr.bf16.mxu0 0
        %1854 = vmatpush1.bf16.msra.mxu0 0
        %1855 = vmatprep.subr.bf16.mxu0 0
        %1856 = vmatpush1.bf16.msra.mxu0 0
        %1857 = vmatprep.subr.bf16.mxu0 0
        %1858 = vmatpush1.bf16.msra.mxu0 0
        %1859 = vmatprep.subr.bf16.mxu0 0
        %1860 = vmatpush1.bf16.msra.mxu0 0
        %1861 = vmatprep.subr.bf16.mxu0 0
        %1862 = vmatpush1.bf16.msra.mxu0 0
        %1863 = vmatprep.subr.bf16.mxu0 0
        %1864 = vmatpush1.bf16.msra.mxu0 0
        %1865 = vmatprep.subr.bf16.mxu0 0
        %1866 = vmatpush1.bf16.msra.mxu0 0
        %1867 = vmatprep.subr.bf16.mxu0 0
        %1868 = vmatpush1.bf16.msra.mxu0 0
        %1869 = vmatprep.subr.bf16.mxu0 0
        %1870 = vmatpush1.bf16.msra.mxu0 0
        %1871 = vmatprep.subr.bf16.mxu0 0
        %1872 = vmatpush1.bf16.msra.mxu0 0
        %1873 = vmatprep.subr.bf16.mxu0 0
        %1874 = vmatpush1.bf16.msra.mxu0 0
        %1875 = vmatprep.subr.bf16.mxu0 0
        %1876 = vmatpush1.bf16.msra.mxu0 0
        %1877 = vmatprep.subr.bf16.mxu0 0
        %1878 = vmatpush1.bf16.msra.mxu0 0
        %1879 = vmatprep.mubr.bf16.mxu0 0
        %1880 = vmatmul.mubr.bf16.gmra.mrb[0].mxu0 %v1842
        %v1881 = vpop.f32.mrb[0].mxu0
        %v1882 = vadd.f32 0.0, %v1881
        %v1883 = vpop.f32.mrb[0].mxu0
        %v1884 = vpop.f32.mrb[0].mxu0
        %v1885 = vpop.f32.mrb[0].mxu0
        %1886 = vdwg.mxu0
        %1887 = vrot.lane.b32.xlu0 %v1633, 64
        %v1888 = vpop.permute.xlu0 %1887
        %v1890 = vsel %vm1485, %v1741, 0
        %v1893 = vsel %vm1747, %v1888, 0
        %1895 = vmatprep.subr.bf16.mxu0 0
        %1896 = vmatpush1.bf16.msra.mxu0 %v1893
        %1897 = vmatprep.subr.bf16.mxu0 0
        %1898 = vmatpush1.bf16.msra.mxu0 0
        %1899 = vmatprep.subr.bf16.mxu0 0
        %1900 = vmatpush1.bf16.msra.mxu0 0
        %1901 = vmatprep.subr.bf16.mxu0 0
        %1902 = vmatpush1.bf16.msra.mxu0 0
        %1903 = vmatprep.subr.bf16.mxu0 0
        %1904 = vmatpush1.bf16.msra.mxu0 0
        %1905 = vmatprep.subr.bf16.mxu0 0
        %1906 = vmatpush1.bf16.msra.mxu0 0
        %1907 = vmatprep.subr.bf16.mxu0 0
        %1908 = vmatpush1.bf16.msra.mxu0 0
        %1909 = vmatprep.subr.bf16.mxu0 0
        %1910 = vmatpush1.bf16.msra.mxu0 0
        %1911 = vmatprep.subr.bf16.mxu0 0
        %1912 = vmatpush1.bf16.msra.mxu0 0
        %1913 = vmatprep.subr.bf16.mxu0 0
        %1914 = vmatpush1.bf16.msra.mxu0 0
        %1915 = vmatprep.subr.bf16.mxu0 0
        %1916 = vmatpush1.bf16.msra.mxu0 0
        %1917 = vmatprep.subr.bf16.mxu0 0
        %1918 = vmatpush1.bf16.msra.mxu0 0
        %1919 = vmatprep.subr.bf16.mxu0 0
        %1920 = vmatpush1.bf16.msra.mxu0 0
        %1921 = vmatprep.subr.bf16.mxu0 0
        %1922 = vmatpush1.bf16.msra.mxu0 0
        %1923 = vmatprep.subr.bf16.mxu0 0
        %1924 = vmatpush1.bf16.msra.mxu0 0
        %1925 = vmatprep.subr.bf16.mxu0 0
        %1926 = vmatpush1.bf16.msra.mxu0 0
        %1927 = vmatprep.mubr.bf16.mxu0 0
        %1928 = vmatmul.mubr.bf16.gmra.mrb[0].mxu0 %v1890
        %v1929 = vpop.f32.mrb[0].mxu0
        %v1930 = vadd.f32 0.0, %v1929
        %v1931 = vpop.f32.mrb[0].mxu0
        %v1932 = vpop.f32.mrb[0].mxu0
        %v1933 = vpop.f32.mrb[0].mxu0
        %1934 = vdwg.mxu0
        %v1935 = vadd.f32 %v1718, %v1786
        %v1936 = vadd.f32 %v1719, %v1834
        %v1937 = vadd.f32 %v1720, %v1882
        %v1938 = vadd.f32 %v1721, %v1930
        %v1939 = vrcp.pop %v1734
        %v1940 = vrcp.pop %v1735
        %v1941 = vrcp.pop %v1736
        %v1942 = vrcp.pop %v1737
        %v1943 = vmul.f32 %v1935, %v1939
        %v1944 = vmul.f32 %v1936, %v1940
        %v1945 = vmul.f32 %v1937, %v1941
        %v1946 = vmul.f32 %v1938, %v1942
        %1948 = vrot.lane.b32.xlu0 %v1944, 8
        %v1949 = vpop.permute.xlu0 %1948
        %1952 = vrot.lane.b32.xlu0 %v1945, 16
        %v1953 = vpop.permute.xlu0 %1952
        %1956 = vrot.lane.b32.xlu0 %v1946, 24
        %v1957 = vpop.permute.xlu0 %1956
        %v1959 = vsel %vm1485, %v1943, %v1949
        %vm1960 = vcmask 130048
        %v1961 = vsel %vm1960, %v1959, %v1953
        %vm1962 = vcmask 195584
        %v1963 = vsel %vm1962, %v1961, %v1957
        %v1964 = vpack.c.bf16 %v1963, %v1963
        %v1969 = vunpack.c.l.b16 %v1473
        %v1970 = vunpack.c.l.b16 %v1474
        %v1971 = vunpack.c.l.b16 %v1475
        %v1972 = vunpack.c.l.b16 %v1476
        %v1973 = vpack.c.b16 %v1970, %v1969
        %v1974 = vpack.c.b16 %v1972, %v1971
        %v1978 = vsel %vm1414, %v1964, 0
        %1980 = vmatprep.subr.bf16.mxu0 0
        %1981 = vmatpush1.bf16.msra.mxu0 %v1973
        %1982 = vmatprep.subr.bf16.mxu0 0
        %1983 = vmatpush1.bf16.msra.mxu0 %v1974
        %1984 = vmatprep.subr.bf16.mxu0 0
        %1985 = vmatpush1.bf16.msra.mxu0 0
        %1986 = vmatprep.subr.bf16.mxu0 0
        %1987 = vmatpush1.bf16.msra.mxu0 0
        %1988 = vmatprep.subr.bf16.mxu0 0
        %1989 = vmatpush1.bf16.msra.mxu0 0
        %1990 = vmatprep.subr.bf16.mxu0 0
        %1991 = vmatpush1.bf16.msra.mxu0 0
        %1992 = vmatprep.subr.bf16.mxu0 0
        %1993 = vmatpush1.bf16.msra.mxu0 0
        %1994 = vmatprep.subr.bf16.mxu0 0
        %1995 = vmatpush1.bf16.msra.mxu0 0
        %1996 = vmatprep.subr.bf16.mxu0 0
        %1997 = vmatpush1.bf16.msra.mxu0 0
        %1998 = vmatprep.subr.bf16.mxu0 0
        %1999 = vmatpush1.bf16.msra.mxu0 0
        %2000 = vmatprep.subr.bf16.mxu0 0
        %2001 = vmatpush1.bf16.msra.mxu0 0
        %2002 = vmatprep.subr.bf16.mxu0 0
        %2003 = vmatpush1.bf16.msra.mxu0 0
        %2004 = vmatprep.subr.bf16.mxu0 0
        %2005 = vmatpush1.bf16.msra.mxu0 0
        %2006 = vmatprep.subr.bf16.mxu0 0
        %2007 = vmatpush1.bf16.msra.mxu0 0
        %2008 = vmatprep.subr.bf16.mxu0 0
        %2009 = vmatpush1.bf16.msra.mxu0 0
        %2010 = vmatprep.subr.bf16.mxu0 0
        %2011 = vmatpush1.bf16.msra.mxu0 0
        %2012 = vmatprep.mubr.bf16.mxu0 0
        %2013 = vmatmul.mubr.bf16.gmra.mrb[0].mxu0 %v1978
        %v2014 = vpop.f32.mrb[0].mxu0
        %v2015 = vadd.f32 0.0, %v2014
        %v2016 = vpop.f32.mrb[0].mxu0
        %v2017 = vpop.f32.mrb[0].mxu0
        %v2018 = vpop.f32.mrb[0].mxu0
        %2019 = vdwg.mxu0
        %s2020 = scalar_lea.vmem [#allocation7], 1
        %v2021 = vld [vmem:[%s2020] sm:$0x1]
        %v2023 = vlaneseq
        %v2024 = vshrl.u32 %v2023, 7
        %v2025 = vsub.s32 0, %v2024
        %v2026 = vrot.slane %v2021, %v2025
        %v2028 = vadd.f32 %v1397, %v2026
        %v2029 = vld [vmem:[%s1099] sm:$0xf]
        %v2030 = vld [vmem:[%s1099 + $0x4] sm:$0xf]
        %v2031 = vld [vmem:[%s1099 + $0x8] sm:$0xf]
        %v2032 = vld [vmem:[%s1099 + $0xc] sm:$0xf]
        %2033 = vrot.lane.b32.xlu0 %v1464, 120
        %v2034 = vpop.permute.xlu0 %2033
        %2035 = vrot.lane.b32.xlu0 %v1464, 112
        %v2036 = vpop.permute.xlu0 %2035
        %2037 = vrot.lane.b32.xlu0 %v1464, 104
        %v2038 = vpop.permute.xlu0 %2037
        %2039 = vrot.lane.b32.xlu0 %v1464, 96
        %v2040 = vpop.permute.xlu0 %2039
        %v2042 = vsel %vm1485, %v1464, 0
        %v2045 = vsel %vm1485, %v2040, 0
        %2047 = vmatprep.subr.bf16.mxu0 0
        %2048 = vmatpush1.bf16.xpose.msra.mxu0 %v2045
        %2049 = vmatprep.subr.bf16.mxu0 0
        %2050 = vmatpush1.bf16.xpose.msra.mxu0 0
        %2051 = vmatprep.subr.bf16.mxu0 0
        %2052 = vmatpush1.bf16.xpose.msra.mxu0 0
        %2053 = vmatprep.subr.bf16.mxu0 0
        %2054 = vmatpush1.bf16.xpose.msra.mxu0 0
        %2055 = vmatprep.subr.bf16.mxu0 0
        %2056 = vmatpush1.bf16.xpose.msra.mxu0 0
        %2057 = vmatprep.subr.bf16.mxu0 0
        %2058 = vmatpush1.bf16.xpose.msra.mxu0 0
        %2059 = vmatprep.subr.bf16.mxu0 0
        %2060 = vmatpush1.bf16.xpose.msra.mxu0 0
        %2061 = vmatprep.subr.bf16.mxu0 0
        %2062 = vmatpush1.bf16.xpose.msra.mxu0 0
        %2063 = vmatprep.subr.bf16.mxu0 0
        %2064 = vmatpush1.bf16.xpose.msra.mxu0 0
        %2065 = vmatprep.subr.bf16.mxu0 0
        %2066 = vmatpush1.bf16.xpose.msra.mxu0 0
        %2067 = vmatprep.subr.bf16.mxu0 0
        %2068 = vmatpush1.bf16.xpose.msra.mxu0 0
        %2069 = vmatprep.subr.bf16.mxu0 0
        %2070 = vmatpush1.bf16.xpose.msra.mxu0 0
        %2071 = vmatprep.subr.bf16.mxu0 0
        %2072 = vmatpush1.bf16.xpose.msra.mxu0 0
        %2073 = vmatprep.subr.bf16.mxu0 0
        %2074 = vmatpush1.bf16.xpose.msra.mxu0 0
        %2075 = vmatprep.subr.bf16.mxu0 0
        %2076 = vmatpush1.bf16.xpose.msra.mxu0 0
        %2077 = vmatprep.subr.bf16.mxu0 0
        %2078 = vmatpush1.bf16.xpose.msra.mxu0 0
        %2079 = vmatprep.mubr.bf16.mxu0 0
        %2080 = vmatmul.mubr.bf16.gmra.mrb[0].mxu0 %v2042
        %v2081 = vpop.f32.mrb[0].mxu0
        %v2082 = vadd.f32 %v2028, %v2081
        %v2083 = vpop.f32.mrb[0].mxu0
        %v2084 = vpop.f32.mrb[0].mxu0
        %v2085 = vpop.f32.mrb[0].mxu0
        %2086 = vdwg.mxu0
        %v2087 = vunpack.c.l.b16 %v2034
        %v2088 = vpack.c.b16 %v2087, %v2087
        %2089 = vrot.lane.b32.xlu0 %v2088, 96
        %v2090 = vpop.permute.xlu0 %2089
        %v2092 = vsel %vm1485, %v2034, 0
        %v2095 = vsel %vm1485, %v2090, 0
        %2097 = vmatprep.subr.bf16.mxu0 0
        %2098 = vmatpush1.bf16.xpose.msra.mxu0 %v2095
        %2099 = vmatprep.subr.bf16.mxu0 0
        %2100 = vmatpush1.bf16.xpose.msra.mxu0 0
        %2101 = vmatprep.subr.bf16.mxu0 0
        %2102 = vmatpush1.bf16.xpose.msra.mxu0 0
        %2103 = vmatprep.subr.bf16.mxu0 0
        %2104 = vmatpush1.bf16.xpose.msra.mxu0 0
        %2105 = vmatprep.subr.bf16.mxu0 0
        %2106 = vmatpush1.bf16.xpose.msra.mxu0 0
        %2107 = vmatprep.subr.bf16.mxu0 0
        %2108 = vmatpush1.bf16.xpose.msra.mxu0 0
        %2109 = vmatprep.subr.bf16.mxu0 0
        %2110 = vmatpush1.bf16.xpose.msra.mxu0 0
        %2111 = vmatprep.subr.bf16.mxu0 0
        %2112 = vmatpush1.bf16.xpose.msra.mxu0 0
        %2113 = vmatprep.subr.bf16.mxu0 0
        %2114 = vmatpush1.bf16.xpose.msra.mxu0 0
        %2115 = vmatprep.subr.bf16.mxu0 0
        %2116 = vmatpush1.bf16.xpose.msra.mxu0 0
        %2117 = vmatprep.subr.bf16.mxu0 0
        %2118 = vmatpush1.bf16.xpose.msra.mxu0 0
        %2119 = vmatprep.subr.bf16.mxu0 0
        %2120 = vmatpush1.bf16.xpose.msra.mxu0 0
        %2121 = vmatprep.subr.bf16.mxu0 0
        %2122 = vmatpush1.bf16.xpose.msra.mxu0 0
        %2123 = vmatprep.subr.bf16.mxu0 0
        %2124 = vmatpush1.bf16.xpose.msra.mxu0 0
        %2125 = vmatprep.subr.bf16.mxu0 0
        %2126 = vmatpush1.bf16.xpose.msra.mxu0 0
        %2127 = vmatprep.subr.bf16.mxu0 0
        %2128 = vmatpush1.bf16.xpose.msra.mxu0 0
        %2129 = vmatprep.mubr.bf16.mxu0 0
        %2130 = vmatmul.mubr.bf16.gmra.mrb[0].mxu0 %v2092
        %v2131 = vpop.f32.mrb[0].mxu0
        %v2132 = vadd.f32 %v2028, %v2131
        %v2133 = vpop.f32.mrb[0].mxu0
        %v2134 = vpop.f32.mrb[0].mxu0
        %v2135 = vpop.f32.mrb[0].mxu0
        %2136 = vdwg.mxu0
        %v2137 = vunpack.c.l.b16 %v2036
        %v2138 = vpack.c.b16 %v2137, %v2137
        %2139 = vrot.lane.b32.xlu0 %v2138, 96
        %v2140 = vpop.permute.xlu0 %2139
        %v2142 = vsel %vm1485, %v2036, 0
        %v2145 = vsel %vm1485, %v2140, 0
        %2147 = vmatprep.subr.bf16.mxu0 0
        %2148 = vmatpush1.bf16.xpose.msra.mxu0 %v2145
        %2149 = vmatprep.subr.bf16.mxu0 0
        %2150 = vmatpush1.bf16.xpose.msra.mxu0 0
        %2151 = vmatprep.subr.bf16.mxu0 0
        %2152 = vmatpush1.bf16.xpose.msra.mxu0 0
        %2153 = vmatprep.subr.bf16.mxu0 0
        %2154 = vmatpush1.bf16.xpose.msra.mxu0 0
        %2155 = vmatprep.subr.bf16.mxu0 0
        %2156 = vmatpush1.bf16.xpose.msra.mxu0 0
        %2157 = vmatprep.subr.bf16.mxu0 0
        %2158 = vmatpush1.bf16.xpose.msra.mxu0 0
        %2159 = vmatprep.subr.bf16.mxu0 0
        %2160 = vmatpush1.bf16.xpose.msra.mxu0 0
        %2161 = vmatprep.subr.bf16.mxu0 0
        %2162 = vmatpush1.bf16.xpose.msra.mxu0 0
        %2163 = vmatprep.subr.bf16.mxu0 0
        %2164 = vmatpush1.bf16.xpose.msra.mxu0 0
        %2165 = vmatprep.subr.bf16.mxu0 0
        %2166 = vmatpush1.bf16.xpose.msra.mxu0 0
        %2167 = vmatprep.subr.bf16.mxu0 0
        %2168 = vmatpush1.bf16.xpose.msra.mxu0 0
        %2169 = vmatprep.subr.bf16.mxu0 0
        %2170 = vmatpush1.bf16.xpose.msra.mxu0 0
        %2171 = vmatprep.subr.bf16.mxu0 0
        %2172 = vmatpush1.bf16.xpose.msra.mxu0 0
        %2173 = vmatprep.subr.bf16.mxu0 0
        %2174 = vmatpush1.bf16.xpose.msra.mxu0 0
        %2175 = vmatprep.subr.bf16.mxu0 0
        %2176 = vmatpush1.bf16.xpose.msra.mxu0 0
        %2177 = vmatprep.subr.bf16.mxu0 0
        %2178 = vmatpush1.bf16.xpose.msra.mxu0 0
        %2179 = vmatprep.mubr.bf16.mxu0 0
        %2180 = vmatmul.mubr.bf16.gmra.mrb[0].mxu0 %v2142
        %v2181 = vpop.f32.mrb[0].mxu0
        %v2182 = vadd.f32 %v2028, %v2181
        %v2183 = vpop.f32.mrb[0].mxu0
        %v2184 = vpop.f32.mrb[0].mxu0
        %v2185 = vpop.f32.mrb[0].mxu0
        %2186 = vdwg.mxu0
        %v2187 = vunpack.c.l.b16 %v2038
        %v2188 = vpack.c.b16 %v2187, %v2187
        %2189 = vrot.lane.b32.xlu0 %v2188, 96
        %v2190 = vpop.permute.xlu0 %2189
        %v2192 = vsel %vm1485, %v2038, 0
        %v2195 = vsel %vm1485, %v2190, 0
        %2197 = vmatprep.subr.bf16.mxu0 0
        %2198 = vmatpush1.bf16.xpose.msra.mxu0 %v2195
        %2199 = vmatprep.subr.bf16.mxu0 0
        %2200 = vmatpush1.bf16.xpose.msra.mxu0 0
        %2201 = vmatprep.subr.bf16.mxu0 0
        %2202 = vmatpush1.bf16.xpose.msra.mxu0 0
        %2203 = vmatprep.subr.bf16.mxu0 0
        %2204 = vmatpush1.bf16.xpose.msra.mxu0 0
        %2205 = vmatprep.subr.bf16.mxu0 0
        %2206 = vmatpush1.bf16.xpose.msra.mxu0 0
        %2207 = vmatprep.subr.bf16.mxu0 0
        %2208 = vmatpush1.bf16.xpose.msra.mxu0 0
        %2209 = vmatprep.subr.bf16.mxu0 0
        %2210 = vmatpush1.bf16.xpose.msra.mxu0 0
        %2211 = vmatprep.subr.bf16.mxu0 0
        %2212 = vmatpush1.bf16.xpose.msra.mxu0 0
        %2213 = vmatprep.subr.bf16.mxu0 0
        %2214 = vmatpush1.bf16.xpose.msra.mxu0 0
        %2215 = vmatprep.subr.bf16.mxu0 0
        %2216 = vmatpush1.bf16.xpose.msra.mxu0 0
        %2217 = vmatprep.subr.bf16.mxu0 0
        %2218 = vmatpush1.bf16.xpose.msra.mxu0 0
        %2219 = vmatprep.subr.bf16.mxu0 0
        %2220 = vmatpush1.bf16.xpose.msra.mxu0 0
        %2221 = vmatprep.subr.bf16.mxu0 0
        %2222 = vmatpush1.bf16.xpose.msra.mxu0 0
        %2223 = vmatprep.subr.bf16.mxu0 0
        %2224 = vmatpush1.bf16.xpose.msra.mxu0 0
        %2225 = vmatprep.subr.bf16.mxu0 0
        %2226 = vmatpush1.bf16.xpose.msra.mxu0 0
        %2227 = vmatprep.subr.bf16.mxu0 0
        %2228 = vmatpush1.bf16.xpose.msra.mxu0 0
        %2229 = vmatprep.mubr.bf16.mxu0 0
        %2230 = vmatmul.mubr.bf16.gmra.mrb[0].mxu0 %v2192
        %v2231 = vpop.f32.mrb[0].mxu0
        %v2232 = vadd.f32 %v2028, %v2231
        %v2233 = vpop.f32.mrb[0].mxu0
        %v2234 = vpop.f32.mrb[0].mxu0
        %v2235 = vpop.f32.mrb[0].mxu0
        %2236 = vdwg.mxu0
        %v2237 = vsel %vm1485, %v2082, -inf
        %2238 = vmax.xlane.f32.xlu0 %v2237
        %v2239 = vpop.xlane.xlu0 %2238
        %v2240 = vsel %vm1485, %v2132, -inf
        %2241 = vmax.xlane.f32.xlu0 %v2240
        %v2242 = vpop.xlane.xlu0 %2241
        %v2243 = vsel %vm1485, %v2182, -inf
        %2244 = vmax.xlane.f32.xlu0 %v2243
        %v2245 = vpop.xlane.xlu0 %2244
        %v2246 = vsel %vm1485, %v2232, -inf
        %2247 = vmax.xlane.f32.xlu0 %v2246
        %v2248 = vpop.xlane.xlu0 %2247
        %v2249 = vsub.f32 -inf, %v2239
        %v2250 = vsub.f32 -inf, %v2242
        %v2251 = vsub.f32 -inf, %v2245
        %v2252 = vsub.f32 -inf, %v2248
        %v2253 = vmul.f32 %v2249, 1.442695
        %v2254 = vpow.pop %v2253
        %v2255 = vmul.f32 %v2250, 1.442695
        %v2256 = vpow.pop %v2255
        %v2257 = vmul.f32 %v2251, 1.442695
        %v2258 = vpow.pop %v2257
        %v2259 = vmul.f32 %v2252, 1.442695
        %v2260 = vpow.pop %v2259
        %v2261 = vsub.f32 %v2082, %v2239
        %v2262 = vsub.f32 %v2132, %v2242
        %v2263 = vsub.f32 %v2182, %v2245
        %v2264 = vsub.f32 %v2232, %v2248
        %v2265 = vmul.f32 %v2261, 1.442695
        %v2266 = vpow.pop %v2265
        %v2267 = vmul.f32 %v2262, 1.442695
        %v2268 = vpow.pop %v2267
        %v2269 = vmul.f32 %v2263, 1.442695
        %v2270 = vpow.pop %v2269
        %v2271 = vmul.f32 %v2264, 1.442695
        %v2272 = vpow.pop %v2271
        %v2273 = vmul.f32 %v2254, 0.0
        %v2274 = vmul.f32 %v2256, 0.0
        %v2275 = vmul.f32 %v2258, 0.0
        %v2276 = vmul.f32 %v2260, 0.0
        %v2277 = vsel %vm1485, %v2266, 0.0
        %2278 = vadd.xlane.f32.xlu0 %v2277
        %v2279 = vpop.xlane.xlu0 %2278
        %v2280 = vsel %vm1485, %v2268, 0.0
        %2281 = vadd.xlane.f32.xlu0 %v2280
        %v2282 = vpop.xlane.xlu0 %2281
        %v2283 = vsel %vm1485, %v2270, 0.0
        %2284 = vadd.xlane.f32.xlu0 %v2283
        %v2285 = vpop.xlane.xlu0 %2284
        %v2286 = vsel %vm1485, %v2272, 0.0
        %2287 = vadd.xlane.f32.xlu0 %v2286
        %v2288 = vpop.xlane.xlu0 %2287
        %v2289 = vadd.f32 %v2273, %v2279
        %v2290 = vadd.f32 %v2274, %v2282
        %v2291 = vadd.f32 %v2275, %v2285
        %v2292 = vadd.f32 %v2276, %v2288
        %v2293 = vpack.c.bf16 %v2266, %v2266
        %v2294 = vpack.c.bf16 %v2268, %v2268
        %v2295 = vpack.c.bf16 %v2270, %v2270
        %v2296 = vpack.c.bf16 %v2272, %v2272
        %2297 = vrot.lane.b32.xlu0 %v1464, 64
        %v2298 = vpop.permute.xlu0 %2297
        %v2300 = vsel %vm1485, %v2293, 0
        %v2303 = vsel %vm1747, %v2298, 0
        %2305 = vmatprep.subr.bf16.mxu0 0
        %2306 = vmatpush1.bf16.msra.mxu0 %v2303
        %2307 = vmatprep.subr.bf16.mxu0 0
        %2308 = vmatpush1.bf16.msra.mxu0 0
        %2309 = vmatprep.subr.bf16.mxu0 0
        %2310 = vmatpush1.bf16.msra.mxu0 0
        %2311 = vmatprep.subr.bf16.mxu0 0
        %2312 = vmatpush1.bf16.msra.mxu0 0
        %2313 = vmatprep.subr.bf16.mxu0 0
        %2314 = vmatpush1.bf16.msra.mxu0 0
        %2315 = vmatprep.subr.bf16.mxu0 0
        %2316 = vmatpush1.bf16.msra.mxu0 0
        %2317 = vmatprep.subr.bf16.mxu0 0
        %2318 = vmatpush1.bf16.msra.mxu0 0
        %2319 = vmatprep.subr.bf16.mxu0 0
        %2320 = vmatpush1.bf16.msra.mxu0 0
        %2321 = vmatprep.subr.bf16.mxu0 0
        %2322 = vmatpush1.bf16.msra.mxu0 0
        %2323 = vmatprep.subr.bf16.mxu0 0
        %2324 = vmatpush1.bf16.msra.mxu0 0
        %2325 = vmatprep.subr.bf16.mxu0 0
        %2326 = vmatpush1.bf16.msra.mxu0 0
        %2327 = vmatprep.subr.bf16.mxu0 0
        %2328 = vmatpush1.bf16.msra.mxu0 0
        %2329 = vmatprep.subr.bf16.mxu0 0
        %2330 = vmatpush1.bf16.msra.mxu0 0
        %2331 = vmatprep.subr.bf16.mxu0 0
        %2332 = vmatpush1.bf16.msra.mxu0 0
        %2333 = vmatprep.subr.bf16.mxu0 0
        %2334 = vmatpush1.bf16.msra.mxu0 0
        %2335 = vmatprep.subr.bf16.mxu0 0
        %2336 = vmatpush1.bf16.msra.mxu0 0
        %2337 = vmatprep.mubr.bf16.mxu0 0
        %2338 = vmatmul.mubr.bf16.gmra.mrb[0].mxu0 %v2300
        %v2339 = vpop.f32.mrb[0].mxu0
        %v2340 = vadd.f32 0.0, %v2339
        %v2341 = vpop.f32.mrb[0].mxu0
        %v2342 = vpop.f32.mrb[0].mxu0
        %v2343 = vpop.f32.mrb[0].mxu0
        %2344 = vdwg.mxu0
        %2345 = vrot.lane.b32.xlu0 %v2088, 64
        %v2346 = vpop.permute.xlu0 %2345
        %v2348 = vsel %vm1485, %v2294, 0
        %v2351 = vsel %vm1747, %v2346, 0
        %2353 = vmatprep.subr.bf16.mxu0 0
        %2354 = vmatpush1.bf16.msra.mxu0 %v2351
        %2355 = vmatprep.subr.bf16.mxu0 0
        %2356 = vmatpush1.bf16.msra.mxu0 0
        %2357 = vmatprep.subr.bf16.mxu0 0
        %2358 = vmatpush1.bf16.msra.mxu0 0
        %2359 = vmatprep.subr.bf16.mxu0 0
        %2360 = vmatpush1.bf16.msra.mxu0 0
        %2361 = vmatprep.subr.bf16.mxu0 0
        %2362 = vmatpush1.bf16.msra.mxu0 0
        %2363 = vmatprep.subr.bf16.mxu0 0
        %2364 = vmatpush1.bf16.msra.mxu0 0
        %2365 = vmatprep.subr.bf16.mxu0 0
        %2366 = vmatpush1.bf16.msra.mxu0 0
        %2367 = vmatprep.subr.bf16.mxu0 0
        %2368 = vmatpush1.bf16.msra.mxu0 0
        %2369 = vmatprep.subr.bf16.mxu0 0
        %2370 = vmatpush1.bf16.msra.mxu0 0
        %2371 = vmatprep.subr.bf16.mxu0 0
        %2372 = vmatpush1.bf16.msra.mxu0 0
        %2373 = vmatprep.subr.bf16.mxu0 0
        %2374 = vmatpush1.bf16.msra.mxu0 0
        %2375 = vmatprep.subr.bf16.mxu0 0
        %2376 = vmatpush1.bf16.msra.mxu0 0
        %2377 = vmatprep.subr.bf16.mxu0 0
        %2378 = vmatpush1.bf16.msra.mxu0 0
        %2379 = vmatprep.subr.bf16.mxu0 0
        %2380 = vmatpush1.bf16.msra.mxu0 0
        %2381 = vmatprep.subr.bf16.mxu0 0
        %2382 = vmatpush1.bf16.msra.mxu0 0
        %2383 = vmatprep.subr.bf16.mxu0 0
        %2384 = vmatpush1.bf16.msra.mxu0 0
        %2385 = vmatprep.mubr.bf16.mxu0 0
        %2386 = vmatmul.mubr.bf16.gmra.mrb[0].mxu0 %v2348
        %v2387 = vpop.f32.mrb[0].mxu0
        %v2388 = vadd.f32 0.0, %v2387
        %v2389 = vpop.f32.mrb[0].mxu0
        %v2390 = vpop.f32.mrb[0].mxu0
        %v2391 = vpop.f32.mrb[0].mxu0
        %2392 = vdwg.mxu0
        %2393 = vrot.lane.b32.xlu0 %v2138, 64
        %v2394 = vpop.permute.xlu0 %2393
        %v2396 = vsel %vm1485, %v2295, 0
        %v2399 = vsel %vm1747, %v2394, 0
        %2401 = vmatprep.subr.bf16.mxu0 0
        %2402 = vmatpush1.bf16.msra.mxu0 %v2399
        %2403 = vmatprep.subr.bf16.mxu0 0
        %2404 = vmatpush1.bf16.msra.mxu0 0
        %2405 = vmatprep.subr.bf16.mxu0 0
        %2406 = vmatpush1.bf16.msra.mxu0 0
        %2407 = vmatprep.subr.bf16.mxu0 0
        %2408 = vmatpush1.bf16.msra.mxu0 0
        %2409 = vmatprep.subr.bf16.mxu0 0
        %2410 = vmatpush1.bf16.msra.mxu0 0
        %2411 = vmatprep.subr.bf16.mxu0 0
        %2412 = vmatpush1.bf16.msra.mxu0 0
        %2413 = vmatprep.subr.bf16.mxu0 0
        %2414 = vmatpush1.bf16.msra.mxu0 0
        %2415 = vmatprep.subr.bf16.mxu0 0
        %2416 = vmatpush1.bf16.msra.mxu0 0
        %2417 = vmatprep.subr.bf16.mxu0 0
        %2418 = vmatpush1.bf16.msra.mxu0 0
        %2419 = vmatprep.subr.bf16.mxu0 0
        %2420 = vmatpush1.bf16.msra.mxu0 0
        %2421 = vmatprep.subr.bf16.mxu0 0
        %2422 = vmatpush1.bf16.msra.mxu0 0
        %2423 = vmatprep.subr.bf16.mxu0 0
        %2424 = vmatpush1.bf16.msra.mxu0 0
        %2425 = vmatprep.subr.bf16.mxu0 0
        %2426 = vmatpush1.bf16.msra.mxu0 0
        %2427 = vmatprep.subr.bf16.mxu0 0
        %2428 = vmatpush1.bf16.msra.mxu0 0
        %2429 = vmatprep.subr.bf16.mxu0 0
        %2430 = vmatpush1.bf16.msra.mxu0 0
        %2431 = vmatprep.subr.bf16.mxu0 0
        %2432 = vmatpush1.bf16.msra.mxu0 0
        %2433 = vmatprep.mubr.bf16.mxu0 0
        %2434 = vmatmul.mubr.bf16.gmra.mrb[0].mxu0 %v2396
        %v2435 = vpop.f32.mrb[0].mxu0
        %v2436 = vadd.f32 0.0, %v2435
        %v2437 = vpop.f32.mrb[0].mxu0
        %v2438 = vpop.f32.mrb[0].mxu0
        %v2439 = vpop.f32.mrb[0].mxu0
        %2440 = vdwg.mxu0
        %2441 = vrot.lane.b32.xlu0 %v2188, 64
        %v2442 = vpop.permute.xlu0 %2441
        %v2444 = vsel %vm1485, %v2296, 0
        %v2447 = vsel %vm1747, %v2442, 0
        %2449 = vmatprep.subr.bf16.mxu0 0
        %2450 = vmatpush1.bf16.msra.mxu0 %v2447
        %2451 = vmatprep.subr.bf16.mxu0 0
        %2452 = vmatpush1.bf16.msra.mxu0 0
        %2453 = vmatprep.subr.bf16.mxu0 0
        %2454 = vmatpush1.bf16.msra.mxu0 0
        %2455 = vmatprep.subr.bf16.mxu0 0
        %2456 = vmatpush1.bf16.msra.mxu0 0
        %2457 = vmatprep.subr.bf16.mxu0 0
        %2458 = vmatpush1.bf16.msra.mxu0 0
        %2459 = vmatprep.subr.bf16.mxu0 0
        %2460 = vmatpush1.bf16.msra.mxu0 0
        %2461 = vmatprep.subr.bf16.mxu0 0
        %2462 = vmatpush1.bf16.msra.mxu0 0
        %2463 = vmatprep.subr.bf16.mxu0 0
        %2464 = vmatpush1.bf16.msra.mxu0 0
        %2465 = vmatprep.subr.bf16.mxu0 0
        %2466 = vmatpush1.bf16.msra.mxu0 0
        %2467 = vmatprep.subr.bf16.mxu0 0
        %2468 = vmatpush1.bf16.msra.mxu0 0
        %2469 = vmatprep.subr.bf16.mxu0 0
        %2470 = vmatpush1.bf16.msra.mxu0 0
        %2471 = vmatprep.subr.bf16.mxu0 0
        %2472 = vmatpush1.bf16.msra.mxu0 0
        %2473 = vmatprep.subr.bf16.mxu0 0
        %2474 = vmatpush1.bf16.msra.mxu0 0
        %2475 = vmatprep.subr.bf16.mxu0 0
        %2476 = vmatpush1.bf16.msra.mxu0 0
        %2477 = vmatprep.subr.bf16.mxu0 0
        %2478 = vmatpush1.bf16.msra.mxu0 0
        %2479 = vmatprep.subr.bf16.mxu0 0
        %2480 = vmatpush1.bf16.msra.mxu0 0
        %2481 = vmatprep.mubr.bf16.mxu0 0
        %2482 = vmatmul.mubr.bf16.gmra.mrb[0].mxu0 %v2444
        %v2483 = vpop.f32.mrb[0].mxu0
        %v2484 = vadd.f32 0.0, %v2483
        %v2485 = vpop.f32.mrb[0].mxu0
        %v2486 = vpop.f32.mrb[0].mxu0
        %v2487 = vpop.f32.mrb[0].mxu0
        %2488 = vdwg.mxu0
        %v2489 = vadd.f32 %v2273, %v2340
        %v2490 = vadd.f32 %v2274, %v2388
        %v2491 = vadd.f32 %v2275, %v2436
        %v2492 = vadd.f32 %v2276, %v2484
        %v2493 = vrcp.pop %v2289
        %v2494 = vrcp.pop %v2290
        %v2495 = vrcp.pop %v2291
        %v2496 = vrcp.pop %v2292
        %v2497 = vmul.f32 %v2489, %v2493
        %v2498 = vmul.f32 %v2490, %v2494
        %v2499 = vmul.f32 %v2491, %v2495
        %v2500 = vmul.f32 %v2492, %v2496
        %2502 = vrot.lane.b32.xlu0 %v2498, 8
        %v2503 = vpop.permute.xlu0 %2502
        %2506 = vrot.lane.b32.xlu0 %v2499, 16
        %v2507 = vpop.permute.xlu0 %2506
        %2510 = vrot.lane.b32.xlu0 %v2500, 24
        %v2511 = vpop.permute.xlu0 %2510
        %v2513 = vsel %vm1485, %v2497, %v2503
        %v2514 = vsel %vm1960, %v2513, %v2507
        %v2515 = vsel %vm1962, %v2514, %v2511
        %v2516 = vpack.c.bf16 %v2515, %v2515
        %v2521 = vunpack.c.l.b16 %v2029
        %v2522 = vunpack.c.l.b16 %v2030
        %v2523 = vunpack.c.l.b16 %v2031
        %v2524 = vunpack.c.l.b16 %v2032
        %v2525 = vpack.c.b16 %v2522, %v2521
        %v2526 = vpack.c.b16 %v2524, %v2523
        %v2530 = vsel %vm1414, %v2516, 0
        %2532 = vmatprep.subr.bf16.mxu0 0
        %2533 = vmatpush1.bf16.msra.mxu0 %v2525
        %2534 = vmatprep.subr.bf16.mxu0 0
        %2535 = vmatpush1.bf16.msra.mxu0 %v2526
        %2536 = vmatprep.subr.bf16.mxu0 0
        %2537 = vmatpush1.bf16.msra.mxu0 0
        %2538 = vmatprep.subr.bf16.mxu0 0
        %2539 = vmatpush1.bf16.msra.mxu0 0
        %2540 = vmatprep.subr.bf16.mxu0 0
        %2541 = vmatpush1.bf16.msra.mxu0 0
        %2542 = vmatprep.subr.bf16.mxu0 0
        %2543 = vmatpush1.bf16.msra.mxu0 0
        %2544 = vmatprep.subr.bf16.mxu0 0
        %2545 = vmatpush1.bf16.msra.mxu0 0
        %2546 = vmatprep.subr.bf16.mxu0 0
        %2547 = vmatpush1.bf16.msra.mxu0 0
        %2548 = vmatprep.subr.bf16.mxu0 0
        %2549 = vmatpush1.bf16.msra.mxu0 0
        %2550 = vmatprep.subr.bf16.mxu0 0
        %2551 = vmatpush1.bf16.msra.mxu0 0
        %2552 = vmatprep.subr.bf16.mxu0 0
        %2553 = vmatpush1.bf16.msra.mxu0 0
        %2554 = vmatprep.subr.bf16.mxu0 0
        %2555 = vmatpush1.bf16.msra.mxu0 0
        %2556 = vmatprep.subr.bf16.mxu0 0
        %2557 = vmatpush1.bf16.msra.mxu0 0
        %2558 = vmatprep.subr.bf16.mxu0 0
        %2559 = vmatpush1.bf16.msra.mxu0 0
        %2560 = vmatprep.subr.bf16.mxu0 0
        %2561 = vmatpush1.bf16.msra.mxu0 0
        %2562 = vmatprep.subr.bf16.mxu0 0
        %2563 = vmatpush1.bf16.msra.mxu0 0
        %2564 = vmatprep.mubr.bf16.mxu0 0
        %2565 = vmatmul.mubr.bf16.gmra.mrb[0].mxu0 %v2530
        %v2566 = vpop.f32.mrb[0].mxu0
        %v2567 = vadd.f32 0.0, %v2566
        %v2568 = vpop.f32.mrb[0].mxu0
        %v2569 = vpop.f32.mrb[0].mxu0
        %v2570 = vpop.f32.mrb[0].mxu0
        %2571 = vdwg.mxu0
        %v2572 = vadd.f32 %v2015, %v1389
        %v2573 = vadd.f32 %v2567, %v1390
        %v2574 = vld [vmem:[%s1107] sm:$0x1]
        %v2575 = vld [vmem:[%s1115] sm:$0x1]
        %v2576 = vsel %vm1414, %v2572, 0.0
        %2577 = vadd.xlane.f32.xlu0 %v2576
        %v2578 = vpop.xlane.xlu0 %2577
        %v2579 = vsel %vm1414, %v2573, 0.0
        %2580 = vadd.xlane.f32.xlu0 %v2579
        %v2581 = vpop.xlane.xlu0 %2580
        %v2582 = vrcp.pop 32.0
        %v2583 = vmul.f32 %v2578, %v2582
        %v2584 = vmul.f32 %v2581, %v2582
        %v2585 = vsub.f32 %v2572, %v2583
        %v2586 = vsub.f32 %v2573, %v2584
        %v2587 = vmul.f32 %v2585, %v2585
        %v2588 = vmul.f32 %v2586, %v2586
        %v2589 = vsel %vm1414, %v2587, 0.0
        %2590 = vadd.xlane.f32.xlu0 %v2589
        %v2591 = vpop.xlane.xlu0 %2590
        %v2592 = vsel %vm1414, %v2588, 0.0
        %2593 = vadd.xlane.f32.xlu0 %v2592
        %v2594 = vpop.xlane.xlu0 %2593
        %v2595 = vmul.f32 %v2591, %v2582
        %v2596 = vmul.f32 %v2594, %v2582
        %v2597 = vadd.f32 %v2595, 1e-06
        %v2598 = vadd.f32 %v2596, 1e-06
        %v2599 = vrsqrt.pop %v2597
        %v2600 = vrsqrt.pop %v2598
        %v2601 = vmul.f32 %v2585, %v2599
        %v2602 = vmul.f32 %v2586, %v2600
        %v2604 = vlaneseq
        %v2605 = vshrl.u32 %v2604, 7
        %v2606 = vsub.s32 0, %v2605
        %v2607 = vrot.slane %v2574, %v2606
        %v2609 = vmul.f32 %v2601, %v2607
        %v2610 = vmul.f32 %v2602, %v2607
        %v2612 = vlaneseq
        %v2613 = vshrl.u32 %v2612, 7
        %v2614 = vsub.s32 0, %v2613
        %v2615 = vrot.slane %v2575, %v2614
        %v2617 = vadd.f32 %v2609, %v2615
        %v2618 = vadd.f32 %v2610, %v2615
        %v2619 = vpack.c.bf16 %v2618, %v2617
        %v2620 = vld [vmem:[%s1124] sm:$0xf]
        %v2621 = vld [vmem:[%s1124 + $0x4] sm:$0xf]
        %v2622 = vld [vmem:[%s1124 + $0x8] sm:$0xf]
        %v2623 = vld [vmem:[%s1124 + $0xc] sm:$0xf]
        %v2628 = vunpack.c.l.b16 %v2620
        %v2629 = vunpack.c.l.b16 %v2621
        %v2630 = vunpack.c.l.b16 %v2622
        %v2631 = vunpack.c.l.b16 %v2623
        %v2632 = vpack.c.b16 %v2629, %v2628
        %v2633 = vpack.c.b16 %v2631, %v2630
        %v2637 = vsel %vm1414, %v2619, 0
        %2639 = vmatprep.subr.bf16.mxu0 0
        %2640 = vmatpush1.bf16.msra.mxu0 %v2632
        %2641 = vmatprep.subr.bf16.mxu0 0
        %2642 = vmatpush1.bf16.msra.mxu0 %v2633
        %2643 = vmatprep.subr.bf16.mxu0 0
        %2644 = vmatpush1.bf16.msra.mxu0 0
        %2645 = vmatprep.subr.bf16.mxu0 0
        %2646 = vmatpush1.bf16.msra.mxu0 0
        %2647 = vmatprep.subr.bf16.mxu0 0
        %2648 = vmatpush1.bf16.msra.mxu0 0
        %2649 = vmatprep.subr.bf16.mxu0 0
        %2650 = vmatpush1.bf16.msra.mxu0 0
        %2651 = vmatprep.subr.bf16.mxu0 0
        %2652 = vmatpush1.bf16.msra.mxu0 0
        %2653 = vmatprep.subr.bf16.mxu0 0
        %2654 = vmatpush1.bf16.msra.mxu0 0
        %2655 = vmatprep.subr.bf16.mxu0 0
        %2656 = vmatpush1.bf16.msra.mxu0 0
        %2657 = vmatprep.subr.bf16.mxu0 0
        %2658 = vmatpush1.bf16.msra.mxu0 0
        %2659 = vmatprep.subr.bf16.mxu0 0
        %2660 = vmatpush1.bf16.msra.mxu0 0
        %2661 = vmatprep.subr.bf16.mxu0 0
        %2662 = vmatpush1.bf16.msra.mxu0 0
        %2663 = vmatprep.subr.bf16.mxu0 0
        %2664 = vmatpush1.bf16.msra.mxu0 0
        %2665 = vmatprep.subr.bf16.mxu0 0
        %2666 = vmatpush1.bf16.msra.mxu0 0
        %2667 = vmatprep.subr.bf16.mxu0 0
        %2668 = vmatpush1.bf16.msra.mxu0 0
        %2669 = vmatprep.subr.bf16.mxu0 0
        %2670 = vmatpush1.bf16.msra.mxu0 0
        %2671 = vmatprep.mubr.bf16.mxu0 0
        %2672 = vmatmul.mubr.bf16.gmra.mrb[0].mxu0 %v2637
        %v2673 = vpop.f32.mrb[0].mxu0
        %v2674 = vadd.f32 0.0, %v2673
        %v2675 = vpop.f32.mrb[0].mxu0
        %v2676 = vpop.f32.mrb[0].mxu0
        %v2677 = vadd.f32 0.0, %v2676
        %v2678 = vpop.f32.mrb[0].mxu0
        %2679 = vdwg.mxu0
        %v2680 = vpack.c.bf16 %v2677, %v2674
        %v2682 = vunpack.c.l.b16 %v2680
        %v2683 = vunpack.c.h.b16 %v2680
        %v2684 = vpack.c.b16 %v2682, %v2682
        %v2685 = vpack.c.b16 %v2683, %v2683
        %v2686 = vld [vmem:[#allocation5] sm:$0xf]
        %v2687 = vld [vmem:[#allocation5 + $0x4] sm:$0xf]
        %v2688 = vld [vmem:[%s1133] sm:$0xf]
        %v2689 = vld [vmem:[%s1133 + $0x4] sm:$0xf]
        %v2690 = vld [vmem:[%s1133 + $0x8] sm:$0xf]
        %v2691 = vld [vmem:[%s1133 + $0xc] sm:$0xf]
        %v2694 = vunpack.c.l.b16 %v2686
        %v2695 = vunpack.c.l.b16 %v2687
        %v2696 = vpack.c.b16 %v2695, %v2694
        %v2701 = vunpack.c.l.b16 %v2688
        %v2702 = vunpack.c.l.b16 %v2689
        %v2703 = vunpack.c.l.b16 %v2690
        %v2704 = vunpack.c.l.b16 %v2691
        %v2705 = vpack.c.b16 %v2702, %v2701
        %v2706 = vpack.c.b16 %v2704, %v2703
        %v2710 = vsel %vm1414, %v2696, 0
        %2712 = vmatprep.subr.bf16.mxu0 0
        %2713 = vmatpush1.bf16.msra.mxu0 %v2705
        %2714 = vmatprep.subr.bf16.mxu0 0
        %2715 = vmatpush1.bf16.msra.mxu0 %v2706
        %2716 = vmatprep.subr.bf16.mxu0 0
        %2717 = vmatpush1.bf16.msra.mxu0 0
        %2718 = vmatprep.subr.bf16.mxu0 0
        %2719 = vmatpush1.bf16.msra.mxu0 0
        %2720 = vmatprep.subr.bf16.mxu0 0
        %2721 = vmatpush1.bf16.msra.mxu0 0
        %2722 = vmatprep.subr.bf16.mxu0 0
        %2723 = vmatpush1.bf16.msra.mxu0 0
        %2724 = vmatprep.subr.bf16.mxu0 0
        %2725 = vmatpush1.bf16.msra.mxu0 0
        %2726 = vmatprep.subr.bf16.mxu0 0
        %2727 = vmatpush1.bf16.msra.mxu0 0
        %2728 = vmatprep.subr.bf16.mxu0 0
        %2729 = vmatpush1.bf16.msra.mxu0 0
        %2730 = vmatprep.subr.bf16.mxu0 0
        %2731 = vmatpush1.bf16.msra.mxu0 0
        %2732 = vmatprep.subr.bf16.mxu0 0
        %2733 = vmatpush1.bf16.msra.mxu0 0
        %2734 = vmatprep.subr.bf16.mxu0 0
        %2735 = vmatpush1.bf16.msra.mxu0 0
        %2736 = vmatprep.subr.bf16.mxu0 0
        %2737 = vmatpush1.bf16.msra.mxu0 0
        %2738 = vmatprep.subr.bf16.mxu0 0
        %2739 = vmatpush1.bf16.msra.mxu0 0
        %2740 = vmatprep.subr.bf16.mxu0 0
        %2741 = vmatpush1.bf16.msra.mxu0 0
        %2742 = vmatprep.subr.bf16.mxu0 0
        %2743 = vmatpush1.bf16.msra.mxu0 0
        %2744 = vmatprep.mubr.bf16.mxu0 0
        %2745 = vmatmul.mubr.bf16.gmra.mrb[0].mxu0 %v2710
        %v2746 = vpop.f32.mrb[0].mxu0
        %v2747 = vadd.f32 0.0, %v2746
        %v2748 = vpop.f32.mrb[0].mxu0
        %v2749 = vpop.f32.mrb[0].mxu0
        %v2750 = vadd.f32 0.0, %v2749
        %v2751 = vpop.f32.mrb[0].mxu0
        %2752 = vdwg.mxu0
        %v2753 = vpack.c.bf16 %v2750, %v2747
        %v2755 = vunpack.c.l.b16 %v2753
        %v2756 = vunpack.c.h.b16 %v2753
        %v2757 = vpack.c.b16 %v2755, %v2755
        %v2758 = vpack.c.b16 %v2756, %v2756
        %v2759 = vld [vmem:[%s1142] sm:$0xf]
        %v2760 = vld [vmem:[%s1142 + $0x4] sm:$0xf]
        %v2761 = vld [vmem:[%s1142 + $0x8] sm:$0xf]
        %v2762 = vld [vmem:[%s1142 + $0xc] sm:$0xf]
        %v2763 = vld [vmem:[#allocation8] sm:$0x1]
        %2764 = vrot.lane.b32.xlu0 %v2684, 120
        %v2765 = vpop.permute.xlu0 %2764
        %2766 = vrot.lane.b32.xlu0 %v2684, 112
        %v2767 = vpop.permute.xlu0 %2766
        %2768 = vrot.lane.b32.xlu0 %v2684, 104
        %v2769 = vpop.permute.xlu0 %2768
        %2770 = vrot.lane.b32.xlu0 %v2757, 120
        %v2771 = vpop.permute.xlu0 %2770
        %2772 = vrot.lane.b32.xlu0 %v2757, 112
        %v2773 = vpop.permute.xlu0 %2772
        %2774 = vrot.lane.b32.xlu0 %v2757, 104
        %v2775 = vpop.permute.xlu0 %2774
        %v2777 = vlaneseq
        %v2778 = vshrl.u32 %v2777, 7
        %v2779 = vsub.s32 0, %v2778
        %v2780 = vrot.slane %v2763, %v2779
        %v2783 = vsel %vm1485, %v2684, 0
        %v2786 = vsel %vm1485, %v2757, 0
        %2788 = vmatprep.subr.bf16.mxu0 0
        %2789 = vmatpush1.bf16.xpose.msra.mxu0 %v2786
        %2790 = vmatprep.subr.bf16.mxu0 0
        %2791 = vmatpush1.bf16.xpose.msra.mxu0 0
        %2792 = vmatprep.subr.bf16.mxu0 0
        %2793 = vmatpush1.bf16.xpose.msra.mxu0 0
        %2794 = vmatprep.subr.bf16.mxu0 0
        %2795 = vmatpush1.bf16.xpose.msra.mxu0 0
        %2796 = vmatprep.subr.bf16.mxu0 0
        %2797 = vmatpush1.bf16.xpose.msra.mxu0 0
        %2798 = vmatprep.subr.bf16.mxu0 0
        %2799 = vmatpush1.bf16.xpose.msra.mxu0 0
        %2800 = vmatprep.subr.bf16.mxu0 0
        %2801 = vmatpush1.bf16.xpose.msra.mxu0 0
        %2802 = vmatprep.subr.bf16.mxu0 0
        %2803 = vmatpush1.bf16.xpose.msra.mxu0 0
        %2804 = vmatprep.subr.bf16.mxu0 0
        %2805 = vmatpush1.bf16.xpose.msra.mxu0 0
        %2806 = vmatprep.subr.bf16.mxu0 0
        %2807 = vmatpush1.bf16.xpose.msra.mxu0 0
        %2808 = vmatprep.subr.bf16.mxu0 0
        %2809 = vmatpush1.bf16.xpose.msra.mxu0 0
        %2810 = vmatprep.subr.bf16.mxu0 0
        %2811 = vmatpush1.bf16.xpose.msra.mxu0 0
        %2812 = vmatprep.subr.bf16.mxu0 0
        %2813 = vmatpush1.bf16.xpose.msra.mxu0 0
        %2814 = vmatprep.subr.bf16.mxu0 0
        %2815 = vmatpush1.bf16.xpose.msra.mxu0 0
        %2816 = vmatprep.subr.bf16.mxu0 0
        %2817 = vmatpush1.bf16.xpose.msra.mxu0 0
        %2818 = vmatprep.subr.bf16.mxu0 0
        %2819 = vmatpush1.bf16.xpose.msra.mxu0 0
        %2820 = vmatprep.mubr.bf16.mxu0 0
        %2821 = vmatmul.mubr.bf16.gmra.mrb[0].mxu0 %v2783
        %v2822 = vpop.f32.mrb[0].mxu0
        %v2823 = vadd.f32 %v2780, %v2822
        %v2824 = vpop.f32.mrb[0].mxu0
        %v2825 = vpop.f32.mrb[0].mxu0
        %v2826 = vpop.f32.mrb[0].mxu0
        %2827 = vdwg.mxu0
        %v2829 = vsel %vm1485, %v2765, 0
        %v2832 = vsel %vm1485, %v2771, 0
        %2834 = vmatprep.subr.bf16.mxu0 0
        %2835 = vmatpush1.bf16.xpose.msra.mxu0 %v2832
        %2836 = vmatprep.subr.bf16.mxu0 0
        %2837 = vmatpush1.bf16.xpose.msra.mxu0 0
        %2838 = vmatprep.subr.bf16.mxu0 0
        %2839 = vmatpush1.bf16.xpose.msra.mxu0 0
        %2840 = vmatprep.subr.bf16.mxu0 0
        %2841 = vmatpush1.bf16.xpose.msra.mxu0 0
        %2842 = vmatprep.subr.bf16.mxu0 0
        %2843 = vmatpush1.bf16.xpose.msra.mxu0 0
        %2844 = vmatprep.subr.bf16.mxu0 0
        %2845 = vmatpush1.bf16.xpose.msra.mxu0 0
        %2846 = vmatprep.subr.bf16.mxu0 0
        %2847 = vmatpush1.bf16.xpose.msra.mxu0 0
        %2848 = vmatprep.subr.bf16.mxu0 0
        %2849 = vmatpush1.bf16.xpose.msra.mxu0 0
        %2850 = vmatprep.subr.bf16.mxu0 0
        %2851 = vmatpush1.bf16.xpose.msra.mxu0 0
        %2852 = vmatprep.subr.bf16.mxu0 0
        %2853 = vmatpush1.bf16.xpose.msra.mxu0 0
        %2854 = vmatprep.subr.bf16.mxu0 0
        %2855 = vmatpush1.bf16.xpose.msra.mxu0 0
        %2856 = vmatprep.subr.bf16.mxu0 0
        %2857 = vmatpush1.bf16.xpose.msra.mxu0 0
        %2858 = vmatprep.subr.bf16.mxu0 0
        %2859 = vmatpush1.bf16.xpose.msra.mxu0 0
        %2860 = vmatprep.subr.bf16.mxu0 0
        %2861 = vmatpush1.bf16.xpose.msra.mxu0 0
        %2862 = vmatprep.subr.bf16.mxu0 0
        %2863 = vmatpush1.bf16.xpose.msra.mxu0 0
        %2864 = vmatprep.subr.bf16.mxu0 0
        %2865 = vmatpush1.bf16.xpose.msra.mxu0 0
        %2866 = vmatprep.mubr.bf16.mxu0 0
        %2867 = vmatmul.mubr.bf16.gmra.mrb[0].mxu0 %v2829
        %v2868 = vpop.f32.mrb[0].mxu0
        %v2869 = vadd.f32 %v2780, %v2868
        %v2870 = vpop.f32.mrb[0].mxu0
        %v2871 = vpop.f32.mrb[0].mxu0
        %v2872 = vpop.f32.mrb[0].mxu0
        %2873 = vdwg.mxu0
        %v2875 = vsel %vm1485, %v2767, 0
        %v2878 = vsel %vm1485, %v2773, 0
        %2880 = vmatprep.subr.bf16.mxu0 0
        %2881 = vmatpush1.bf16.xpose.msra.mxu0 %v2878
        %2882 = vmatprep.subr.bf16.mxu0 0
        %2883 = vmatpush1.bf16.xpose.msra.mxu0 0
        %2884 = vmatprep.subr.bf16.mxu0 0
        %2885 = vmatpush1.bf16.xpose.msra.mxu0 0
        %2886 = vmatprep.subr.bf16.mxu0 0
        %2887 = vmatpush1.bf16.xpose.msra.mxu0 0
        %2888 = vmatprep.subr.bf16.mxu0 0
        %2889 = vmatpush1.bf16.xpose.msra.mxu0 0
        %2890 = vmatprep.subr.bf16.mxu0 0
        %2891 = vmatpush1.bf16.xpose.msra.mxu0 0
        %2892 = vmatprep.subr.bf16.mxu0 0
        %2893 = vmatpush1.bf16.xpose.msra.mxu0 0
        %2894 = vmatprep.subr.bf16.mxu0 0
        %2895 = vmatpush1.bf16.xpose.msra.mxu0 0
        %2896 = vmatprep.subr.bf16.mxu0 0
        %2897 = vmatpush1.bf16.xpose.msra.mxu0 0
        %2898 = vmatprep.subr.bf16.mxu0 0
        %2899 = vmatpush1.bf16.xpose.msra.mxu0 0
        %2900 = vmatprep.subr.bf16.mxu0 0
        %2901 = vmatpush1.bf16.xpose.msra.mxu0 0
        %2902 = vmatprep.subr.bf16.mxu0 0
        %2903 = vmatpush1.bf16.xpose.msra.mxu0 0
        %2904 = vmatprep.subr.bf16.mxu0 0
        %2905 = vmatpush1.bf16.xpose.msra.mxu0 0
        %2906 = vmatprep.subr.bf16.mxu0 0
        %2907 = vmatpush1.bf16.xpose.msra.mxu0 0
        %2908 = vmatprep.subr.bf16.mxu0 0
        %2909 = vmatpush1.bf16.xpose.msra.mxu0 0
        %2910 = vmatprep.subr.bf16.mxu0 0
        %2911 = vmatpush1.bf16.xpose.msra.mxu0 0
        %2912 = vmatprep.mubr.bf16.mxu0 0
        %2913 = vmatmul.mubr.bf16.gmra.mrb[0].mxu0 %v2875
        %v2914 = vpop.f32.mrb[0].mxu0
        %v2915 = vadd.f32 %v2780, %v2914
        %v2916 = vpop.f32.mrb[0].mxu0
        %v2917 = vpop.f32.mrb[0].mxu0
        %v2918 = vpop.f32.mrb[0].mxu0
        %2919 = vdwg.mxu0
        %v2921 = vsel %vm1485, %v2769, 0
        %v2924 = vsel %vm1485, %v2775, 0
        %2926 = vmatprep.subr.bf16.mxu0 0
        %2927 = vmatpush1.bf16.xpose.msra.mxu0 %v2924
        %2928 = vmatprep.subr.bf16.mxu0 0
        %2929 = vmatpush1.bf16.xpose.msra.mxu0 0
        %2930 = vmatprep.subr.bf16.mxu0 0
        %2931 = vmatpush1.bf16.xpose.msra.mxu0 0
        %2932 = vmatprep.subr.bf16.mxu0 0
        %2933 = vmatpush1.bf16.xpose.msra.mxu0 0
        %2934 = vmatprep.subr.bf16.mxu0 0
        %2935 = vmatpush1.bf16.xpose.msra.mxu0 0
        %2936 = vmatprep.subr.bf16.mxu0 0
        %2937 = vmatpush1.bf16.xpose.msra.mxu0 0
        %2938 = vmatprep.subr.bf16.mxu0 0
        %2939 = vmatpush1.bf16.xpose.msra.mxu0 0
        %2940 = vmatprep.subr.bf16.mxu0 0
        %2941 = vmatpush1.bf16.xpose.msra.mxu0 0
        %2942 = vmatprep.subr.bf16.mxu0 0
        %2943 = vmatpush1.bf16.xpose.msra.mxu0 0
        %2944 = vmatprep.subr.bf16.mxu0 0
        %2945 = vmatpush1.bf16.xpose.msra.mxu0 0
        %2946 = vmatprep.subr.bf16.mxu0 0
        %2947 = vmatpush1.bf16.xpose.msra.mxu0 0
        %2948 = vmatprep.subr.bf16.mxu0 0
        %2949 = vmatpush1.bf16.xpose.msra.mxu0 0
        %2950 = vmatprep.subr.bf16.mxu0 0
        %2951 = vmatpush1.bf16.xpose.msra.mxu0 0
        %2952 = vmatprep.subr.bf16.mxu0 0
        %2953 = vmatpush1.bf16.xpose.msra.mxu0 0
        %2954 = vmatprep.subr.bf16.mxu0 0
        %2955 = vmatpush1.bf16.xpose.msra.mxu0 0
        %2956 = vmatprep.subr.bf16.mxu0 0
        %2957 = vmatpush1.bf16.xpose.msra.mxu0 0
        %2958 = vmatprep.mubr.bf16.mxu0 0
        %2959 = vmatmul.mubr.bf16.gmra.mrb[0].mxu0 %v2921
        %v2960 = vpop.f32.mrb[0].mxu0
        %v2961 = vadd.f32 %v2780, %v2960
        %v2962 = vpop.f32.mrb[0].mxu0
        %v2963 = vpop.f32.mrb[0].mxu0
        %v2964 = vpop.f32.mrb[0].mxu0
        %2965 = vdwg.mxu0
        %v2966 = vsel %vm1485, %v2823, -inf
        %2967 = vmax.xlane.f32.xlu0 %v2966
        %v2968 = vpop.xlane.xlu0 %2967
        %v2969 = vsel %vm1485, %v2869, -inf
        %2970 = vmax.xlane.f32.xlu0 %v2969
        %v2971 = vpop.xlane.xlu0 %2970
        %v2972 = vsel %vm1485, %v2915, -inf
        %2973 = vmax.xlane.f32.xlu0 %v2972
        %v2974 = vpop.xlane.xlu0 %2973
        %v2975 = vsel %vm1485, %v2961, -inf
        %2976 = vmax.xlane.f32.xlu0 %v2975
        %v2977 = vpop.xlane.xlu0 %2976
        %v2978 = vsub.f32 -inf, %v2968
        %v2979 = vsub.f32 -inf, %v2971
        %v2980 = vsub.f32 -inf, %v2974
        %v2981 = vsub.f32 -inf, %v2977
        %v2982 = vmul.f32 %v2978, 1.442695
        %v2983 = vpow.pop %v2982
        %v2984 = vmul.f32 %v2979, 1.442695
        %v2985 = vpow.pop %v2984
        %v2986 = vmul.f32 %v2980, 1.442695
        %v2987 = vpow.pop %v2986
        %v2988 = vmul.f32 %v2981, 1.442695
        %v2989 = vpow.pop %v2988
        %v2990 = vsub.f32 %v2823, %v2968
        %v2991 = vsub.f32 %v2869, %v2971
        %v2992 = vsub.f32 %v2915, %v2974
        %v2993 = vsub.f32 %v2961, %v2977
        %v2994 = vmul.f32 %v2990, 1.442695
        %v2995 = vpow.pop %v2994
        %v2996 = vmul.f32 %v2991, 1.442695
        %v2997 = vpow.pop %v2996
        %v2998 = vmul.f32 %v2992, 1.442695
        %v2999 = vpow.pop %v2998
        %v3000 = vmul.f32 %v2993, 1.442695
        %v3001 = vpow.pop %v3000
        %v3002 = vmul.f32 %v2983, 0.0
        %v3003 = vmul.f32 %v2985, 0.0
        %v3004 = vmul.f32 %v2987, 0.0
        %v3005 = vmul.f32 %v2989, 0.0
        %v3006 = vsel %vm1485, %v2995, 0.0
        %3007 = vadd.xlane.f32.xlu0 %v3006
        %v3008 = vpop.xlane.xlu0 %3007
        %v3009 = vsel %vm1485, %v2997, 0.0
        %3010 = vadd.xlane.f32.xlu0 %v3009
        %v3011 = vpop.xlane.xlu0 %3010
        %v3012 = vsel %vm1485, %v2999, 0.0
        %3013 = vadd.xlane.f32.xlu0 %v3012
        %v3014 = vpop.xlane.xlu0 %3013
        %v3015 = vsel %vm1485, %v3001, 0.0
        %3016 = vadd.xlane.f32.xlu0 %v3015
        %v3017 = vpop.xlane.xlu0 %3016
        %v3018 = vadd.f32 %v3002, %v3008
        %v3019 = vadd.f32 %v3003, %v3011
        %v3020 = vadd.f32 %v3004, %v3014
        %v3021 = vadd.f32 %v3005, %v3017
        %v3022 = vpack.c.bf16 %v2995, %v2995
        %v3023 = vpack.c.bf16 %v2997, %v2997
        %v3024 = vpack.c.bf16 %v2999, %v2999
        %v3025 = vpack.c.bf16 %v3001, %v3001
        %3026 = vrot.lane.b32.xlu0 %v2757, 96
        %v3027 = vpop.permute.xlu0 %3026
        %v3029 = vsel %vm1485, %v3022, 0
        %v3032 = vsel %vm1747, %v3027, 0
        %3034 = vmatprep.subr.bf16.mxu0 0
        %3035 = vmatpush1.bf16.msra.mxu0 %v3032
        %3036 = vmatprep.subr.bf16.mxu0 0
        %3037 = vmatpush1.bf16.msra.mxu0 0
        %3038 = vmatprep.subr.bf16.mxu0 0
        %3039 = vmatpush1.bf16.msra.mxu0 0
        %3040 = vmatprep.subr.bf16.mxu0 0
        %3041 = vmatpush1.bf16.msra.mxu0 0
        %3042 = vmatprep.subr.bf16.mxu0 0
        %3043 = vmatpush1.bf16.msra.mxu0 0
        %3044 = vmatprep.subr.bf16.mxu0 0
        %3045 = vmatpush1.bf16.msra.mxu0 0
        %3046 = vmatprep.subr.bf16.mxu0 0
        %3047 = vmatpush1.bf16.msra.mxu0 0
        %3048 = vmatprep.subr.bf16.mxu0 0
        %3049 = vmatpush1.bf16.msra.mxu0 0
        %3050 = vmatprep.subr.bf16.mxu0 0
        %3051 = vmatpush1.bf16.msra.mxu0 0
        %3052 = vmatprep.subr.bf16.mxu0 0
        %3053 = vmatpush1.bf16.msra.mxu0 0
        %3054 = vmatprep.subr.bf16.mxu0 0
        %3055 = vmatpush1.bf16.msra.mxu0 0
        %3056 = vmatprep.subr.bf16.mxu0 0
        %3057 = vmatpush1.bf16.msra.mxu0 0
        %3058 = vmatprep.subr.bf16.mxu0 0
        %3059 = vmatpush1.bf16.msra.mxu0 0
        %3060 = vmatprep.subr.bf16.mxu0 0
        %3061 = vmatpush1.bf16.msra.mxu0 0
        %3062 = vmatprep.subr.bf16.mxu0 0
        %3063 = vmatpush1.bf16.msra.mxu0 0
        %3064 = vmatprep.subr.bf16.mxu0 0
        %3065 = vmatpush1.bf16.msra.mxu0 0
        %3066 = vmatprep.mubr.bf16.mxu0 0
        %3067 = vmatmul.mubr.bf16.gmra.mrb[0].mxu0 %v3029
        %v3068 = vpop.f32.mrb[0].mxu0
        %v3069 = vadd.f32 0.0, %v3068
        %v3070 = vpop.f32.mrb[0].mxu0
        %v3071 = vpop.f32.mrb[0].mxu0
        %v3072 = vpop.f32.mrb[0].mxu0
        %3073 = vdwg.mxu0
        %v3074 = vunpack.c.l.b16 %v2771
        %v3075 = vpack.c.b16 %v3074, %v3074
        %3076 = vrot.lane.b32.xlu0 %v3075, 96
        %v3077 = vpop.permute.xlu0 %3076
        %v3079 = vsel %vm1485, %v3023, 0
        %v3082 = vsel %vm1747, %v3077, 0
        %3084 = vmatprep.subr.bf16.mxu0 0
        %3085 = vmatpush1.bf16.msra.mxu0 %v3082
        %3086 = vmatprep.subr.bf16.mxu0 0
        %3087 = vmatpush1.bf16.msra.mxu0 0
        %3088 = vmatprep.subr.bf16.mxu0 0
        %3089 = vmatpush1.bf16.msra.mxu0 0
        %3090 = vmatprep.subr.bf16.mxu0 0
        %3091 = vmatpush1.bf16.msra.mxu0 0
        %3092 = vmatprep.subr.bf16.mxu0 0
        %3093 = vmatpush1.bf16.msra.mxu0 0
        %3094 = vmatprep.subr.bf16.mxu0 0
        %3095 = vmatpush1.bf16.msra.mxu0 0
        %3096 = vmatprep.subr.bf16.mxu0 0
        %3097 = vmatpush1.bf16.msra.mxu0 0
        %3098 = vmatprep.subr.bf16.mxu0 0
        %3099 = vmatpush1.bf16.msra.mxu0 0
        %3100 = vmatprep.subr.bf16.mxu0 0
        %3101 = vmatpush1.bf16.msra.mxu0 0
        %3102 = vmatprep.subr.bf16.mxu0 0
        %3103 = vmatpush1.bf16.msra.mxu0 0
        %3104 = vmatprep.subr.bf16.mxu0 0
        %3105 = vmatpush1.bf16.msra.mxu0 0
        %3106 = vmatprep.subr.bf16.mxu0 0
        %3107 = vmatpush1.bf16.msra.mxu0 0
        %3108 = vmatprep.subr.bf16.mxu0 0
        %3109 = vmatpush1.bf16.msra.mxu0 0
        %3110 = vmatprep.subr.bf16.mxu0 0
        %3111 = vmatpush1.bf16.msra.mxu0 0
        %3112 = vmatprep.subr.bf16.mxu0 0
        %3113 = vmatpush1.bf16.msra.mxu0 0
        %3114 = vmatprep.subr.bf16.mxu0 0
        %3115 = vmatpush1.bf16.msra.mxu0 0
        %3116 = vmatprep.mubr.bf16.mxu0 0
        %3117 = vmatmul.mubr.bf16.gmra.mrb[0].mxu0 %v3079
        %v3118 = vpop.f32.mrb[0].mxu0
        %v3119 = vadd.f32 0.0, %v3118
        %v3120 = vpop.f32.mrb[0].mxu0
        %v3121 = vpop.f32.mrb[0].mxu0
        %v3122 = vpop.f32.mrb[0].mxu0
        %3123 = vdwg.mxu0
        %v3124 = vunpack.c.l.b16 %v2773
        %v3125 = vpack.c.b16 %v3124, %v3124
        %3126 = vrot.lane.b32.xlu0 %v3125, 96
        %v3127 = vpop.permute.xlu0 %3126
        %v3129 = vsel %vm1485, %v3024, 0
        %v3132 = vsel %vm1747, %v3127, 0
        %3134 = vmatprep.subr.bf16.mxu0 0
        %3135 = vmatpush1.bf16.msra.mxu0 %v3132
        %3136 = vmatprep.subr.bf16.mxu0 0
        %3137 = vmatpush1.bf16.msra.mxu0 0
        %3138 = vmatprep.subr.bf16.mxu0 0
        %3139 = vmatpush1.bf16.msra.mxu0 0
        %3140 = vmatprep.subr.bf16.mxu0 0
        %3141 = vmatpush1.bf16.msra.mxu0 0
        %3142 = vmatprep.subr.bf16.mxu0 0
        %3143 = vmatpush1.bf16.msra.mxu0 0
        %3144 = vmatprep.subr.bf16.mxu0 0
        %3145 = vmatpush1.bf16.msra.mxu0 0
        %3146 = vmatprep.subr.bf16.mxu0 0
        %3147 = vmatpush1.bf16.msra.mxu0 0
        %3148 = vmatprep.subr.bf16.mxu0 0
        %3149 = vmatpush1.bf16.msra.mxu0 0
        %3150 = vmatprep.subr.bf16.mxu0 0
        %3151 = vmatpush1.bf16.msra.mxu0 0
        %3152 = vmatprep.subr.bf16.mxu0 0
        %3153 = vmatpush1.bf16.msra.mxu0 0
        %3154 = vmatprep.subr.bf16.mxu0 0
        %3155 = vmatpush1.bf16.msra.mxu0 0
        %3156 = vmatprep.subr.bf16.mxu0 0
        %3157 = vmatpush1.bf16.msra.mxu0 0
        %3158 = vmatprep.subr.bf16.mxu0 0
        %3159 = vmatpush1.bf16.msra.mxu0 0
        %3160 = vmatprep.subr.bf16.mxu0 0
        %3161 = vmatpush1.bf16.msra.mxu0 0
        %3162 = vmatprep.subr.bf16.mxu0 0
        %3163 = vmatpush1.bf16.msra.mxu0 0
        %3164 = vmatprep.subr.bf16.mxu0 0
        %3165 = vmatpush1.bf16.msra.mxu0 0
        %3166 = vmatprep.mubr.bf16.mxu0 0
        %3167 = vmatmul.mubr.bf16.gmra.mrb[0].mxu0 %v3129
        %v3168 = vpop.f32.mrb[0].mxu0
        %v3169 = vadd.f32 0.0, %v3168
        %v3170 = vpop.f32.mrb[0].mxu0
        %v3171 = vpop.f32.mrb[0].mxu0
        %v3172 = vpop.f32.mrb[0].mxu0
        %3173 = vdwg.mxu0
        %v3174 = vunpack.c.l.b16 %v2775
        %v3175 = vpack.c.b16 %v3174, %v3174
        %3176 = vrot.lane.b32.xlu0 %v3175, 96
        %v3177 = vpop.permute.xlu0 %3176
        %v3179 = vsel %vm1485, %v3025, 0
        %v3182 = vsel %vm1747, %v3177, 0
        %3184 = vmatprep.subr.bf16.mxu0 0
        %3185 = vmatpush1.bf16.msra.mxu0 %v3182
        %3186 = vmatprep.subr.bf16.mxu0 0
        %3187 = vmatpush1.bf16.msra.mxu0 0
        %3188 = vmatprep.subr.bf16.mxu0 0
        %3189 = vmatpush1.bf16.msra.mxu0 0
        %3190 = vmatprep.subr.bf16.mxu0 0
        %3191 = vmatpush1.bf16.msra.mxu0 0
        %3192 = vmatprep.subr.bf16.mxu0 0
        %3193 = vmatpush1.bf16.msra.mxu0 0
        %3194 = vmatprep.subr.bf16.mxu0 0
        %3195 = vmatpush1.bf16.msra.mxu0 0
        %3196 = vmatprep.subr.bf16.mxu0 0
        %3197 = vmatpush1.bf16.msra.mxu0 0
        %3198 = vmatprep.subr.bf16.mxu0 0
        %3199 = vmatpush1.bf16.msra.mxu0 0
        %3200 = vmatprep.subr.bf16.mxu0 0
        %3201 = vmatpush1.bf16.msra.mxu0 0
        %3202 = vmatprep.subr.bf16.mxu0 0
        %3203 = vmatpush1.bf16.msra.mxu0 0
        %3204 = vmatprep.subr.bf16.mxu0 0
        %3205 = vmatpush1.bf16.msra.mxu0 0
        %3206 = vmatprep.subr.bf16.mxu0 0
        %3207 = vmatpush1.bf16.msra.mxu0 0
        %3208 = vmatprep.subr.bf16.mxu0 0
        %3209 = vmatpush1.bf16.msra.mxu0 0
        %3210 = vmatprep.subr.bf16.mxu0 0
        %3211 = vmatpush1.bf16.msra.mxu0 0
        %3212 = vmatprep.subr.bf16.mxu0 0
        %3213 = vmatpush1.bf16.msra.mxu0 0
        %3214 = vmatprep.subr.bf16.mxu0 0
        %3215 = vmatpush1.bf16.msra.mxu0 0
        %3216 = vmatprep.mubr.bf16.mxu0 0
        %3217 = vmatmul.mubr.bf16.gmra.mrb[0].mxu0 %v3179
        %v3218 = vpop.f32.mrb[0].mxu0
        %v3219 = vadd.f32 0.0, %v3218
        %v3220 = vpop.f32.mrb[0].mxu0
        %v3221 = vpop.f32.mrb[0].mxu0
        %v3222 = vpop.f32.mrb[0].mxu0
        %3223 = vdwg.mxu0
        %v3224 = vadd.f32 %v3002, %v3069
        %v3225 = vadd.f32 %v3003, %v3119
        %v3226 = vadd.f32 %v3004, %v3169
        %v3227 = vadd.f32 %v3005, %v3219
        %v3228 = vrcp.pop %v3018
        %v3229 = vrcp.pop %v3019
        %v3230 = vrcp.pop %v3020
        %v3231 = vrcp.pop %v3021
        %v3232 = vmul.f32 %v3224, %v3228
        %v3233 = vmul.f32 %v3225, %v3229
        %v3234 = vmul.f32 %v3226, %v3230
        %v3235 = vmul.f32 %v3227, %v3231
        %3237 = vrot.lane.b32.xlu0 %v3233, 8
        %v3238 = vpop.permute.xlu0 %3237
        %3241 = vrot.lane.b32.xlu0 %v3234, 16
        %v3242 = vpop.permute.xlu0 %3241
        %3245 = vrot.lane.b32.xlu0 %v3235, 24
        %v3246 = vpop.permute.xlu0 %3245
        %v3248 = vsel %vm1485, %v3232, %v3238
        %v3249 = vsel %vm1960, %v3248, %v3242
        %v3250 = vsel %vm1962, %v3249, %v3246
        %v3251 = vpack.c.bf16 %v3250, %v3250
        %v3256 = vunpack.c.l.b16 %v2759
        %v3257 = vunpack.c.l.b16 %v2760
        %v3258 = vunpack.c.l.b16 %v2761
        %v3259 = vunpack.c.l.b16 %v2762
        %v3260 = vpack.c.b16 %v3257, %v3256
        %v3261 = vpack.c.b16 %v3259, %v3258
        %v3265 = vsel %vm1414, %v3251, 0
        %3267 = vmatprep.subr.bf16.mxu0 0
        %3268 = vmatpush1.bf16.msra.mxu0 %v3260
        %3269 = vmatprep.subr.bf16.mxu0 0
        %3270 = vmatpush1.bf16.msra.mxu0 %v3261
        %3271 = vmatprep.subr.bf16.mxu0 0
        %3272 = vmatpush1.bf16.msra.mxu0 0
        %3273 = vmatprep.subr.bf16.mxu0 0
        %3274 = vmatpush1.bf16.msra.mxu0 0
        %3275 = vmatprep.subr.bf16.mxu0 0
        %3276 = vmatpush1.bf16.msra.mxu0 0
        %3277 = vmatprep.subr.bf16.mxu0 0
        %3278 = vmatpush1.bf16.msra.mxu0 0
        %3279 = vmatprep.subr.bf16.mxu0 0
        %3280 = vmatpush1.bf16.msra.mxu0 0
        %3281 = vmatprep.subr.bf16.mxu0 0
        %3282 = vmatpush1.bf16.msra.mxu0 0
        %3283 = vmatprep.subr.bf16.mxu0 0
        %3284 = vmatpush1.bf16.msra.mxu0 0
        %3285 = vmatprep.subr.bf16.mxu0 0
        %3286 = vmatpush1.bf16.msra.mxu0 0
        %3287 = vmatprep.subr.bf16.mxu0 0
        %3288 = vmatpush1.bf16.msra.mxu0 0
        %3289 = vmatprep.subr.bf16.mxu0 0
        %3290 = vmatpush1.bf16.msra.mxu0 0
        %3291 = vmatprep.subr.bf16.mxu0 0
        %3292 = vmatpush1.bf16.msra.mxu0 0
        %3293 = vmatprep.subr.bf16.mxu0 0
        %3294 = vmatpush1.bf16.msra.mxu0 0
        %3295 = vmatprep.subr.bf16.mxu0 0
        %3296 = vmatpush1.bf16.msra.mxu0 0
        %3297 = vmatprep.subr.bf16.mxu0 0
        %3298 = vmatpush1.bf16.msra.mxu0 0
        %3299 = vmatprep.mubr.bf16.mxu0 0
        %3300 = vmatmul.mubr.bf16.gmra.mrb[0].mxu0 %v3265
        %v3301 = vpop.f32.mrb[0].mxu0
        %v3302 = vadd.f32 0.0, %v3301
        %v3303 = vpop.f32.mrb[0].mxu0
        %v3304 = vpop.f32.mrb[0].mxu0
        %v3305 = vpop.f32.mrb[0].mxu0
        %3306 = vdwg.mxu0
        %v3307 = vld [vmem:[%s1142] sm:$0xf]
        %v3308 = vld [vmem:[%s1142 + $0x4] sm:$0xf]
        %v3309 = vld [vmem:[%s1142 + $0x8] sm:$0xf]
        %v3310 = vld [vmem:[%s1142 + $0xc] sm:$0xf]
        %s3311 = scalar_lea.vmem [#allocation8], 1
        %v3312 = vld [vmem:[%s3311] sm:$0x1]
        %3313 = vrot.lane.b32.xlu0 %v2685, 120
        %v3314 = vpop.permute.xlu0 %3313
        %3315 = vrot.lane.b32.xlu0 %v2685, 112
        %v3316 = vpop.permute.xlu0 %3315
        %3317 = vrot.lane.b32.xlu0 %v2685, 104
        %v3318 = vpop.permute.xlu0 %3317
        %3319 = vrot.lane.b32.xlu0 %v2758, 120
        %v3320 = vpop.permute.xlu0 %3319
        %3321 = vrot.lane.b32.xlu0 %v2758, 112
        %v3322 = vpop.permute.xlu0 %3321
        %3323 = vrot.lane.b32.xlu0 %v2758, 104
        %v3324 = vpop.permute.xlu0 %3323
        %v3326 = vlaneseq
        %v3327 = vshrl.u32 %v3326, 7
        %v3328 = vsub.s32 0, %v3327
        %v3329 = vrot.slane %v3312, %v3328
        %v3332 = vsel %vm1485, %v2685, 0
        %v3335 = vsel %vm1485, %v2758, 0
        %3337 = vmatprep.subr.bf16.mxu0 0
        %3338 = vmatpush1.bf16.xpose.msra.mxu0 %v3335
        %3339 = vmatprep.subr.bf16.mxu0 0
        %3340 = vmatpush1.bf16.xpose.msra.mxu0 0
        %3341 = vmatprep.subr.bf16.mxu0 0
        %3342 = vmatpush1.bf16.xpose.msra.mxu0 0
        %3343 = vmatprep.subr.bf16.mxu0 0
        %3344 = vmatpush1.bf16.xpose.msra.mxu0 0
        %3345 = vmatprep.subr.bf16.mxu0 0
        %3346 = vmatpush1.bf16.xpose.msra.mxu0 0
        %3347 = vmatprep.subr.bf16.mxu0 0
        %3348 = vmatpush1.bf16.xpose.msra.mxu0 0
        %3349 = vmatprep.subr.bf16.mxu0 0
        %3350 = vmatpush1.bf16.xpose.msra.mxu0 0
        %3351 = vmatprep.subr.bf16.mxu0 0
        %3352 = vmatpush1.bf16.xpose.msra.mxu0 0
        %3353 = vmatprep.subr.bf16.mxu0 0
        %3354 = vmatpush1.bf16.xpose.msra.mxu0 0
        %3355 = vmatprep.subr.bf16.mxu0 0
        %3356 = vmatpush1.bf16.xpose.msra.mxu0 0
        %3357 = vmatprep.subr.bf16.mxu0 0
        %3358 = vmatpush1.bf16.xpose.msra.mxu0 0
        %3359 = vmatprep.subr.bf16.mxu0 0
        %3360 = vmatpush1.bf16.xpose.msra.mxu0 0
        %3361 = vmatprep.subr.bf16.mxu0 0
        %3362 = vmatpush1.bf16.xpose.msra.mxu0 0
        %3363 = vmatprep.subr.bf16.mxu0 0
        %3364 = vmatpush1.bf16.xpose.msra.mxu0 0
        %3365 = vmatprep.subr.bf16.mxu0 0
        %3366 = vmatpush1.bf16.xpose.msra.mxu0 0
        %3367 = vmatprep.subr.bf16.mxu0 0
        %3368 = vmatpush1.bf16.xpose.msra.mxu0 0
        %3369 = vmatprep.mubr.bf16.mxu0 0
        %3370 = vmatmul.mubr.bf16.gmra.mrb[0].mxu0 %v3332
        %v3371 = vpop.f32.mrb[0].mxu0
        %v3372 = vadd.f32 %v3329, %v3371
        %v3373 = vpop.f32.mrb[0].mxu0
        %v3374 = vpop.f32.mrb[0].mxu0
        %v3375 = vpop.f32.mrb[0].mxu0
        %3376 = vdwg.mxu0
        %v3378 = vsel %vm1485, %v3314, 0
        %v3381 = vsel %vm1485, %v3320, 0
        %3383 = vmatprep.subr.bf16.mxu0 0
        %3384 = vmatpush1.bf16.xpose.msra.mxu0 %v3381
        %3385 = vmatprep.subr.bf16.mxu0 0
        %3386 = vmatpush1.bf16.xpose.msra.mxu0 0
        %3387 = vmatprep.subr.bf16.mxu0 0
        %3388 = vmatpush1.bf16.xpose.msra.mxu0 0
        %3389 = vmatprep.subr.bf16.mxu0 0
        %3390 = vmatpush1.bf16.xpose.msra.mxu0 0
        %3391 = vmatprep.subr.bf16.mxu0 0
        %3392 = vmatpush1.bf16.xpose.msra.mxu0 0
        %3393 = vmatprep.subr.bf16.mxu0 0
        %3394 = vmatpush1.bf16.xpose.msra.mxu0 0
        %3395 = vmatprep.subr.bf16.mxu0 0
        %3396 = vmatpush1.bf16.xpose.msra.mxu0 0
        %3397 = vmatprep.subr.bf16.mxu0 0
        %3398 = vmatpush1.bf16.xpose.msra.mxu0 0
        %3399 = vmatprep.subr.bf16.mxu0 0
        %3400 = vmatpush1.bf16.xpose.msra.mxu0 0
        %3401 = vmatprep.subr.bf16.mxu0 0
        %3402 = vmatpush1.bf16.xpose.msra.mxu0 0
        %3403 = vmatprep.subr.bf16.mxu0 0
        %3404 = vmatpush1.bf16.xpose.msra.mxu0 0
        %3405 = vmatprep.subr.bf16.mxu0 0
        %3406 = vmatpush1.bf16.xpose.msra.mxu0 0
        %3407 = vmatprep.subr.bf16.mxu0 0
        %3408 = vmatpush1.bf16.xpose.msra.mxu0 0
        %3409 = vmatprep.subr.bf16.mxu0 0
        %3410 = vmatpush1.bf16.xpose.msra.mxu0 0
        %3411 = vmatprep.subr.bf16.mxu0 0
        %3412 = vmatpush1.bf16.xpose.msra.mxu0 0
        %3413 = vmatprep.subr.bf16.mxu0 0
        %3414 = vmatpush1.bf16.xpose.msra.mxu0 0
        %3415 = vmatprep.mubr.bf16.mxu0 0
        %3416 = vmatmul.mubr.bf16.gmra.mrb[0].mxu0 %v3378
        %v3417 = vpop.f32.mrb[0].mxu0
        %v3418 = vadd.f32 %v3329, %v3417
        %v3419 = vpop.f32.mrb[0].mxu0
        %v3420 = vpop.f32.mrb[0].mxu0
        %v3421 = vpop.f32.mrb[0].mxu0
        %3422 = vdwg.mxu0
        %v3424 = vsel %vm1485, %v3316, 0
        %v3427 = vsel %vm1485, %v3322, 0
        %3429 = vmatprep.subr.bf16.mxu0 0
        %3430 = vmatpush1.bf16.xpose.msra.mxu0 %v3427
        %3431 = vmatprep.subr.bf16.mxu0 0
        %3432 = vmatpush1.bf16.xpose.msra.mxu0 0
        %3433 = vmatprep.subr.bf16.mxu0 0
        %3434 = vmatpush1.bf16.xpose.msra.mxu0 0
        %3435 = vmatprep.subr.bf16.mxu0 0
        %3436 = vmatpush1.bf16.xpose.msra.mxu0 0
        %3437 = vmatprep.subr.bf16.mxu0 0
        %3438 = vmatpush1.bf16.xpose.msra.mxu0 0
        %3439 = vmatprep.subr.bf16.mxu0 0
        %3440 = vmatpush1.bf16.xpose.msra.mxu0 0
        %3441 = vmatprep.subr.bf16.mxu0 0
        %3442 = vmatpush1.bf16.xpose.msra.mxu0 0
        %3443 = vmatprep.subr.bf16.mxu0 0
        %3444 = vmatpush1.bf16.xpose.msra.mxu0 0
        %3445 = vmatprep.subr.bf16.mxu0 0
        %3446 = vmatpush1.bf16.xpose.msra.mxu0 0
        %3447 = vmatprep.subr.bf16.mxu0 0
        %3448 = vmatpush1.bf16.xpose.msra.mxu0 0
        %3449 = vmatprep.subr.bf16.mxu0 0
        %3450 = vmatpush1.bf16.xpose.msra.mxu0 0
        %3451 = vmatprep.subr.bf16.mxu0 0
        %3452 = vmatpush1.bf16.xpose.msra.mxu0 0
        %3453 = vmatprep.subr.bf16.mxu0 0
        %3454 = vmatpush1.bf16.xpose.msra.mxu0 0
        %3455 = vmatprep.subr.bf16.mxu0 0
        %3456 = vmatpush1.bf16.xpose.msra.mxu0 0
        %3457 = vmatprep.subr.bf16.mxu0 0
        %3458 = vmatpush1.bf16.xpose.msra.mxu0 0
        %3459 = vmatprep.subr.bf16.mxu0 0
        %3460 = vmatpush1.bf16.xpose.msra.mxu0 0
        %3461 = vmatprep.mubr.bf16.mxu0 0
        %3462 = vmatmul.mubr.bf16.gmra.mrb[0].mxu0 %v3424
        %v3463 = vpop.f32.mrb[0].mxu0
        %v3464 = vadd.f32 %v3329, %v3463
        %v3465 = vpop.f32.mrb[0].mxu0
        %v3466 = vpop.f32.mrb[0].mxu0
        %v3467 = vpop.f32.mrb[0].mxu0
        %3468 = vdwg.mxu0
        %v3470 = vsel %vm1485, %v3318, 0
        %v3473 = vsel %vm1485, %v3324, 0
        %3475 = vmatprep.subr.bf16.mxu0 0
        %3476 = vmatpush1.bf16.xpose.msra.mxu0 %v3473
        %3477 = vmatprep.subr.bf16.mxu0 0
        %3478 = vmatpush1.bf16.xpose.msra.mxu0 0
        %3479 = vmatprep.subr.bf16.mxu0 0
        %3480 = vmatpush1.bf16.xpose.msra.mxu0 0
        %3481 = vmatprep.subr.bf16.mxu0 0
        %3482 = vmatpush1.bf16.xpose.msra.mxu0 0
        %3483 = vmatprep.subr.bf16.mxu0 0
        %3484 = vmatpush1.bf16.xpose.msra.mxu0 0
        %3485 = vmatprep.subr.bf16.mxu0 0
        %3486 = vmatpush1.bf16.xpose.msra.mxu0 0
        %3487 = vmatprep.subr.bf16.mxu0 0
        %3488 = vmatpush1.bf16.xpose.msra.mxu0 0
        %3489 = vmatprep.subr.bf16.mxu0 0
        %3490 = vmatpush1.bf16.xpose.msra.mxu0 0
        %3491 = vmatprep.subr.bf16.mxu0 0
        %3492 = vmatpush1.bf16.xpose.msra.mxu0 0
        %3493 = vmatprep.subr.bf16.mxu0 0
        %3494 = vmatpush1.bf16.xpose.msra.mxu0 0
        %3495 = vmatprep.subr.bf16.mxu0 0
        %3496 = vmatpush1.bf16.xpose.msra.mxu0 0
        %3497 = vmatprep.subr.bf16.mxu0 0
        %3498 = vmatpush1.bf16.xpose.msra.mxu0 0
        %3499 = vmatprep.subr.bf16.mxu0 0
        %3500 = vmatpush1.bf16.xpose.msra.mxu0 0
        %3501 = vmatprep.subr.bf16.mxu0 0
        %3502 = vmatpush1.bf16.xpose.msra.mxu0 0
        %3503 = vmatprep.subr.bf16.mxu0 0
        %3504 = vmatpush1.bf16.xpose.msra.mxu0 0
        %3505 = vmatprep.subr.bf16.mxu0 0
        %3506 = vmatpush1.bf16.xpose.msra.mxu0 0
        %3507 = vmatprep.mubr.bf16.mxu0 0
        %3508 = vmatmul.mubr.bf16.gmra.mrb[0].mxu0 %v3470
        %v3509 = vpop.f32.mrb[0].mxu0
        %v3510 = vadd.f32 %v3329, %v3509
        %v3511 = vpop.f32.mrb[0].mxu0
        %v3512 = vpop.f32.mrb[0].mxu0
        %v3513 = vpop.f32.mrb[0].mxu0
        %3514 = vdwg.mxu0
        %v3515 = vsel %vm1485, %v3372, -inf
        %3516 = vmax.xlane.f32.xlu0 %v3515
        %v3517 = vpop.xlane.xlu0 %3516
        %v3518 = vsel %vm1485, %v3418, -inf
        %3519 = vmax.xlane.f32.xlu0 %v3518
        %v3520 = vpop.xlane.xlu0 %3519
        %v3521 = vsel %vm1485, %v3464, -inf
        %3522 = vmax.xlane.f32.xlu0 %v3521
        %v3523 = vpop.xlane.xlu0 %3522
        %v3524 = vsel %vm1485, %v3510, -inf
        %3525 = vmax.xlane.f32.xlu0 %v3524
        %v3526 = vpop.xlane.xlu0 %3525
        %v3527 = vsub.f32 -inf, %v3517
        %v3528 = vsub.f32 -inf, %v3520
        %v3529 = vsub.f32 -inf, %v3523
        %v3530 = vsub.f32 -inf, %v3526
        %v3531 = vmul.f32 %v3527, 1.442695
        %v3532 = vpow.pop %v3531
        %v3533 = vmul.f32 %v3528, 1.442695
        %v3534 = vpow.pop %v3533
        %v3535 = vmul.f32 %v3529, 1.442695
        %v3536 = vpow.pop %v3535
        %v3537 = vmul.f32 %v3530, 1.442695
        %v3538 = vpow.pop %v3537
        %v3539 = vsub.f32 %v3372, %v3517
        %v3540 = vsub.f32 %v3418, %v3520
        %v3541 = vsub.f32 %v3464, %v3523
        %v3542 = vsub.f32 %v3510, %v3526
        %v3543 = vmul.f32 %v3539, 1.442695
        %v3544 = vpow.pop %v3543
        %v3545 = vmul.f32 %v3540, 1.442695
        %v3546 = vpow.pop %v3545
        %v3547 = vmul.f32 %v3541, 1.442695
        %v3548 = vpow.pop %v3547
        %v3549 = vmul.f32 %v3542, 1.442695
        %v3550 = vpow.pop %v3549
        %v3551 = vmul.f32 %v3532, 0.0
        %v3552 = vmul.f32 %v3534, 0.0
        %v3553 = vmul.f32 %v3536, 0.0
        %v3554 = vmul.f32 %v3538, 0.0
        %v3555 = vsel %vm1485, %v3544, 0.0
        %3556 = vadd.xlane.f32.xlu0 %v3555
        %v3557 = vpop.xlane.xlu0 %3556
        %v3558 = vsel %vm1485, %v3546, 0.0
        %3559 = vadd.xlane.f32.xlu0 %v3558
        %v3560 = vpop.xlane.xlu0 %3559
        %v3561 = vsel %vm1485, %v3548, 0.0
        %3562 = vadd.xlane.f32.xlu0 %v3561
        %v3563 = vpop.xlane.xlu0 %3562
        %v3564 = vsel %vm1485, %v3550, 0.0
        %3565 = vadd.xlane.f32.xlu0 %v3564
        %v3566 = vpop.xlane.xlu0 %3565
        %v3567 = vadd.f32 %v3551, %v3557
        %v3568 = vadd.f32 %v3552, %v3560
        %v3569 = vadd.f32 %v3553, %v3563
        %v3570 = vadd.f32 %v3554, %v3566
        %v3571 = vpack.c.bf16 %v3544, %v3544
        %v3572 = vpack.c.bf16 %v3546, %v3546
        %v3573 = vpack.c.bf16 %v3548, %v3548
        %v3574 = vpack.c.bf16 %v3550, %v3550
        %3575 = vrot.lane.b32.xlu0 %v2758, 96
        %v3576 = vpop.permute.xlu0 %3575
        %v3578 = vsel %vm1485, %v3571, 0
        %v3581 = vsel %vm1747, %v3576, 0
        %3583 = vmatprep.subr.bf16.mxu0 0
        %3584 = vmatpush1.bf16.msra.mxu0 %v3581
        %3585 = vmatprep.subr.bf16.mxu0 0
        %3586 = vmatpush1.bf16.msra.mxu0 0
        %3587 = vmatprep.subr.bf16.mxu0 0
        %3588 = vmatpush1.bf16.msra.mxu0 0
        %3589 = vmatprep.subr.bf16.mxu0 0
        %3590 = vmatpush1.bf16.msra.mxu0 0
        %3591 = vmatprep.subr.bf16.mxu0 0
        %3592 = vmatpush1.bf16.msra.mxu0 0
        %3593 = vmatprep.subr.bf16.mxu0 0
        %3594 = vmatpush1.bf16.msra.mxu0 0
        %3595 = vmatprep.subr.bf16.mxu0 0
        %3596 = vmatpush1.bf16.msra.mxu0 0
        %3597 = vmatprep.subr.bf16.mxu0 0
        %3598 = vmatpush1.bf16.msra.mxu0 0
        %3599 = vmatprep.subr.bf16.mxu0 0
        %3600 = vmatpush1.bf16.msra.mxu0 0
        %3601 = vmatprep.subr.bf16.mxu0 0
        %3602 = vmatpush1.bf16.msra.mxu0 0
        %3603 = vmatprep.subr.bf16.mxu0 0
        %3604 = vmatpush1.bf16.msra.mxu0 0
        %3605 = vmatprep.subr.bf16.mxu0 0
        %3606 = vmatpush1.bf16.msra.mxu0 0
        %3607 = vmatprep.subr.bf16.mxu0 0
        %3608 = vmatpush1.bf16.msra.mxu0 0
        %3609 = vmatprep.subr.bf16.mxu0 0
        %3610 = vmatpush1.bf16.msra.mxu0 0
        %3611 = vmatprep.subr.bf16.mxu0 0
        %3612 = vmatpush1.bf16.msra.mxu0 0
        %3613 = vmatprep.subr.bf16.mxu0 0
        %3614 = vmatpush1.bf16.msra.mxu0 0
        %3615 = vmatprep.mubr.bf16.mxu0 0
        %3616 = vmatmul.mubr.bf16.gmra.mrb[0].mxu0 %v3578
        %v3617 = vpop.f32.mrb[0].mxu0
        %v3618 = vadd.f32 0.0, %v3617
        %v3619 = vpop.f32.mrb[0].mxu0
        %v3620 = vpop.f32.mrb[0].mxu0
        %v3621 = vpop.f32.mrb[0].mxu0
        %3622 = vdwg.mxu0
        %v3623 = vunpack.c.l.b16 %v3320
        %v3624 = vpack.c.b16 %v3623, %v3623
        %3625 = vrot.lane.b32.xlu0 %v3624, 96
        %v3626 = vpop.permute.xlu0 %3625
        %v3628 = vsel %vm1485, %v3572, 0
        %v3631 = vsel %vm1747, %v3626, 0
        %3633 = vmatprep.subr.bf16.mxu0 0
        %3634 = vmatpush1.bf16.msra.mxu0 %v3631
        %3635 = vmatprep.subr.bf16.mxu0 0
        %3636 = vmatpush1.bf16.msra.mxu0 0
        %3637 = vmatprep.subr.bf16.mxu0 0
        %3638 = vmatpush1.bf16.msra.mxu0 0
        %3639 = vmatprep.subr.bf16.mxu0 0
        %3640 = vmatpush1.bf16.msra.mxu0 0
        %3641 = vmatprep.subr.bf16.mxu0 0
        %3642 = vmatpush1.bf16.msra.mxu0 0
        %3643 = vmatprep.subr.bf16.mxu0 0
        %3644 = vmatpush1.bf16.msra.mxu0 0
        %3645 = vmatprep.subr.bf16.mxu0 0
        %3646 = vmatpush1.bf16.msra.mxu0 0
        %3647 = vmatprep.subr.bf16.mxu0 0
        %3648 = vmatpush1.bf16.msra.mxu0 0
        %3649 = vmatprep.subr.bf16.mxu0 0
        %3650 = vmatpush1.bf16.msra.mxu0 0
        %3651 = vmatprep.subr.bf16.mxu0 0
        %3652 = vmatpush1.bf16.msra.mxu0 0
        %3653 = vmatprep.subr.bf16.mxu0 0
        %3654 = vmatpush1.bf16.msra.mxu0 0
        %3655 = vmatprep.subr.bf16.mxu0 0
        %3656 = vmatpush1.bf16.msra.mxu0 0
        %3657 = vmatprep.subr.bf16.mxu0 0
        %3658 = vmatpush1.bf16.msra.mxu0 0
        %3659 = vmatprep.subr.bf16.mxu0 0
        %3660 = vmatpush1.bf16.msra.mxu0 0
        %3661 = vmatprep.subr.bf16.mxu0 0
        %3662 = vmatpush1.bf16.msra.mxu0 0
        %3663 = vmatprep.subr.bf16.mxu0 0
        %3664 = vmatpush1.bf16.msra.mxu0 0
        %3665 = vmatprep.mubr.bf16.mxu0 0
        %3666 = vmatmul.mubr.bf16.gmra.mrb[0].mxu0 %v3628
        %v3667 = vpop.f32.mrb[0].mxu0
        %v3668 = vadd.f32 0.0, %v3667
        %v3669 = vpop.f32.mrb[0].mxu0
        %v3670 = vpop.f32.mrb[0].mxu0
        %v3671 = vpop.f32.mrb[0].mxu0
        %3672 = vdwg.mxu0
        %v3673 = vunpack.c.l.b16 %v3322
        %v3674 = vpack.c.b16 %v3673, %v3673
        %3675 = vrot.lane.b32.xlu0 %v3674, 96
        %v3676 = vpop.permute.xlu0 %3675
        %v3678 = vsel %vm1485, %v3573, 0
        %v3681 = vsel %vm1747, %v3676, 0
        %3683 = vmatprep.subr.bf16.mxu0 0
        %3684 = vmatpush1.bf16.msra.mxu0 %v3681
        %3685 = vmatprep.subr.bf16.mxu0 0
        %3686 = vmatpush1.bf16.msra.mxu0 0
        %3687 = vmatprep.subr.bf16.mxu0 0
        %3688 = vmatpush1.bf16.msra.mxu0 0
        %3689 = vmatprep.subr.bf16.mxu0 0
        %3690 = vmatpush1.bf16.msra.mxu0 0
        %3691 = vmatprep.subr.bf16.mxu0 0
        %3692 = vmatpush1.bf16.msra.mxu0 0
        %3693 = vmatprep.subr.bf16.mxu0 0
        %3694 = vmatpush1.bf16.msra.mxu0 0
        %3695 = vmatprep.subr.bf16.mxu0 0
        %3696 = vmatpush1.bf16.msra.mxu0 0
        %3697 = vmatprep.subr.bf16.mxu0 0
        %3698 = vmatpush1.bf16.msra.mxu0 0
        %3699 = vmatprep.subr.bf16.mxu0 0
        %3700 = vmatpush1.bf16.msra.mxu0 0
        %3701 = vmatprep.subr.bf16.mxu0 0
        %3702 = vmatpush1.bf16.msra.mxu0 0
        %3703 = vmatprep.subr.bf16.mxu0 0
        %3704 = vmatpush1.bf16.msra.mxu0 0
        %3705 = vmatprep.subr.bf16.mxu0 0
        %3706 = vmatpush1.bf16.msra.mxu0 0
        %3707 = vmatprep.subr.bf16.mxu0 0
        %3708 = vmatpush1.bf16.msra.mxu0 0
        %3709 = vmatprep.subr.bf16.mxu0 0
        %3710 = vmatpush1.bf16.msra.mxu0 0
        %3711 = vmatprep.subr.bf16.mxu0 0
        %3712 = vmatpush1.bf16.msra.mxu0 0
        %3713 = vmatprep.subr.bf16.mxu0 0
        %3714 = vmatpush1.bf16.msra.mxu0 0
        %3715 = vmatprep.mubr.bf16.mxu0 0
        %3716 = vmatmul.mubr.bf16.gmra.mrb[0].mxu0 %v3678
        %v3717 = vpop.f32.mrb[0].mxu0
        %v3718 = vadd.f32 0.0, %v3717
        %v3719 = vpop.f32.mrb[0].mxu0
        %v3720 = vpop.f32.mrb[0].mxu0
        %v3721 = vpop.f32.mrb[0].mxu0
        %3722 = vdwg.mxu0
        %v3723 = vunpack.c.l.b16 %v3324
        %v3724 = vpack.c.b16 %v3723, %v3723
        %3725 = vrot.lane.b32.xlu0 %v3724, 96
        %v3726 = vpop.permute.xlu0 %3725
        %v3728 = vsel %vm1485, %v3574, 0
        %v3731 = vsel %vm1747, %v3726, 0
        %3733 = vmatprep.subr.bf16.mxu0 0
        %3734 = vmatpush1.bf16.msra.mxu0 %v3731
        %3735 = vmatprep.subr.bf16.mxu0 0
        %3736 = vmatpush1.bf16.msra.mxu0 0
        %3737 = vmatprep.subr.bf16.mxu0 0
        %3738 = vmatpush1.bf16.msra.mxu0 0
        %3739 = vmatprep.subr.bf16.mxu0 0
        %3740 = vmatpush1.bf16.msra.mxu0 0
        %3741 = vmatprep.subr.bf16.mxu0 0
        %3742 = vmatpush1.bf16.msra.mxu0 0
        %3743 = vmatprep.subr.bf16.mxu0 0
        %3744 = vmatpush1.bf16.msra.mxu0 0
        %3745 = vmatprep.subr.bf16.mxu0 0
        %3746 = vmatpush1.bf16.msra.mxu0 0
        %3747 = vmatprep.subr.bf16.mxu0 0
        %3748 = vmatpush1.bf16.msra.mxu0 0
        %3749 = vmatprep.subr.bf16.mxu0 0
        %3750 = vmatpush1.bf16.msra.mxu0 0
        %3751 = vmatprep.subr.bf16.mxu0 0
        %3752 = vmatpush1.bf16.msra.mxu0 0
        %3753 = vmatprep.subr.bf16.mxu0 0
        %3754 = vmatpush1.bf16.msra.mxu0 0
        %3755 = vmatprep.subr.bf16.mxu0 0
        %3756 = vmatpush1.bf16.msra.mxu0 0
        %3757 = vmatprep.subr.bf16.mxu0 0
        %3758 = vmatpush1.bf16.msra.mxu0 0
        %3759 = vmatprep.subr.bf16.mxu0 0
        %3760 = vmatpush1.bf16.msra.mxu0 0
        %3761 = vmatprep.subr.bf16.mxu0 0
        %3762 = vmatpush1.bf16.msra.mxu0 0
        %3763 = vmatprep.subr.bf16.mxu0 0
        %3764 = vmatpush1.bf16.msra.mxu0 0
        %3765 = vmatprep.mubr.bf16.mxu0 0
        %3766 = vmatmul.mubr.bf16.gmra.mrb[0].mxu0 %v3728
        %v3767 = vpop.f32.mrb[0].mxu0
        %v3768 = vadd.f32 0.0, %v3767
        %v3769 = vpop.f32.mrb[0].mxu0
        %v3770 = vpop.f32.mrb[0].mxu0
        %v3771 = vpop.f32.mrb[0].mxu0
        %3772 = vdwg.mxu0
        %v3773 = vadd.f32 %v3551, %v3618
        %v3774 = vadd.f32 %v3552, %v3668
        %v3775 = vadd.f32 %v3553, %v3718
        %v3776 = vadd.f32 %v3554, %v3768
        %v3777 = vrcp.pop %v3567
        %v3778 = vrcp.pop %v3568
        %v3779 = vrcp.pop %v3569
        %v3780 = vrcp.pop %v3570
        %v3781 = vmul.f32 %v3773, %v3777
        %v3782 = vmul.f32 %v3774, %v3778
        %v3783 = vmul.f32 %v3775, %v3779
        %v3784 = vmul.f32 %v3776, %v3780
        %3786 = vrot.lane.b32.xlu0 %v3782, 8
        %v3787 = vpop.permute.xlu0 %3786
        %3790 = vrot.lane.b32.xlu0 %v3783, 16
        %v3791 = vpop.permute.xlu0 %3790
        %3794 = vrot.lane.b32.xlu0 %v3784, 24
        %v3795 = vpop.permute.xlu0 %3794
        %v3797 = vsel %vm1485, %v3781, %v3787
        %v3798 = vsel %vm1960, %v3797, %v3791
        %v3799 = vsel %vm1962, %v3798, %v3795
        %v3800 = vpack.c.bf16 %v3799, %v3799
        %v3805 = vunpack.c.l.b16 %v3307
        %v3806 = vunpack.c.l.b16 %v3308
        %v3807 = vunpack.c.l.b16 %v3309
        %v3808 = vunpack.c.l.b16 %v3310
        %v3809 = vpack.c.b16 %v3806, %v3805
        %v3810 = vpack.c.b16 %v3808, %v3807
        %v3814 = vsel %vm1414, %v3800, 0
        %3816 = vmatprep.subr.bf16.mxu0 0
        %3817 = vmatpush1.bf16.msra.mxu0 %v3809
        %3818 = vmatprep.subr.bf16.mxu0 0
        %3819 = vmatpush1.bf16.msra.mxu0 %v3810
        %3820 = vmatprep.subr.bf16.mxu0 0
        %3821 = vmatpush1.bf16.msra.mxu0 0
        %3822 = vmatprep.subr.bf16.mxu0 0
        %3823 = vmatpush1.bf16.msra.mxu0 0
        %3824 = vmatprep.subr.bf16.mxu0 0
        %3825 = vmatpush1.bf16.msra.mxu0 0
        %3826 = vmatprep.subr.bf16.mxu0 0
        %3827 = vmatpush1.bf16.msra.mxu0 0
        %3828 = vmatprep.subr.bf16.mxu0 0
        %3829 = vmatpush1.bf16.msra.mxu0 0
        %3830 = vmatprep.subr.bf16.mxu0 0
        %3831 = vmatpush1.bf16.msra.mxu0 0
        %3832 = vmatprep.subr.bf16.mxu0 0
        %3833 = vmatpush1.bf16.msra.mxu0 0
        %3834 = vmatprep.subr.bf16.mxu0 0
        %3835 = vmatpush1.bf16.msra.mxu0 0
        %3836 = vmatprep.subr.bf16.mxu0 0
        %3837 = vmatpush1.bf16.msra.mxu0 0
        %3838 = vmatprep.subr.bf16.mxu0 0
        %3839 = vmatpush1.bf16.msra.mxu0 0
        %3840 = vmatprep.subr.bf16.mxu0 0
        %3841 = vmatpush1.bf16.msra.mxu0 0
        %3842 = vmatprep.subr.bf16.mxu0 0
        %3843 = vmatpush1.bf16.msra.mxu0 0
        %3844 = vmatprep.subr.bf16.mxu0 0
        %3845 = vmatpush1.bf16.msra.mxu0 0
        %3846 = vmatprep.subr.bf16.mxu0 0
        %3847 = vmatpush1.bf16.msra.mxu0 0
        %3848 = vmatprep.mubr.bf16.mxu0 0
        %3849 = vmatmul.mubr.bf16.gmra.mrb[0].mxu0 %v3814
        %v3850 = vpop.f32.mrb[0].mxu0
        %v3851 = vadd.f32 0.0, %v3850
        %v3852 = vpop.f32.mrb[0].mxu0
        %v3853 = vpop.f32.mrb[0].mxu0
        %v3854 = vpop.f32.mrb[0].mxu0
        %3855 = vdwg.mxu0
        %v3856 = vadd.f32 %v3302, %v2617
        %v3857 = vadd.f32 %v3851, %v2618
        %v3858 = vld [vmem:[%s1150] sm:$0x1]
        %v3859 = vld [vmem:[%s1158] sm:$0x1]
        %v3860 = vsel %vm1414, %v3856, 0.0
        %3861 = vadd.xlane.f32.xlu0 %v3860
        %v3862 = vpop.xlane.xlu0 %3861
        %v3863 = vsel %vm1414, %v3857, 0.0
        %3864 = vadd.xlane.f32.xlu0 %v3863
        %v3865 = vpop.xlane.xlu0 %3864
        %v3866 = vmul.f32 %v3862, %v2582
        %v3867 = vmul.f32 %v3865, %v2582
        %v3868 = vsub.f32 %v3856, %v3866
        %v3869 = vsub.f32 %v3857, %v3867
        %v3870 = vmul.f32 %v3868, %v3868
        %v3871 = vmul.f32 %v3869, %v3869
        %v3872 = vsel %vm1414, %v3870, 0.0
        %3873 = vadd.xlane.f32.xlu0 %v3872
        %v3874 = vpop.xlane.xlu0 %3873
        %v3875 = vsel %vm1414, %v3871, 0.0
        %3876 = vadd.xlane.f32.xlu0 %v3875
        %v3877 = vpop.xlane.xlu0 %3876
        %v3878 = vmul.f32 %v3874, %v2582
        %v3879 = vmul.f32 %v3877, %v2582
        %v3880 = vadd.f32 %v3878, 1e-06
        %v3881 = vadd.f32 %v3879, 1e-06
        %v3882 = vrsqrt.pop %v3880
        %v3883 = vrsqrt.pop %v3881
        %v3884 = vmul.f32 %v3868, %v3882
        %v3885 = vmul.f32 %v3869, %v3883
        %v3887 = vlaneseq
        %v3888 = vshrl.u32 %v3887, 7
        %v3889 = vsub.s32 0, %v3888
        %v3890 = vrot.slane %v3858, %v3889
        %v3892 = vmul.f32 %v3884, %v3890
        %v3893 = vmul.f32 %v3885, %v3890
        %v3895 = vlaneseq
        %v3896 = vshrl.u32 %v3895, 7
        %v3897 = vsub.s32 0, %v3896
        %v3898 = vrot.slane %v3859, %v3897
        %v3900 = vadd.f32 %v3892, %v3898
        %v3901 = vadd.f32 %v3893, %v3898
        %v3902 = vpack.c.bf16 %v3901, %v3900
        %v3903 = vld [vmem:[%s1167] sm:$0xf]
        %v3904 = vld [vmem:[%s1167 + $0x4] sm:$0xf]
        %v3905 = vld [vmem:[%s1167 + $0x8] sm:$0xf]
        %v3906 = vld [vmem:[%s1167 + $0xc] sm:$0xf]
        %v3907 = vld [vmem:[%s1175] sm:$0x1]
        %v3909 = vlaneseq
        %v3910 = vshrl.u32 %v3909, 7
        %v3911 = vsub.s32 0, %v3910
        %v3912 = vrot.slane %v3907, %v3911
        %v3918 = vunpack.c.l.b16 %v3903
        %v3919 = vunpack.c.l.b16 %v3904
        %v3920 = vunpack.c.l.b16 %v3905
        %v3921 = vunpack.c.l.b16 %v3906
        %v3922 = vpack.c.b16 %v3919, %v3918
        %v3923 = vpack.c.b16 %v3921, %v3920
        %v3927 = vsel %vm1414, %v3902, 0
        %3929 = vmatprep.subr.bf16.mxu0 0
        %3930 = vmatpush1.bf16.msra.mxu0 %v3922
        %3931 = vmatprep.subr.bf16.mxu0 0
        %3932 = vmatpush1.bf16.msra.mxu0 %v3923
        %3933 = vmatprep.subr.bf16.mxu0 0
        %3934 = vmatpush1.bf16.msra.mxu0 0
        %3935 = vmatprep.subr.bf16.mxu0 0
        %3936 = vmatpush1.bf16.msra.mxu0 0
        %3937 = vmatprep.subr.bf16.mxu0 0
        %3938 = vmatpush1.bf16.msra.mxu0 0
        %3939 = vmatprep.subr.bf16.mxu0 0
        %3940 = vmatpush1.bf16.msra.mxu0 0
        %3941 = vmatprep.subr.bf16.mxu0 0
        %3942 = vmatpush1.bf16.msra.mxu0 0
        %3943 = vmatprep.subr.bf16.mxu0 0
        %3944 = vmatpush1.bf16.msra.mxu0 0
        %3945 = vmatprep.subr.bf16.mxu0 0
        %3946 = vmatpush1.bf16.msra.mxu0 0
        %3947 = vmatprep.subr.bf16.mxu0 0
        %3948 = vmatpush1.bf16.msra.mxu0 0
        %3949 = vmatprep.subr.bf16.mxu0 0
        %3950 = vmatpush1.bf16.msra.mxu0 0
        %3951 = vmatprep.subr.bf16.mxu0 0
        %3952 = vmatpush1.bf16.msra.mxu0 0
        %3953 = vmatprep.subr.bf16.mxu0 0
        %3954 = vmatpush1.bf16.msra.mxu0 0
        %3955 = vmatprep.subr.bf16.mxu0 0
        %3956 = vmatpush1.bf16.msra.mxu0 0
        %3957 = vmatprep.subr.bf16.mxu0 0
        %3958 = vmatpush1.bf16.msra.mxu0 0
        %3959 = vmatprep.subr.bf16.mxu0 0
        %3960 = vmatpush1.bf16.msra.mxu0 0
        %3961 = vmatprep.mubr.bf16.mxu0 0
        %3962 = vmatmul.mubr.bf16.gmra.mrb[0].mxu0 %v3927
        %v3963 = vpop.f32.mrb[0].mxu0
        %v3964 = vadd.f32 %v3912, %v3963
        %v3965 = vpop.f32.mrb[0].mxu0
        %v3966 = vpop.f32.mrb[0].mxu0
        %v3967 = vadd.f32 %v3912, %v3966
        %v3968 = vpop.f32.mrb[0].mxu0
        %3969 = vdwg.mxu0
        %v3970 = vmax.f32 %v3964, 0.0
        %v3971 = vmax.f32 %v3967, 0.0
        %v3972 = vpack.c.bf16 %v3971, %v3970
        %v3973 = vld [vmem:[%s1184] sm:$0xf]
        %v3974 = vld [vmem:[%s1184 + $0x4] sm:$0xf]
        %v3975 = vld [vmem:[%s1184 + $0x8] sm:$0xf]
        %v3976 = vld [vmem:[%s1184 + $0xc] sm:$0xf]
        %v3977 = vld [vmem:[%s1184 + $0x10] sm:$0xf]
        %v3978 = vld [vmem:[%s1184 + $0x14] sm:$0xf]
        %v3979 = vld [vmem:[%s1184 + $0x18] sm:$0xf]
        %v3980 = vld [vmem:[%s1184 + $0x1c] sm:$0xf]
        %v3981 = vld [vmem:[%s1192] sm:$0x1]
        %v3983 = vlaneseq
        %v3984 = vshrl.u32 %v3983, 7
        %v3985 = vsub.s32 0, %v3984
        %v3986 = vrot.slane %v3981, %v3985
        %v3996 = vunpack.c.l.b16 %v3973
        %v3997 = vunpack.c.l.b16 %v3974
        %v3998 = vunpack.c.l.b16 %v3975
        %v3999 = vunpack.c.l.b16 %v3976
        %v4000 = vunpack.c.l.b16 %v3977
        %v4001 = vunpack.c.l.b16 %v3978
        %v4002 = vunpack.c.l.b16 %v3979
        %v4003 = vunpack.c.l.b16 %v3980
        %v4004 = vpack.c.b16 %v3997, %v3996
        %v4005 = vpack.c.b16 %v3999, %v3998
        %v4006 = vpack.c.b16 %v4001, %v4000
        %v4007 = vpack.c.b16 %v4003, %v4002
        %vm4012 = vcmask 523264
        %v4014 = vsel %vm4012, %v3972, 0
        %4016 = vmatprep.subr.bf16.mxu0 0
        %4017 = vmatpush1.bf16.msra.mxu0 %v4004
        %4018 = vmatprep.subr.bf16.mxu0 0
        %4019 = vmatpush1.bf16.msra.mxu0 %v4005
        %4020 = vmatprep.subr.bf16.mxu0 0
        %4021 = vmatpush1.bf16.msra.mxu0 %v4006
        %4022 = vmatprep.subr.bf16.mxu0 0
        %4023 = vmatpush1.bf16.msra.mxu0 %v4007
        %4024 = vmatprep.subr.bf16.mxu0 0
        %4025 = vmatpush1.bf16.msra.mxu0 0
        %4026 = vmatprep.subr.bf16.mxu0 0
        %4027 = vmatpush1.bf16.msra.mxu0 0
        %4028 = vmatprep.subr.bf16.mxu0 0
        %4029 = vmatpush1.bf16.msra.mxu0 0
        %4030 = vmatprep.subr.bf16.mxu0 0
        %4031 = vmatpush1.bf16.msra.mxu0 0
        %4032 = vmatprep.subr.bf16.mxu0 0
        %4033 = vmatpush1.bf16.msra.mxu0 0
        %4034 = vmatprep.subr.bf16.mxu0 0
        %4035 = vmatpush1.bf16.msra.mxu0 0
        %4036 = vmatprep.subr.bf16.mxu0 0
        %4037 = vmatpush1.bf16.msra.mxu0 0
        %4038 = vmatprep.subr.bf16.mxu0 0
        %4039 = vmatpush1.bf16.msra.mxu0 0
        %4040 = vmatprep.subr.bf16.mxu0 0
        %4041 = vmatpush1.bf16.msra.mxu0 0
        %4042 = vmatprep.subr.bf16.mxu0 0
        %4043 = vmatpush1.bf16.msra.mxu0 0
        %4044 = vmatprep.subr.bf16.mxu0 0
        %4045 = vmatpush1.bf16.msra.mxu0 0
        %4046 = vmatprep.subr.bf16.mxu0 0
        %4047 = vmatpush1.bf16.msra.mxu0 0
        %4048 = vmatprep.mubr.bf16.mxu0 0
        %4049 = vmatmul.mubr.bf16.gmra.mrb[0].mxu0 %v4014
        %v4050 = vpop.f32.mrb[0].mxu0
        %v4051 = vadd.f32 %v3986, %v4050
        %v4052 = vpop.f32.mrb[0].mxu0
        %v4053 = vpop.f32.mrb[0].mxu0
        %v4054 = vadd.f32 %v3986, %v4053
        %v4055 = vpop.f32.mrb[0].mxu0
        %4056 = vdwg.mxu0
        %v4057 = vadd.f32 %v4051, %v3900
        %v4058 = vadd.f32 %v4054, %v3901
        %v4059 = vld [vmem:[%s1200] sm:$0x1]
        %v4060 = vld [vmem:[%s1208] sm:$0x1]
        %v4061 = vsel %vm1414, %v4057, 0.0
        %4062 = vadd.xlane.f32.xlu0 %v4061
        %v4063 = vpop.xlane.xlu0 %4062
        %v4064 = vsel %vm1414, %v4058, 0.0
        %4065 = vadd.xlane.f32.xlu0 %v4064
        %v4066 = vpop.xlane.xlu0 %4065
        %v4067 = vmul.f32 %v4063, %v2582
        %v4068 = vmul.f32 %v4066, %v2582
        %v4069 = vsub.f32 %v4057, %v4067
        %v4070 = vsub.f32 %v4058, %v4068
        %v4071 = vmul.f32 %v4069, %v4069
        %v4072 = vmul.f32 %v4070, %v4070
        %v4073 = vsel %vm1414, %v4071, 0.0
        %4074 = vadd.xlane.f32.xlu0 %v4073
        %v4075 = vpop.xlane.xlu0 %4074
        %v4076 = vsel %vm1414, %v4072, 0.0
        %4077 = vadd.xlane.f32.xlu0 %v4076
        %v4078 = vpop.xlane.xlu0 %4077
        %v4079 = vmul.f32 %v4075, %v2582
        %v4080 = vmul.f32 %v4078, %v2582
        %v4081 = vadd.f32 %v4079, 1e-06
        %v4082 = vadd.f32 %v4080, 1e-06
        %v4083 = vrsqrt.pop %v4081
        %v4084 = vrsqrt.pop %v4082
        %v4085 = vmul.f32 %v4069, %v4083
        %v4086 = vmul.f32 %v4070, %v4084
        %v4088 = vlaneseq
        %v4089 = vshrl.u32 %v4088, 7
        %v4090 = vsub.s32 0, %v4089
        %v4091 = vrot.slane %v4059, %v4090
        %v4093 = vmul.f32 %v4085, %v4091
        %v4094 = vmul.f32 %v4086, %v4091
        %v4096 = vlaneseq
        %v4097 = vshrl.u32 %v4096, 7
        %v4098 = vsub.s32 0, %v4097
        %v4099 = vrot.slane %v4060, %v4098
        %v4101 = vadd.f32 %v4093, %v4099
        %v4102 = vadd.f32 %v4094, %v4099
        %4103 = vst.msk [vmem:[#allocation37] sm:$0xff] %vm1414, %v4101
        %4104 = vst.msk [vmem:[#allocation37 + $0x8] sm:$0xff] %vm1414, %v4102
        // Predicated region
        $region201: #{tpu_custom_call.1} parent=107 // pred_check
          %p4105 = pneg %p649
        $region202: #{tpu_custom_call.1} parent=107 // pred_check_branch
          %4107 = sbr.rel (%p4105) target = $region204
        $region203: #{tpu_custom_call.1} parent=107 // pred_region
          %s4108 = smul.u32 2, %s66
          %s4110 = ssub.s32 256, 256
          %4111 = vsyncadd [#allocation4], %s4110
          %s4112 = smul.addr %s4108, 128
          %s4113 = scalar_lea.hbm %s22, %s4112
          %s4114 = sshll.u32 [#allocation37], 4
          %s4115 = int_to_ptr.vmem [resolvable:$true] %s4114
          %4120 = dma.vmem_to_hbm [thread:$0]  %s4115, 256, %s4113, [#allocation4], 128, 128, 8
        $region204: #{tpu_custom_call.1} parent=107 // pred_fallthru
          _
        // Predicated region
        $region205: #{tpu_custom_call.1} parent=107 // pred_check
          %p4121 = pneg %p649
        $region206: #{tpu_custom_call.1} parent=107 // pred_check_branch
          %4123 = sbr.rel (%p4121) target = $region208
        $region207: #{tpu_custom_call.1} parent=107 // pred_region
          %4124 = dma.done [#allocation4], 256
        $region208: #{tpu_custom_call.1} parent=107 // pred_fallthru
          _
      $region108: #{tpu_custom_call.1} parent=5 // pred_fallthru
        _
      %p4125 = scmp.le.s32.totalorder 2, %s57
      // Predicated region
      $region209: #{tpu_custom_call.1} parent=5 // pred_check
        %p4126 = pneg %p4125
      $region210: #{tpu_custom_call.1} parent=5 // pred_check_branch
        %4128 = sbr.rel (%p4126) target = $region212
      $region211: #{tpu_custom_call.1} parent=5 // pred_region
        %s4129 = ssub.s32 %s57, 2
      $region212: #{tpu_custom_call.1} parent=5 // pred_fallthru
        _
    $region6: #{tpu_custom_call.1} parent=1 // loop_footer
      %s61 = sadd.s32 1, %s57
    $region7: #{tpu_custom_call.1} parent=1 // loop_footer_branch
      %56 = sbr.rel target = $region3
    $region8: #{tpu_custom_call.1} parent=1 // loop_exit
      _
    %4130 = vsyncpa [#allocation3], 1
    %s4131 = scalar_lea.sflag [#allocation3], 1
    %4132 = vsyncpa %s4131, 1
    %4133 = vsyncpa [#allocation6], 1
    %4134 = vsyncpa [#allocation9], 1
    %4135 = vsyncpa [#allocation12], 1
    %4136 = vsyncpa [#allocation15], 1
    %s4137 = scalar_lea.sflag [#allocation15], 1
    %4138 = vsyncpa %s4137, 1
    %4139 = vsyncpa [#allocation18], 1
    %s4140 = scalar_lea.sflag [#allocation18], 1
    %4141 = vsyncpa %s4140, 1
    %4142 = vsyncpa [#allocation21], 1
    %s4143 = scalar_lea.sflag [#allocation21], 1
    %4144 = vsyncpa %s4143, 1
    %4145 = vsyncpa [#allocation24], 1
    %s4146 = scalar_lea.sflag [#allocation24], 1
    %4147 = vsyncpa %s4146, 1
    %4148 = vsyncpa [#allocation27], 1
    %s4149 = scalar_lea.sflag [#allocation27], 1
    %4150 = vsyncpa %s4149, 1
    %4151 = vsyncpa [#allocation30], 1
    %s4152 = scalar_lea.sflag [#allocation30], 1
    %4153 = vsyncpa %s4152, 1
    %4154 = vsyncpa [#allocation33], 1
    %s4155 = scalar_lea.sflag [#allocation33], 1
    %4156 = vsyncpa %s4155, 1
    %4157 = vsyncpa [#allocation36], 1
    %s4158 = scalar_lea.sflag [#allocation36], 1
    %4159 = vsyncpa %s4158, 1
    %4160 = vsyncpa [#allocation4], 1
    %s4161 = scalar_lea.sflag [#allocation4], 1
    %4162 = vsyncpa %s4161, 1

</llo_original>
